<compile_context>
chip_gen: v7x
topology: tpu7x:2x2x1
jax: 0.10.0
libtpu: 0.0.40
codegen_flags: <defaults>
</compile_context>

<pallas_src>
import functools

import jax
import jax.numpy as jnp
from jax import lax
from jax.experimental import pallas as pl
from jax.experimental.pallas import tpu as pltpu


def _pick_block_batch(B_, nW):
    """Windows per grid step: a multiple of nW that divides B_, grown as large as
    possible while keeping >= 2 grid steps (so v7x's two TensorCores both work)."""
    if B_ % nW != 0:
        return 1
    bblk = nW
    nxt = bblk + nW
    while nxt <= B_ and B_ % nxt == 0 and B_ // nxt >= 2:
        bblk = nxt
        nxt += nW
    return bblk


def _attn_kernel(x_ref, y_ref, oer_ref, oec_ref, wmask_ref, rpb_ref,
                 wq_ref, bq_ref, wkv_ref, bkv_ref, wp_ref, bp_ref,
                 o_ref, attn_ref,
                 *, num_heads, head_dim, scale, bblk, n_win_masks, N, C):
    # Fused projections over all bblk windows at once: (bblk*N, C) MXU matmuls.
    x = x_ref[...].reshape(bblk * N, C)
    y = y_ref[...].reshape(bblk * N, C)
    q = (jnp.dot(x, wq_ref[...], preferred_element_type=jnp.float32)
         + bq_ref[...]) * scale                                        # (bblk*N, C)
    kv = (jnp.dot(y, wkv_ref[...], preferred_element_type=jnp.float32)
          + bkv_ref[...])                                              # (bblk*N, 2C)

    for w in range(bblk):
        sl = slice(w * N, (w + 1) * N)
        q_w = q[sl]                                                    # (N, C)
        kv_w = kv[sl]                                                  # (N, 2C)

        # Overexposure mask outer product: (N,1) * (1,N) -> (N,N), pure VPU.
        mask_attn = oec_ref[w] * oer_ref[w]

        # Shifted-window additive mask for this flat-batch index (b % nW).
        if bblk % n_win_masks == 0:
            add_mask = wmask_ref[w % n_win_masks]          # static: blocks are nW-aligned
        else:
            add_mask = wmask_ref[(pl.program_id(0) * bblk + w) % n_win_masks]

        o_acc = jnp.zeros((N, C), jnp.float32)
        for h in range(num_heads):
            lo, hi = h * head_dim, (h + 1) * head_dim
            qh = q_w[:, lo:hi]                                         # (N, hd), already scaled
            kh = kv_w[:, lo:hi]                                        # (N, hd)
            vh = kv_w[:, C + lo:C + hi]                                # (N, hd)

            # attn = (q * scale) @ k^T  (contract over head_dim) -> (N, N)
            a = lax.dot_general(qh, kh, (((1,), (1,)), ((), ())),
                                preferred_element_type=jnp.float32)
            a = a * mask_attn + rpb_ref[h] + add_mask

            # softmax over last axis
            a = a - jnp.max(a, axis=-1, keepdims=True)
            e = jnp.exp(a)
            # exact reciprocal (approx=True would use the EUP but perturb numerics;
            # attn is a module output, keep it exact)
            p = e * pl.reciprocal(jnp.sum(e, axis=-1, keepdims=True), approx=False)

            # lane-dense attention writeback: heads stacked along the last axis
            attn_ref[w, :, h * N:(h + 1) * N] = p

            # (p @ v_h) @ wp[h]  accumulated  ==  concat_h(p @ v_h) @ wp
            o_acc = o_acc + jnp.dot(
                jnp.dot(p, vh, preferred_element_type=jnp.float32),
                wp_ref[lo:hi, :], preferred_element_type=jnp.float32)

        o_ref[w] = o_acc + bp_ref[...]


def cross_window_attention(x, y, overexposure_mask, window_mask, rel_pos_bias,
                           params, *, num_heads):
    """x, y: (B_, N, C); overexposure_mask: (B_, N); window_mask: (nW, N, N);
    rel_pos_bias: (num_heads, N, N). Returns (out (B_, N, C), attn (B_, nh, N, N))."""
    B_, N, C = x.shape
    nW = window_mask.shape[0]
    head_dim = C // num_heads
    scale = head_dim ** -0.5
    bblk = _pick_block_batch(B_, nW)
    grid_b = B_ // bblk

    wq, bq, wk, bk, wv, bv, wp, bp = params
    bq = bq.reshape(1, C)
    bp = bp.reshape(1, C)
    wkv = jnp.concatenate([wk, wv], axis=1)            # (C, 2C) fused k|v weight
    bkv = jnp.concatenate([bk, bv]).reshape(1, 2 * C)  # (1, 2C)

    # Tiny per-window mask vectors in both layouts; the (N, N) outer product is
    # formed in-kernel (replaces a (B_, N, N) precomputed HBM array).
    oe_row = overexposure_mask[:, None, :]             # (B_, 1, N)
    oe_col = overexposure_mask[:, :, None]             # (B_, N, 1)

    kernel = functools.partial(
        _attn_kernel, num_heads=num_heads, head_dim=head_dim, scale=scale,
        bblk=bblk, n_win_masks=nW, N=N, C=C)

    batch3 = lambda b: (b, 0, 0)
    full2 = lambda b: (0, 0)
    full3 = lambda b: (0, 0, 0)

    out, attn_flat = pl.pallas_call(
        kernel,
        out_shape=(
            jax.ShapeDtypeStruct((B_, N, C), jnp.float32),
            jax.ShapeDtypeStruct((B_, N, num_heads * N), jnp.float32),
        ),
        grid_spec=pltpu.PrefetchScalarGridSpec(
            num_scalar_prefetch=0,
            grid=(grid_b,),
            in_specs=[
                pl.BlockSpec((bblk, N, C), batch3),             # x
                pl.BlockSpec((bblk, N, C), batch3),             # y
                pl.BlockSpec((bblk, 1, N), batch3),             # overexposure (row layout)
                pl.BlockSpec((bblk, N, 1), batch3),             # overexposure (col layout)
                pl.BlockSpec((nW, N, N), full3),                # shifted-window masks
                pl.BlockSpec((num_heads, N, N), full3),         # relative position bias
                pl.BlockSpec((C, C), full2),                    # wq
                pl.BlockSpec((1, C), full2),                    # bq
                pl.BlockSpec((C, 2 * C), full2),                # wk|wv fused
                pl.BlockSpec((1, 2 * C), full2),                # bk|bv fused
                pl.BlockSpec((C, C), full2),                    # wp (proj)
                pl.BlockSpec((1, C), full2),                    # bp (proj)
            ],
            out_specs=[
                pl.BlockSpec((bblk, N, C), batch3),
                pl.BlockSpec((bblk, N, num_heads * N), batch3),
            ],
        ),
        compiler_params=pltpu.CompilerParams(
            dimension_semantics=("parallel",)),
    )(x, y, oe_row, oe_col, window_mask, rel_pos_bias,
      wq, bq, wkv, bkv, wp, bp)

    # Lane-dense (B_, N, nh*N) kernel output -> canonical (B_, nh, N, N).
    attn = attn_flat.reshape(B_, N, num_heads, N).transpose(0, 2, 1, 3)
    return out, attn


def make_relative_position_bias(table, window_size):
    """table: ((2*Wh-1)*(2*Ww-1), num_heads) -> (num_heads, N, N)."""
    Wh, Ww = window_size
    coords_h = jnp.arange(Wh)
    coords_w = jnp.arange(Ww)
    coords = jnp.stack(jnp.meshgrid(coords_h, coords_w, indexing='ij'))  # (2, Wh, Ww)
    coords_flatten = coords.reshape(2, -1)                               # (2, N)
    rel = coords_flatten[:, :, None] - coords_flatten[:, None, :]        # (2, N, N)
    rel = rel.transpose(1, 2, 0)                                         # (N, N, 2)
    rel = rel.at[:, :, 0].add(Wh - 1)
    rel = rel.at[:, :, 1].add(Ww - 1)
    rel = rel.at[:, :, 0].multiply(2 * Ww - 1)
    rpi = rel.sum(-1)                                                    # (N, N)
    N = Wh * Ww
    nh = table.shape[1]
    rpb = table[rpi.reshape(-1)].reshape(N, N, nh).transpose(2, 0, 1)    # (nh, N, N)
    return rpb


def reference(x, y, oe, window_mask, rpb, params, *, num_heads):
    B_, N, C = x.shape
    nW = window_mask.shape[0]
    hd = C // num_heads
    scale = hd ** -0.5
    wq, bq, wk, bk, wv, bv, wp, bp = params
    q = (x @ wq + bq).reshape(B_, N, num_heads, hd).transpose(0, 2, 1, 3)
    k = (y @ wk + bk).reshape(B_, N, num_heads, hd).transpose(0, 2, 1, 3)
    v = (y @ wv + bv).reshape(B_, N, num_heads, hd).transpose(0, 2, 1, 3)
    attn = (q * scale) @ k.transpose(0, 1, 3, 2)
    mask_attn = oe[:, :, None] * oe[:, None, :]
    attn = attn * mask_attn[:, None]
    attn = attn + rpb[None]
    attn = attn.reshape(B_ // nW, nW, num_heads, N, N) + window_mask[None, :, None]
    attn = attn.reshape(B_, num_heads, N, N)
    attn = jax.nn.softmax(attn, axis=-1)
    out = (attn @ v).transpose(0, 2, 1, 3).reshape(B_, N, C)
    out = out @ wp + bp
    return out, attn


if __name__ == "__main__":
    # small shapes: dim=32, window=(8,8) -> N=64, num_heads=4, nW=2, B_=4
    dim = 32
    window_size = (8, 8)
    num_heads = 4
    N = window_size[0] * window_size[1]
    nW = 2
    B_ = 4

    key = jax.random.PRNGKey(0)
    keys = jax.random.split(key, 16)

    x = jax.random.normal(keys[0], (B_, N, dim), dtype=jnp.float32)
    y = jax.random.normal(keys[1], (B_, N, dim), dtype=jnp.float32)
    overexposure_mask = (jax.random.uniform(keys[2], (B_, N)) > 0.3).astype(jnp.float32)
    window_mask = jnp.where(
        jax.random.uniform(keys[3], (nW, N, N)) > 0.5, 0.0, -100.0).astype(jnp.float32)

    # deterministic parameter init (weights stored as (in, out) = PyTorch W^T)
    def lin(kw, kb):
        w = jax.random.normal(kw, (dim, dim), dtype=jnp.float32) * 0.05
        b = jax.random.normal(kb, (dim,), dtype=jnp.float32) * 0.01
        return w, b

    wq, bq = lin(keys[4], keys[5])
    wk, bk = lin(keys[6], keys[7])
    wv, bv = lin(keys[8], keys[9])
    wp, bp = lin(keys[10], keys[11])
    params = (wq, bq, wk, bk, wv, bv, wp, bp)

    table_size = (2 * window_size[0] - 1) * (2 * window_size[1] - 1)
    rpb_table = 0.02 * jax.random.truncated_normal(
        keys[12], -2.0, 2.0, (table_size, num_heads), dtype=jnp.float32)
    rpb = make_relative_position_bias(rpb_table, window_size)

    out, attn = cross_window_attention(
        x, y, overexposure_mask, window_mask, rpb, params, num_heads=num_heads)
    out = jax.block_until_ready(out)
    attn = jax.block_until_ready(attn)

    out_ref, attn_ref = reference(
        x, y, overexposure_mask, window_mask, rpb, params, num_heads=num_heads)

    assert jnp.allclose(out, out_ref, rtol=1e-4, atol=1e-4), "output mismatch"
    assert jnp.allclose(attn, attn_ref, rtol=1e-4, atol=1e-4), "attn mismatch"
    print("KERNEL_OK")
</pallas_src>

<mosaic_0001>
module attributes {stable_mosaic.version = 11 : i64} {
  func.func @_attn_kernel(%arg0: i32, %arg1: memref<2x64x32xf32, #tpu.memory_space<vmem>>, %arg2: memref<2x64x32xf32, #tpu.memory_space<vmem>>, %arg3: memref<2x1x64xf32, #tpu.memory_space<vmem>>, %arg4: memref<2x64x1xf32, #tpu.memory_space<vmem>>, %arg5: memref<2x64x64xf32, #tpu.memory_space<vmem>>, %arg6: memref<4x64x64xf32, #tpu.memory_space<vmem>>, %arg7: memref<32x32xf32, #tpu.memory_space<vmem>>, %arg8: memref<1x32xf32, #tpu.memory_space<vmem>>, %arg9: memref<32x64xf32, #tpu.memory_space<vmem>>, %arg10: memref<1x64xf32, #tpu.memory_space<vmem>>, %arg11: memref<32x32xf32, #tpu.memory_space<vmem>>, %arg12: memref<1x32xf32, #tpu.memory_space<vmem>>, %arg13: memref<2x64x32xf32, #tpu.memory_space<vmem>>, %arg14: memref<2x64x256xf32, #tpu.memory_space<vmem>>) attributes {dimension_semantics = [#tpu.dimension_semantics<parallel>], iteration_bounds = array<i64: 2>, scalar_prefetch = 0 : i64, scratch_operands = 0 : i64, tpu.core_type = #tpu.core_type<tc>, window_params = [{transform_indices = @transform_0, window_bounds = array<i64: 2, 64, 32>}, {transform_indices = @transform_1, window_bounds = array<i64: 2, 64, 32>}, {transform_indices = @transform_2, window_bounds = array<i64: 2, 1, 64>}, {transform_indices = @transform_3, window_bounds = array<i64: 2, 64, 1>}, {pipeline_mode = #tpu.pipeline_mode<synchronous>, transform_indices = @transform_4, window_bounds = array<i64: 2, 64, 64>}, {pipeline_mode = #tpu.pipeline_mode<synchronous>, transform_indices = @transform_5, window_bounds = array<i64: 4, 64, 64>}, {pipeline_mode = #tpu.pipeline_mode<synchronous>, transform_indices = @transform_6, window_bounds = array<i64: 32, 32>}, {pipeline_mode = #tpu.pipeline_mode<synchronous>, transform_indices = @transform_7, window_bounds = array<i64: 1, 32>}, {pipeline_mode = #tpu.pipeline_mode<synchronous>, transform_indices = @transform_8, window_bounds = array<i64: 32, 64>}, {pipeline_mode = #tpu.pipeline_mode<synchronous>, transform_indices = @transform_9, window_bounds = array<i64: 1, 64>}, {pipeline_mode = #tpu.pipeline_mode<synchronous>, transform_indices = @transform_10, window_bounds = array<i64: 32, 32>}, {pipeline_mode = #tpu.pipeline_mode<synchronous>, transform_indices = @transform_11, window_bounds = array<i64: 1, 32>}, {transform_indices = @transform_12, window_bounds = array<i64: 2, 64, 32>}, {transform_indices = @transform_13, window_bounds = array<i64: 2, 64, 256>}]} {
    %c0 = arith.constant 0 : index
    %c0_0 = arith.constant 0 : index
    %c0_1 = arith.constant 0 : index
    %0 = vector.load %arg1[%c0, %c0_0, %c0_1] : memref<2x64x32xf32, #tpu.memory_space<vmem>>, vector<2x64x32xf32>
    %1 = vector.shape_cast %0 : vector<2x64x32xf32> to vector<128x32xf32>
    %c0_2 = arith.constant 0 : index
    %c0_3 = arith.constant 0 : index
    %c0_4 = arith.constant 0 : index
    %2 = vector.load %arg2[%c0_2, %c0_3, %c0_4] : memref<2x64x32xf32, #tpu.memory_space<vmem>>, vector<2x64x32xf32>
    %3 = vector.shape_cast %2 : vector<2x64x32xf32> to vector<128x32xf32>
    %c0_5 = arith.constant 0 : index
    %c0_6 = arith.constant 0 : index
    %4 = vector.load %arg7[%c0_5, %c0_6] : memref<32x32xf32, #tpu.memory_space<vmem>>, vector<32x32xf32>
    %cst = arith.constant dense<0.000000e+00> : vector<128x32xf32>
    %5 = tpu.matmul %1, %4, %cst {dimension_numbers = #tpu.dot_dimension_numbers<[1], [0], [0], [1], [0, 0, 1, 1], [], []>} : vector<128x32xf32>, vector<32x32xf32>, vector<128x32xf32> -> vector<128x32xf32>
    %c0_7 = arith.constant 0 : index
    %c0_8 = arith.constant 0 : index
    %6 = vector.load %arg8[%c0_7, %c0_8] : memref<1x32xf32, #tpu.memory_space<vmem>>, vector<1x32xf32>
    %7 = vector.broadcast %6 : vector<1x32xf32> to vector<128x32xf32>
    %8 = arith.addf %5, %7 : vector<128x32xf32>
    %cst_9 = arith.constant 0.353553385 : f32
    %9 = vector.broadcast %cst_9 : f32 to vector<128x32xf32>
    %10 = arith.mulf %8, %9 : vector<128x32xf32>
    %c0_10 = arith.constant 0 : index
    %c0_11 = arith.constant 0 : index
    %11 = vector.load %arg9[%c0_10, %c0_11] : memref<32x64xf32, #tpu.memory_space<vmem>>, vector<32x64xf32>
    %cst_12 = arith.constant dense<0.000000e+00> : vector<128x64xf32>
    %12 = tpu.matmul %3, %11, %cst_12 {dimension_numbers = #tpu.dot_dimension_numbers<[1], [0], [0], [1], [0, 0, 1, 1], [], []>} : vector<128x32xf32>, vector<32x64xf32>, vector<128x64xf32> -> vector<128x64xf32>
    %c0_13 = arith.constant 0 : index
    %c0_14 = arith.constant 0 : index
    %13 = vector.load %arg10[%c0_13, %c0_14] : memref<1x64xf32, #tpu.memory_space<vmem>>, vector<1x64xf32>
    %14 = vector.broadcast %13 : vector<1x64xf32> to vector<128x64xf32>
    %15 = arith.addf %12, %14 : vector<128x64xf32>
    %16 = vector.extract_strided_slice %10 {offsets = [0, 0], sizes = [64, 32], strides = [1, 1]} : vector<128x32xf32> to vector<64x32xf32>
    %17 = vector.extract_strided_slice %15 {offsets = [0, 0], sizes = [64, 64], strides = [1, 1]} : vector<128x64xf32> to vector<64x64xf32>
    %c0_15 = arith.constant 0 : index
    %c0_16 = arith.constant 0 : index
    %c0_17 = arith.constant 0 : index
    %18 = vector.load %arg4[%c0_15, %c0_16, %c0_17] : memref<2x64x1xf32, #tpu.memory_space<vmem>>, vector<1x64x1xf32>
    %19 = vector.shape_cast %18 : vector<1x64x1xf32> to vector<64x1xf32>
    %c0_18 = arith.constant 0 : index
    %c0_19 = arith.constant 0 : index
    %c0_20 = arith.constant 0 : index
    %20 = vector.load %arg3[%c0_18, %c0_19, %c0_20] : memref<2x1x64xf32, #tpu.memory_space<vmem>>, vector<1x1x64xf32>
    %21 = vector.shape_cast %20 : vector<1x1x64xf32> to vector<1x64xf32>
    %22 = vector.broadcast %19 : vector<64x1xf32> to vector<64x64xf32>
    %23 = vector.broadcast %21 : vector<1x64xf32> to vector<64x64xf32>
    %24 = arith.mulf %22, %23 : vector<64x64xf32>
    %c0_21 = arith.constant 0 : index
    %c0_22 = arith.constant 0 : index
    %c0_23 = arith.constant 0 : index
    %25 = vector.load %arg5[%c0_21, %c0_22, %c0_23] : memref<2x64x64xf32, #tpu.memory_space<vmem>>, vector<1x64x64xf32>
    %26 = vector.shape_cast %25 : vector<1x64x64xf32> to vector<64x64xf32>
    %cst_24 = arith.constant 0.000000e+00 : f32
    %27 = vector.broadcast %cst_24 : f32 to vector<64x32xf32>
    %28 = vector.extract_strided_slice %16 {offsets = [0, 0], sizes = [64, 8], strides = [1, 1]} : vector<64x32xf32> to vector<64x8xf32>
    %29 = vector.extract_strided_slice %17 {offsets = [0, 0], sizes = [64, 8], strides = [1, 1]} : vector<64x64xf32> to vector<64x8xf32>
    %30 = vector.extract_strided_slice %17 {offsets = [0, 32], sizes = [64, 8], strides = [1, 1]} : vector<64x64xf32> to vector<64x8xf32>
    %cst_25 = arith.constant dense<0.000000e+00> : vector<64x64xf32>
    %31 = tpu.matmul %28, %29, %cst_25 {dimension_numbers = #tpu.dot_dimension_numbers<[1], [1], [0], [0], [0, 0, 1, 0], [], []>} : vector<64x8xf32>, vector<64x8xf32>, vector<64x64xf32> -> vector<64x64xf32>
    %32 = arith.mulf %31, %24 : vector<64x64xf32>
    %c0_26 = arith.constant 0 : index
    %c0_27 = arith.constant 0 : index
    %c0_28 = arith.constant 0 : index
    %33 = vector.load %arg6[%c0_26, %c0_27, %c0_28] : memref<4x64x64xf32, #tpu.memory_space<vmem>>, vector<1x64x64xf32>
    %34 = vector.shape_cast %33 : vector<1x64x64xf32> to vector<64x64xf32>
    %35 = arith.addf %32, %34 : vector<64x64xf32>
    %36 = arith.addf %35, %26 : vector<64x64xf32>
    %cst_29 = arith.constant dense<0xFF800000> : vector<64xf32>
    %37 = vector.multi_reduction <maximumf>, %36, %cst_29 [1] : vector<64x64xf32> to vector<64xf32>
    %38 = vector.shape_cast %37 : vector<64xf32> to vector<64x1xf32>
    %39 = vector.broadcast %38 : vector<64x1xf32> to vector<64x64xf32>
    %40 = arith.subf %36, %39 : vector<64x64xf32>
    %41 = math.exp %40 : vector<64x64xf32>
    %cst_30 = arith.constant dense<0.000000e+00> : vector<64xf32>
    %42 = vector.multi_reduction <add>, %41, %cst_30 [1] : vector<64x64xf32> to vector<64xf32>
    %43 = vector.shape_cast %42 : vector<64xf32> to vector<64x1xf32>
    %44 = tpu.reciprocal %43 : vector<64x1xf32> -> vector<64x1xf32>
    %45 = vector.broadcast %44 : vector<64x1xf32> to vector<64x64xf32>
    %46 = arith.mulf %41, %45 : vector<64x64xf32>
    %c0_31 = arith.constant 0 : index
    %c0_32 = arith.constant 0 : index
    %c0_33 = arith.constant 0 : index
    %47 = vector.load %arg14[%c0_31, %c0_32, %c0_33] : memref<2x64x256xf32, #tpu.memory_space<vmem>>, vector<1x64x64xf32>
    %48 = vector.shape_cast %47 : vector<1x64x64xf32> to vector<64x64xf32>
    %49 = vector.shape_cast %46 : vector<64x64xf32> to vector<1x64x64xf32>
    tpu.vector_store %arg14[%c0_31, %c0_32, %c0_33], %49 {strides = array<i32>} : memref<2x64x256xf32, #tpu.memory_space<vmem>>, vector<1x64x64xf32>,
    %cst_34 = arith.constant dense<0.000000e+00> : vector<64x8xf32>
    %50 = tpu.matmul %46, %30, %cst_34 {dimension_numbers = #tpu.dot_dimension_numbers<[1], [0], [0], [1], [0, 0, 1, 1], [], []>} : vector<64x64xf32>, vector<64x8xf32>, vector<64x8xf32> -> vector<64x8xf32>
    %c0_35 = arith.constant 0 : index
    %c0_36 = arith.constant 0 : index
    %51 = vector.load %arg11[%c0_35, %c0_36] : memref<32x32xf32, #tpu.memory_space<vmem>>, vector<8x32xf32>
    %cst_37 = arith.constant dense<0.000000e+00> : vector<64x32xf32>
    %52 = tpu.matmul %50, %51, %cst_37 {dimension_numbers = #tpu.dot_dimension_numbers<[1], [0], [0], [1], [0, 0, 1, 1], [], []>} : vector<64x8xf32>, vector<8x32xf32>, vector<64x32xf32> -> vector<64x32xf32>
    %53 = arith.addf %27, %52 : vector<64x32xf32>
    %54 = vector.extract_strided_slice %16 {offsets = [0, 8], sizes = [64, 8], strides = [1, 1]} : vector<64x32xf32> to vector<64x8xf32>
    %55 = vector.extract_strided_slice %17 {offsets = [0, 8], sizes = [64, 8], strides = [1, 1]} : vector<64x64xf32> to vector<64x8xf32>
    %56 = vector.extract_strided_slice %17 {offsets = [0, 40], sizes = [64, 8], strides = [1, 1]} : vector<64x64xf32> to vector<64x8xf32>
    %cst_38 = arith.constant dense<0.000000e+00> : vector<64x64xf32>
    %57 = tpu.matmul %54, %55, %cst_38 {dimension_numbers = #tpu.dot_dimension_numbers<[1], [1], [0], [0], [0, 0, 1, 0], [], []>} : vector<64x8xf32>, vector<64x8xf32>, vector<64x64xf32> -> vector<64x64xf32>
    %58 = arith.mulf %57, %24 : vector<64x64xf32>
    %c1 = arith.constant 1 : index
    %c0_39 = arith.constant 0 : index
    %c0_40 = arith.constant 0 : index
    %59 = vector.load %arg6[%c1, %c0_39, %c0_40] : memref<4x64x64xf32, #tpu.memory_space<vmem>>, vector<1x64x64xf32>
    %60 = vector.shape_cast %59 : vector<1x64x64xf32> to vector<64x64xf32>
    %61 = arith.addf %58, %60 : vector<64x64xf32>
    %62 = arith.addf %61, %26 : vector<64x64xf32>
    %cst_41 = arith.constant dense<0xFF800000> : vector<64xf32>
    %63 = vector.multi_reduction <maximumf>, %62, %cst_41 [1] : vector<64x64xf32> to vector<64xf32>
    %64 = vector.shape_cast %63 : vector<64xf32> to vector<64x1xf32>
    %65 = vector.broadcast %64 : vector<64x1xf32> to vector<64x64xf32>
    %66 = arith.subf %62, %65 : vector<64x64xf32>
    %67 = math.exp %66 : vector<64x64xf32>
    %cst_42 = arith.constant dense<0.000000e+00> : vector<64xf32>
    %68 = vector.multi_reduction <add>, %67, %cst_42 [1] : vector<64x64xf32> to vector<64xf32>
    %69 = vector.shape_cast %68 : vector<64xf32> to vector<64x1xf32>
    %70 = tpu.reciprocal %69 : vector<64x1xf32> -> vector<64x1xf32>
    %71 = vector.broadcast %70 : vector<64x1xf32> to vector<64x64xf32>
    %72 = arith.mulf %67, %71 : vector<64x64xf32>
    %c0_43 = arith.constant 0 : index
    %c0_44 = arith.constant 0 : index
    %c64 = arith.constant 64 : index
    %73 = vector.load %arg14[%c0_43, %c0_44, %c64] : memref<2x64x256xf32, #tpu.memory_space<vmem>>, vector<1x64x64xf32>
    %74 = vector.shape_cast %73 : vector<1x64x64xf32> to vector<64x64xf32>
    %75 = vector.shape_cast %72 : vector<64x64xf32> to vector<1x64x64xf32>
    tpu.vector_store %arg14[%c0_43, %c0_44, %c64], %75 {strides = array<i32>} : memref<2x64x256xf32, #tpu.memory_space<vmem>>, vector<1x64x64xf32>,
    %cst_45 = arith.constant dense<0.000000e+00> : vector<64x8xf32>
    %76 = tpu.matmul %72, %56, %cst_45 {dimension_numbers = #tpu.dot_dimension_numbers<[1], [0], [0], [1], [0, 0, 1, 1], [], []>} : vector<64x64xf32>, vector<64x8xf32>, vector<64x8xf32> -> vector<64x8xf32>
    %c8 = arith.constant 8 : index
    %c0_46 = arith.constant 0 : index
    %77 = vector.load %arg11[%c8, %c0_46] : memref<32x32xf32, #tpu.memory_space<vmem>>, vector<8x32xf32>
    %cst_47 = arith.constant dense<0.000000e+00> : vector<64x32xf32>
    %78 = tpu.matmul %76, %77, %cst_47 {dimension_numbers = #tpu.dot_dimension_numbers<[1], [0], [0], [1], [0, 0, 1, 1], [], []>} : vector<64x8xf32>, vector<8x32xf32>, vector<64x32xf32> -> vector<64x32xf32>
    %79 = arith.addf %53, %78 : vector<64x32xf32>
    %80 = vector.extract_strided_slice %16 {offsets = [0, 16], sizes = [64, 8], strides = [1, 1]} : vector<64x32xf32> to vector<64x8xf32>
    %81 = vector.extract_strided_slice %17 {offsets = [0, 16], sizes = [64, 8], strides = [1, 1]} : vector<64x64xf32> to vector<64x8xf32>
    %82 = vector.extract_strided_slice %17 {offsets = [0, 48], sizes = [64, 8], strides = [1, 1]} : vector<64x64xf32> to vector<64x8xf32>
    %cst_48 = arith.constant dense<0.000000e+00> : vector<64x64xf32>
    %83 = tpu.matmul %80, %81, %cst_48 {dimension_numbers = #tpu.dot_dimension_numbers<[1], [1], [0], [0], [0, 0, 1, 0], [], []>} : vector<64x8xf32>, vector<64x8xf32>, vector<64x64xf32> -> vector<64x64xf32>
    %84 = arith.mulf %83, %24 : vector<64x64xf32>
    %c2 = arith.constant 2 : index
    %c0_49 = arith.constant 0 : index
    %c0_50 = arith.constant 0 : index
    %85 = vector.load %arg6[%c2, %c0_49, %c0_50] : memref<4x64x64xf32, #tpu.memory_space<vmem>>, vector<1x64x64xf32>
    %86 = vector.shape_cast %85 : vector<1x64x64xf32> to vector<64x64xf32>
    %87 = arith.addf %84, %86 : vector<64x64xf32>
    %88 = arith.addf %87, %26 : vector<64x64xf32>
    %cst_51 = arith.constant dense<0xFF800000> : vector<64xf32>
    %89 = vector.multi_reduction <maximumf>, %88, %cst_51 [1] : vector<64x64xf32> to vector<64xf32>
    %90 = vector.shape_cast %89 : vector<64xf32> to vector<64x1xf32>
    %91 = vector.broadcast %90 : vector<64x1xf32> to vector<64x64xf32>
    %92 = arith.subf %88, %91 : vector<64x64xf32>
    %93 = math.exp %92 : vector<64x64xf32>
    %cst_52 = arith.constant dense<0.000000e+00> : vector<64xf32>
    %94 = vector.multi_reduction <add>, %93, %cst_52 [1] : vector<64x64xf32> to vector<64xf32>
    %95 = vector.shape_cast %94 : vector<64xf32> to vector<64x1xf32>
    %96 = tpu.reciprocal %95 : vector<64x1xf32> -> vector<64x1xf32>
    %97 = vector.broadcast %96 : vector<64x1xf32> to vector<64x64xf32>
    %98 = arith.mulf %93, %97 : vector<64x64xf32>
    %c0_53 = arith.constant 0 : index
    %c0_54 = arith.constant 0 : index
    %c128 = arith.constant 128 : index
    %99 = vector.load %arg14[%c0_53, %c0_54, %c128] : memref<2x64x256xf32, #tpu.memory_space<vmem>>, vector<1x64x64xf32>
    %100 = vector.shape_cast %99 : vector<1x64x64xf32> to vector<64x64xf32>
    %101 = vector.shape_cast %98 : vector<64x64xf32> to vector<1x64x64xf32>
    tpu.vector_store %arg14[%c0_53, %c0_54, %c128], %101 {strides = array<i32>} : memref<2x64x256xf32, #tpu.memory_space<vmem>>, vector<1x64x64xf32>,
    %cst_55 = arith.constant dense<0.000000e+00> : vector<64x8xf32>
    %102 = tpu.matmul %98, %82, %cst_55 {dimension_numbers = #tpu.dot_dimension_numbers<[1], [0], [0], [1], [0, 0, 1, 1], [], []>} : vector<64x64xf32>, vector<64x8xf32>, vector<64x8xf32> -> vector<64x8xf32>
    %c16 = arith.constant 16 : index
    %c0_56 = arith.constant 0 : index
    %103 = vector.load %arg11[%c16, %c0_56] : memref<32x32xf32, #tpu.memory_space<vmem>>, vector<8x32xf32>
    %cst_57 = arith.constant dense<0.000000e+00> : vector<64x32xf32>
    %104 = tpu.matmul %102, %103, %cst_57 {dimension_numbers = #tpu.dot_dimension_numbers<[1], [0], [0], [1], [0, 0, 1, 1], [], []>} : vector<64x8xf32>, vector<8x32xf32>, vector<64x32xf32> -> vector<64x32xf32>
    %105 = arith.addf %79, %104 : vector<64x32xf32>
    %106 = vector.extract_strided_slice %16 {offsets = [0, 24], sizes = [64, 8], strides = [1, 1]} : vector<64x32xf32> to vector<64x8xf32>
    %107 = vector.extract_strided_slice %17 {offsets = [0, 24], sizes = [64, 8], strides = [1, 1]} : vector<64x64xf32> to vector<64x8xf32>
    %108 = vector.extract_strided_slice %17 {offsets = [0, 56], sizes = [64, 8], strides = [1, 1]} : vector<64x64xf32> to vector<64x8xf32>
    %cst_58 = arith.constant dense<0.000000e+00> : vector<64x64xf32>
    %109 = tpu.matmul %106, %107, %cst_58 {dimension_numbers = #tpu.dot_dimension_numbers<[1], [1], [0], [0], [0, 0, 1, 0], [], []>} : vector<64x8xf32>, vector<64x8xf32>, vector<64x64xf32> -> vector<64x64xf32>
    %110 = arith.mulf %109, %24 : vector<64x64xf32>
    %c3 = arith.constant 3 : index
    %c0_59 = arith.constant 0 : index
    %c0_60 = arith.constant 0 : index
    %111 = vector.load %arg6[%c3, %c0_59, %c0_60] : memref<4x64x64xf32, #tpu.memory_space<vmem>>, vector<1x64x64xf32>
    %112 = vector.shape_cast %111 : vector<1x64x64xf32> to vector<64x64xf32>
    %113 = arith.addf %110, %112 : vector<64x64xf32>
    %114 = arith.addf %113, %26 : vector<64x64xf32>
    %cst_61 = arith.constant dense<0xFF800000> : vector<64xf32>
    %115 = vector.multi_reduction <maximumf>, %114, %cst_61 [1] : vector<64x64xf32> to vector<64xf32>
    %116 = vector.shape_cast %115 : vector<64xf32> to vector<64x1xf32>
    %117 = vector.broadcast %116 : vector<64x1xf32> to vector<64x64xf32>
    %118 = arith.subf %114, %117 : vector<64x64xf32>
    %119 = math.exp %118 : vector<64x64xf32>
    %cst_62 = arith.constant dense<0.000000e+00> : vector<64xf32>
    %120 = vector.multi_reduction <add>, %119, %cst_62 [1] : vector<64x64xf32> to vector<64xf32>
    %121 = vector.shape_cast %120 : vector<64xf32> to vector<64x1xf32>
    %122 = tpu.reciprocal %121 : vector<64x1xf32> -> vector<64x1xf32>
    %123 = vector.broadcast %122 : vector<64x1xf32> to vector<64x64xf32>
    %124 = arith.mulf %119, %123 : vector<64x64xf32>
    %c0_63 = arith.constant 0 : index
    %c0_64 = arith.constant 0 : index
    %c192 = arith.constant 192 : index
    %125 = vector.load %arg14[%c0_63, %c0_64, %c192] : memref<2x64x256xf32, #tpu.memory_space<vmem>>, vector<1x64x64xf32>
    %126 = vector.shape_cast %125 : vector<1x64x64xf32> to vector<64x64xf32>
    %127 = vector.shape_cast %124 : vector<64x64xf32> to vector<1x64x64xf32>
    tpu.vector_store %arg14[%c0_63, %c0_64, %c192], %127 {strides = array<i32>} : memref<2x64x256xf32, #tpu.memory_space<vmem>>, vector<1x64x64xf32>,
    %cst_65 = arith.constant dense<0.000000e+00> : vector<64x8xf32>
    %128 = tpu.matmul %124, %108, %cst_65 {dimension_numbers = #tpu.dot_dimension_numbers<[1], [0], [0], [1], [0, 0, 1, 1], [], []>} : vector<64x64xf32>, vector<64x8xf32>, vector<64x8xf32> -> vector<64x8xf32>
    %c24 = arith.constant 24 : index
    %c0_66 = arith.constant 0 : index
    %129 = vector.load %arg11[%c24, %c0_66] : memref<32x32xf32, #tpu.memory_space<vmem>>, vector<8x32xf32>
    %cst_67 = arith.constant dense<0.000000e+00> : vector<64x32xf32>
    %130 = tpu.matmul %128, %129, %cst_67 {dimension_numbers = #tpu.dot_dimension_numbers<[1], [0], [0], [1], [0, 0, 1, 1], [], []>} : vector<64x8xf32>, vector<8x32xf32>, vector<64x32xf32> -> vector<64x32xf32>
    %131 = arith.addf %105, %130 : vector<64x32xf32>
    %c0_68 = arith.constant 0 : index
    %c0_69 = arith.constant 0 : index
    %132 = vector.load %arg12[%c0_68, %c0_69] : memref<1x32xf32, #tpu.memory_space<vmem>>, vector<1x32xf32>
    %133 = vector.broadcast %132 : vector<1x32xf32> to vector<64x32xf32>
    %134 = arith.addf %131, %133 : vector<64x32xf32>
    %c0_70 = arith.constant 0 : index
    %c0_71 = arith.constant 0 : index
    %c0_72 = arith.constant 0 : index
    %135 = vector.load %arg13[%c0_70, %c0_71, %c0_72] : memref<2x64x32xf32, #tpu.memory_space<vmem>>, vector<1x64x32xf32>
    %136 = vector.shape_cast %135 : vector<1x64x32xf32> to vector<64x32xf32>
    %137 = vector.shape_cast %134 : vector<64x32xf32> to vector<1x64x32xf32>
    tpu.vector_store %arg13[%c0_70, %c0_71, %c0_72], %137 {strides = array<i32>} : memref<2x64x32xf32, #tpu.memory_space<vmem>>, vector<1x64x32xf32>,
    %138 = vector.extract_strided_slice %10 {offsets = [64, 0], sizes = [64, 32], strides = [1, 1]} : vector<128x32xf32> to vector<64x32xf32>
    %139 = vector.extract_strided_slice %15 {offsets = [64, 0], sizes = [64, 64], strides = [1, 1]} : vector<128x64xf32> to vector<64x64xf32>
    %c1_73 = arith.constant 1 : index
    %c0_74 = arith.constant 0 : index
    %c0_75 = arith.constant 0 : index
    %140 = vector.load %arg4[%c1_73, %c0_74, %c0_75] : memref<2x64x1xf32, #tpu.memory_space<vmem>>, vector<1x64x1xf32>
    %141 = vector.shape_cast %140 : vector<1x64x1xf32> to vector<64x1xf32>
    %c1_76 = arith.constant 1 : index
    %c0_77 = arith.constant 0 : index
    %c0_78 = arith.constant 0 : index
    %142 = vector.load %arg3[%c1_76, %c0_77, %c0_78] : memref<2x1x64xf32, #tpu.memory_space<vmem>>, vector<1x1x64xf32>
    %143 = vector.shape_cast %142 : vector<1x1x64xf32> to vector<1x64xf32>
    %144 = vector.broadcast %141 : vector<64x1xf32> to vector<64x64xf32>
    %145 = vector.broadcast %143 : vector<1x64xf32> to vector<64x64xf32>
    %146 = arith.mulf %144, %145 : vector<64x64xf32>
    %c1_79 = arith.constant 1 : index
    %c0_80 = arith.constant 0 : index
    %c0_81 = arith.constant 0 : index
    %147 = vector.load %arg5[%c1_79, %c0_80, %c0_81] : memref<2x64x64xf32, #tpu.memory_space<vmem>>, vector<1x64x64xf32>
    %148 = vector.shape_cast %147 : vector<1x64x64xf32> to vector<64x64xf32>
    %cst_82 = arith.constant 0.000000e+00 : f32
    %149 = vector.broadcast %cst_82 : f32 to vector<64x32xf32>
    %150 = vector.extract_strided_slice %138 {offsets = [0, 0], sizes = [64, 8], strides = [1, 1]} : vector<64x32xf32> to vector<64x8xf32>
    %151 = vector.extract_strided_slice %139 {offsets = [0, 0], sizes = [64, 8], strides = [1, 1]} : vector<64x64xf32> to vector<64x8xf32>
    %152 = vector.extract_strided_slice %139 {offsets = [0, 32], sizes = [64, 8], strides = [1, 1]} : vector<64x64xf32> to vector<64x8xf32>
    %cst_83 = arith.constant dense<0.000000e+00> : vector<64x64xf32>
    %153 = tpu.matmul %150, %151, %cst_83 {dimension_numbers = #tpu.dot_dimension_numbers<[1], [1], [0], [0], [0, 0, 1, 0], [], []>} : vector<64x8xf32>, vector<64x8xf32>, vector<64x64xf32> -> vector<64x64xf32>
    %154 = arith.mulf %153, %146 : vector<64x64xf32>
    %c0_84 = arith.constant 0 : index
    %c0_85 = arith.constant 0 : index
    %c0_86 = arith.constant 0 : index
    %155 = vector.load %arg6[%c0_84, %c0_85, %c0_86] : memref<4x64x64xf32, #tpu.memory_space<vmem>>, vector<1x64x64xf32>
    %156 = vector.shape_cast %155 : vector<1x64x64xf32> to vector<64x64xf32>
    %157 = arith.addf %154, %156 : vector<64x64xf32>
    %158 = arith.addf %157, %148 : vector<64x64xf32>
    %cst_87 = arith.constant dense<0xFF800000> : vector<64xf32>
    %159 = vector.multi_reduction <maximumf>, %158, %cst_87 [1] : vector<64x64xf32> to vector<64xf32>
    %160 = vector.shape_cast %159 : vector<64xf32> to vector<64x1xf32>
    %161 = vector.broadcast %160 : vector<64x1xf32> to vector<64x64xf32>
    %162 = arith.subf %158, %161 : vector<64x64xf32>
    %163 = math.exp %162 : vector<64x64xf32>
    %cst_88 = arith.constant dense<0.000000e+00> : vector<64xf32>
    %164 = vector.multi_reduction <add>, %163, %cst_88 [1] : vector<64x64xf32> to vector<64xf32>
    %165 = vector.shape_cast %164 : vector<64xf32> to vector<64x1xf32>
    %166 = tpu.reciprocal %165 : vector<64x1xf32> -> vector<64x1xf32>
    %167 = vector.broadcast %166 : vector<64x1xf32> to vector<64x64xf32>
    %168 = arith.mulf %163, %167 : vector<64x64xf32>
    %c1_89 = arith.constant 1 : index
    %c0_90 = arith.constant 0 : index
    %c0_91 = arith.constant 0 : index
    %169 = vector.load %arg14[%c1_89, %c0_90, %c0_91] : memref<2x64x256xf32, #tpu.memory_space<vmem>>, vector<1x64x64xf32>
    %170 = vector.shape_cast %169 : vector<1x64x64xf32> to vector<64x64xf32>
    %171 = vector.shape_cast %168 : vector<64x64xf32> to vector<1x64x64xf32>
    tpu.vector_store %arg14[%c1_89, %c0_90, %c0_91], %171 {strides = array<i32>} : memref<2x64x256xf32, #tpu.memory_space<vmem>>, vector<1x64x64xf32>,
    %cst_92 = arith.constant dense<0.000000e+00> : vector<64x8xf32>
    %172 = tpu.matmul %168, %152, %cst_92 {dimension_numbers = #tpu.dot_dimension_numbers<[1], [0], [0], [1], [0, 0, 1, 1], [], []>} : vector<64x64xf32>, vector<64x8xf32>, vector<64x8xf32> -> vector<64x8xf32>
    %c0_93 = arith.constant 0 : index
    %c0_94 = arith.constant 0 : index
    %173 = vector.load %arg11[%c0_93, %c0_94] : memref<32x32xf32, #tpu.memory_space<vmem>>, vector<8x32xf32>
    %cst_95 = arith.constant dense<0.000000e+00> : vector<64x32xf32>
    %174 = tpu.matmul %172, %173, %cst_95 {dimension_numbers = #tpu.dot_dimension_numbers<[1], [0], [0], [1], [0, 0, 1, 1], [], []>} : vector<64x8xf32>, vector<8x32xf32>, vector<64x32xf32> -> vector<64x32xf32>
    %175 = arith.addf %149, %174 : vector<64x32xf32>
    %176 = vector.extract_strided_slice %138 {offsets = [0, 8], sizes = [64, 8], strides = [1, 1]} : vector<64x32xf32> to vector<64x8xf32>
    %177 = vector.extract_strided_slice %139 {offsets = [0, 8], sizes = [64, 8], strides = [1, 1]} : vector<64x64xf32> to vector<64x8xf32>
    %178 = vector.extract_strided_slice %139 {offsets = [0, 40], sizes = [64, 8], strides = [1, 1]} : vector<64x64xf32> to vector<64x8xf32>
    %cst_96 = arith.constant dense<0.000000e+00> : vector<64x64xf32>
    %179 = tpu.matmul %176, %177, %cst_96 {dimension_numbers = #tpu.dot_dimension_numbers<[1], [1], [0], [0], [0, 0, 1, 0], [], []>} : vector<64x8xf32>, vector<64x8xf32>, vector<64x64xf32> -> vector<64x64xf32>
    %180 = arith.mulf %179, %146 : vector<64x64xf32>
    %c1_97 = arith.constant 1 : index
    %c0_98 = arith.constant 0 : index
    %c0_99 = arith.constant 0 : index
    %181 = vector.load %arg6[%c1_97, %c0_98, %c0_99] : memref<4x64x64xf32, #tpu.memory_space<vmem>>, vector<1x64x64xf32>
    %182 = vector.shape_cast %181 : vector<1x64x64xf32> to vector<64x64xf32>
    %183 = arith.addf %180, %182 : vector<64x64xf32>
    %184 = arith.addf %183, %148 : vector<64x64xf32>
    %cst_100 = arith.constant dense<0xFF800000> : vector<64xf32>
    %185 = vector.multi_reduction <maximumf>, %184, %cst_100 [1] : vector<64x64xf32> to vector<64xf32>
    %186 = vector.shape_cast %185 : vector<64xf32> to vector<64x1xf32>
    %187 = vector.broadcast %186 : vector<64x1xf32> to vector<64x64xf32>
    %188 = arith.subf %184, %187 : vector<64x64xf32>
    %189 = math.exp %188 : vector<64x64xf32>
    %cst_101 = arith.constant dense<0.000000e+00> : vector<64xf32>
    %190 = vector.multi_reduction <add>, %189, %cst_101 [1] : vector<64x64xf32> to vector<64xf32>
    %191 = vector.shape_cast %190 : vector<64xf32> to vector<64x1xf32>
    %192 = tpu.reciprocal %191 : vector<64x1xf32> -> vector<64x1xf32>
    %193 = vector.broadcast %192 : vector<64x1xf32> to vector<64x64xf32>
    %194 = arith.mulf %189, %193 : vector<64x64xf32>
    %c1_102 = arith.constant 1 : index
    %c0_103 = arith.constant 0 : index
    %c64_104 = arith.constant 64 : index
    %195 = vector.load %arg14[%c1_102, %c0_103, %c64_104] : memref<2x64x256xf32, #tpu.memory_space<vmem>>, vector<1x64x64xf32>
    %196 = vector.shape_cast %195 : vector<1x64x64xf32> to vector<64x64xf32>
    %197 = vector.shape_cast %194 : vector<64x64xf32> to vector<1x64x64xf32>
    tpu.vector_store %arg14[%c1_102, %c0_103, %c64_104], %197 {strides = array<i32>} : memref<2x64x256xf32, #tpu.memory_space<vmem>>, vector<1x64x64xf32>,
    %cst_105 = arith.constant dense<0.000000e+00> : vector<64x8xf32>
    %198 = tpu.matmul %194, %178, %cst_105 {dimension_numbers = #tpu.dot_dimension_numbers<[1], [0], [0], [1], [0, 0, 1, 1], [], []>} : vector<64x64xf32>, vector<64x8xf32>, vector<64x8xf32> -> vector<64x8xf32>
    %c8_106 = arith.constant 8 : index
    %c0_107 = arith.constant 0 : index
    %199 = vector.load %arg11[%c8_106, %c0_107] : memref<32x32xf32, #tpu.memory_space<vmem>>, vector<8x32xf32>
    %cst_108 = arith.constant dense<0.000000e+00> : vector<64x32xf32>
    %200 = tpu.matmul %198, %199, %cst_108 {dimension_numbers = #tpu.dot_dimension_numbers<[1], [0], [0], [1], [0, 0, 1, 1], [], []>} : vector<64x8xf32>, vector<8x32xf32>, vector<64x32xf32> -> vector<64x32xf32>
    %201 = arith.addf %175, %200 : vector<64x32xf32>
    %202 = vector.extract_strided_slice %138 {offsets = [0, 16], sizes = [64, 8], strides = [1, 1]} : vector<64x32xf32> to vector<64x8xf32>
    %203 = vector.extract_strided_slice %139 {offsets = [0, 16], sizes = [64, 8], strides = [1, 1]} : vector<64x64xf32> to vector<64x8xf32>
    %204 = vector.extract_strided_slice %139 {offsets = [0, 48], sizes = [64, 8], strides = [1, 1]} : vector<64x64xf32> to vector<64x8xf32>
    %cst_109 = arith.constant dense<0.000000e+00> : vector<64x64xf32>
    %205 = tpu.matmul %202, %203, %cst_109 {dimension_numbers = #tpu.dot_dimension_numbers<[1], [1], [0], [0], [0, 0, 1, 0], [], []>} : vector<64x8xf32>, vector<64x8xf32>, vector<64x64xf32> -> vector<64x64xf32>
    %206 = arith.mulf %205, %146 : vector<64x64xf32>
    %c2_110 = arith.constant 2 : index
    %c0_111 = arith.constant 0 : index
    %c0_112 = arith.constant 0 : index
    %207 = vector.load %arg6[%c2_110, %c0_111, %c0_112] : memref<4x64x64xf32, #tpu.memory_space<vmem>>, vector<1x64x64xf32>
    %208 = vector.shape_cast %207 : vector<1x64x64xf32> to vector<64x64xf32>
    %209 = arith.addf %206, %208 : vector<64x64xf32>
    %210 = arith.addf %209, %148 : vector<64x64xf32>
    %cst_113 = arith.constant dense<0xFF800000> : vector<64xf32>
    %211 = vector.multi_reduction <maximumf>, %210, %cst_113 [1] : vector<64x64xf32> to vector<64xf32>
    %212 = vector.shape_cast %211 : vector<64xf32> to vector<64x1xf32>
    %213 = vector.broadcast %212 : vector<64x1xf32> to vector<64x64xf32>
    %214 = arith.subf %210, %213 : vector<64x64xf32>
    %215 = math.exp %214 : vector<64x64xf32>
    %cst_114 = arith.constant dense<0.000000e+00> : vector<64xf32>
    %216 = vector.multi_reduction <add>, %215, %cst_114 [1] : vector<64x64xf32> to vector<64xf32>
    %217 = vector.shape_cast %216 : vector<64xf32> to vector<64x1xf32>
    %218 = tpu.reciprocal %217 : vector<64x1xf32> -> vector<64x1xf32>
    %219 = vector.broadcast %218 : vector<64x1xf32> to vector<64x64xf32>
    %220 = arith.mulf %215, %219 : vector<64x64xf32>
    %c1_115 = arith.constant 1 : index
    %c0_116 = arith.constant 0 : index
    %c128_117 = arith.constant 128 : index
    %221 = vector.load %arg14[%c1_115, %c0_116, %c128_117] : memref<2x64x256xf32, #tpu.memory_space<vmem>>, vector<1x64x64xf32>
    %222 = vector.shape_cast %221 : vector<1x64x64xf32> to vector<64x64xf32>
    %223 = vector.shape_cast %220 : vector<64x64xf32> to vector<1x64x64xf32>
    tpu.vector_store %arg14[%c1_115, %c0_116, %c128_117], %223 {strides = array<i32>} : memref<2x64x256xf32, #tpu.memory_space<vmem>>, vector<1x64x64xf32>,
    %cst_118 = arith.constant dense<0.000000e+00> : vector<64x8xf32>
    %224 = tpu.matmul %220, %204, %cst_118 {dimension_numbers = #tpu.dot_dimension_numbers<[1], [0], [0], [1], [0, 0, 1, 1], [], []>} : vector<64x64xf32>, vector<64x8xf32>, vector<64x8xf32> -> vector<64x8xf32>
    %c16_119 = arith.constant 16 : index
    %c0_120 = arith.constant 0 : index
    %225 = vector.load %arg11[%c16_119, %c0_120] : memref<32x32xf32, #tpu.memory_space<vmem>>, vector<8x32xf32>
    %cst_121 = arith.constant dense<0.000000e+00> : vector<64x32xf32>
    %226 = tpu.matmul %224, %225, %cst_121 {dimension_numbers = #tpu.dot_dimension_numbers<[1], [0], [0], [1], [0, 0, 1, 1], [], []>} : vector<64x8xf32>, vector<8x32xf32>, vector<64x32xf32> -> vector<64x32xf32>
    %227 = arith.addf %201, %226 : vector<64x32xf32>
    %228 = vector.extract_strided_slice %138 {offsets = [0, 24], sizes = [64, 8], strides = [1, 1]} : vector<64x32xf32> to vector<64x8xf32>
    %229 = vector.extract_strided_slice %139 {offsets = [0, 24], sizes = [64, 8], strides = [1, 1]} : vector<64x64xf32> to vector<64x8xf32>
    %230 = vector.extract_strided_slice %139 {offsets = [0, 56], sizes = [64, 8], strides = [1, 1]} : vector<64x64xf32> to vector<64x8xf32>
    %cst_122 = arith.constant dense<0.000000e+00> : vector<64x64xf32>
    %231 = tpu.matmul %228, %229, %cst_122 {dimension_numbers = #tpu.dot_dimension_numbers<[1], [1], [0], [0], [0, 0, 1, 0], [], []>} : vector<64x8xf32>, vector<64x8xf32>, vector<64x64xf32> -> vector<64x64xf32>
    %232 = arith.mulf %231, %146 : vector<64x64xf32>
    %c3_123 = arith.constant 3 : index
    %c0_124 = arith.constant 0 : index
    %c0_125 = arith.constant 0 : index
    %233 = vector.load %arg6[%c3_123, %c0_124, %c0_125] : memref<4x64x64xf32, #tpu.memory_space<vmem>>, vector<1x64x64xf32>
    %234 = vector.shape_cast %233 : vector<1x64x64xf32> to vector<64x64xf32>
    %235 = arith.addf %232, %234 : vector<64x64xf32>
    %236 = arith.addf %235, %148 : vector<64x64xf32>
    %cst_126 = arith.constant dense<0xFF800000> : vector<64xf32>
    %237 = vector.multi_reduction <maximumf>, %236, %cst_126 [1] : vector<64x64xf32> to vector<64xf32>
    %238 = vector.shape_cast %237 : vector<64xf32> to vector<64x1xf32>
    %239 = vector.broadcast %238 : vector<64x1xf32> to vector<64x64xf32>
    %240 = arith.subf %236, %239 : vector<64x64xf32>
    %241 = math.exp %240 : vector<64x64xf32>
    %cst_127 = arith.constant dense<0.000000e+00> : vector<64xf32>
    %242 = vector.multi_reduction <add>, %241, %cst_127 [1] : vector<64x64xf32> to vector<64xf32>
    %243 = vector.shape_cast %242 : vector<64xf32> to vector<64x1xf32>
    %244 = tpu.reciprocal %243 : vector<64x1xf32> -> vector<64x1xf32>
    %245 = vector.broadcast %244 : vector<64x1xf32> to vector<64x64xf32>
    %246 = arith.mulf %241, %245 : vector<64x64xf32>
    %c1_128 = arith.constant 1 : index
    %c0_129 = arith.constant 0 : index
    %c192_130 = arith.constant 192 : index
    %247 = vector.load %arg14[%c1_128, %c0_129, %c192_130] : memref<2x64x256xf32, #tpu.memory_space<vmem>>, vector<1x64x64xf32>
    %248 = vector.shape_cast %247 : vector<1x64x64xf32> to vector<64x64xf32>
    %249 = vector.shape_cast %246 : vector<64x64xf32> to vector<1x64x64xf32>
    tpu.vector_store %arg14[%c1_128, %c0_129, %c192_130], %249 {strides = array<i32>} : memref<2x64x256xf32, #tpu.memory_space<vmem>>, vector<1x64x64xf32>,
    %cst_131 = arith.constant dense<0.000000e+00> : vector<64x8xf32>
    %250 = tpu.matmul %246, %230, %cst_131 {dimension_numbers = #tpu.dot_dimension_numbers<[1], [0], [0], [1], [0, 0, 1, 1], [], []>} : vector<64x64xf32>, vector<64x8xf32>, vector<64x8xf32> -> vector<64x8xf32>
    %c24_132 = arith.constant 24 : index
    %c0_133 = arith.constant 0 : index
    %251 = vector.load %arg11[%c24_132, %c0_133] : memref<32x32xf32, #tpu.memory_space<vmem>>, vector<8x32xf32>
    %cst_134 = arith.constant dense<0.000000e+00> : vector<64x32xf32>
    %252 = tpu.matmul %250, %251, %cst_134 {dimension_numbers = #tpu.dot_dimension_numbers<[1], [0], [0], [1], [0, 0, 1, 1], [], []>} : vector<64x8xf32>, vector<8x32xf32>, vector<64x32xf32> -> vector<64x32xf32>
    %253 = arith.addf %227, %252 : vector<64x32xf32>
    %c0_135 = arith.constant 0 : index
    %c0_136 = arith.constant 0 : index
    %254 = vector.load %arg12[%c0_135, %c0_136] : memref<1x32xf32, #tpu.memory_space<vmem>>, vector<1x32xf32>
    %255 = vector.broadcast %254 : vector<1x32xf32> to vector<64x32xf32>
    %256 = arith.addf %253, %255 : vector<64x32xf32>
    %c1_137 = arith.constant 1 : index
    %c0_138 = arith.constant 0 : index
    %c0_139 = arith.constant 0 : index
    %257 = vector.load %arg13[%c1_137, %c0_138, %c0_139] : memref<2x64x32xf32, #tpu.memory_space<vmem>>, vector<1x64x32xf32>
    %258 = vector.shape_cast %257 : vector<1x64x32xf32> to vector<64x32xf32>
    %259 = vector.shape_cast %256 : vector<64x32xf32> to vector<1x64x32xf32>
    tpu.vector_store %arg13[%c1_137, %c0_138, %c0_139], %259 {strides = array<i32>} : memref<2x64x32xf32, #tpu.memory_space<vmem>>, vector<1x64x32xf32>,
    return
  }
  func.func @transform_0(%arg0: i32) -> (i32, i32, i32) {
    %c0_i32 = arith.constant 0 : i32
    %c0_i32_0 = arith.constant 0 : i32
    %c0_i32_1 = arith.constant 0 : i32
    return %arg0, %c0_i32, %c0_i32_0 : i32, i32, i32
  }
  func.func @transform_1(%arg0: i32) -> (i32, i32, i32) {
    %c0_i32 = arith.constant 0 : i32
    %c0_i32_0 = arith.constant 0 : i32
    %c0_i32_1 = arith.constant 0 : i32
    return %arg0, %c0_i32, %c0_i32_0 : i32, i32, i32
  }
  func.func @transform_2(%arg0: i32) -> (i32, i32, i32) {
    %c0_i32 = arith.constant 0 : i32
    %c0_i32_0 = arith.constant 0 : i32
    %c0_i32_1 = arith.constant 0 : i32
    return %arg0, %c0_i32, %c0_i32_0 : i32, i32, i32
  }
  func.func @transform_3(%arg0: i32) -> (i32, i32, i32) {
    %c0_i32 = arith.constant 0 : i32
    %c0_i32_0 = arith.constant 0 : i32
    %c0_i32_1 = arith.constant 0 : i32
    return %arg0, %c0_i32, %c0_i32_0 : i32, i32, i32
  }
  func.func @transform_4(%arg0: i32) -> (i32, i32, i32) {
    %c0_i32 = arith.constant 0 : i32
    %c0_i32_0 = arith.constant 0 : i32
    %c0_i32_1 = arith.constant 0 : i32
    %c0_i32_2 = arith.constant 0 : i32
    return %c0_i32, %c0_i32_0, %c0_i32_1 : i32, i32, i32
  }
  func.func @transform_5(%arg0: i32) -> (i32, i32, i32) {
    %c0_i32 = arith.constant 0 : i32
    %c0_i32_0 = arith.constant 0 : i32
    %c0_i32_1 = arith.constant 0 : i32
    %c0_i32_2 = arith.constant 0 : i32
    return %c0_i32, %c0_i32_0, %c0_i32_1 : i32, i32, i32
  }
  func.func @transform_6(%arg0: i32) -> (i32, i32) {
    %c0_i32 = arith.constant 0 : i32
    %c0_i32_0 = arith.constant 0 : i32
    %c0_i32_1 = arith.constant 0 : i32
    return %c0_i32, %c0_i32_0 : i32, i32
  }
  func.func @transform_7(%arg0: i32) -> (i32, i32) {
    %c0_i32 = arith.constant 0 : i32
    %c0_i32_0 = arith.constant 0 : i32
    %c0_i32_1 = arith.constant 0 : i32
    return %c0_i32, %c0_i32_0 : i32, i32
  }
  func.func @transform_8(%arg0: i32) -> (i32, i32) {
    %c0_i32 = arith.constant 0 : i32
    %c0_i32_0 = arith.constant 0 : i32
    %c0_i32_1 = arith.constant 0 : i32
    return %c0_i32, %c0_i32_0 : i32, i32
  }
  func.func @transform_9(%arg0: i32) -> (i32, i32) {
    %c0_i32 = arith.constant 0 : i32
    %c0_i32_0 = arith.constant 0 : i32
    %c0_i32_1 = arith.constant 0 : i32
    return %c0_i32, %c0_i32_0 : i32, i32
  }
  func.func @transform_10(%arg0: i32) -> (i32, i32) {
    %c0_i32 = arith.constant 0 : i32
    %c0_i32_0 = arith.constant 0 : i32
    %c0_i32_1 = arith.constant 0 : i32
    return %c0_i32, %c0_i32_0 : i32, i32
  }
  func.func @transform_11(%arg0: i32) -> (i32, i32) {
    %c0_i32 = arith.constant 0 : i32
    %c0_i32_0 = arith.constant 0 : i32
    %c0_i32_1 = arith.constant 0 : i32
    return %c0_i32, %c0_i32_0 : i32, i32
  }
  func.func @transform_12(%arg0: i32) -> (i32, i32, i32) {
    %c0_i32 = arith.constant 0 : i32
    %c0_i32_0 = arith.constant 0 : i32
    %c0_i32_1 = arith.constant 0 : i32
    return %arg0, %c0_i32, %c0_i32_0 : i32, i32, i32
  }
  func.func @transform_13(%arg0: i32) -> (i32, i32, i32) {
    %c0_i32 = arith.constant 0 : i32
    %c0_i32_0 = arith.constant 0 : i32
    %c0_i32_1 = arith.constant 0 : i32
    return %arg0, %c0_i32, %c0_i32_0 : i32, i32, i32
  }
}

</mosaic_0001>

<llo_original>
// kernel: tpu_custom_call.1
$region0: #{tpu_custom_call.1}
  #allocation0 [shape = 'u32[]', space=smem, size = 0x4, offset = 0x4, fixed_abs, tag = 'smem constant byte address 0x4 - core index']
  #allocation1 [shape = 'u32[144,128]{1,0:T(1,128)}', space=vmem, size = 0x12000, scoped, tag = 'internal scratch']
  %s0 = inlined_call_operand.vmem [shape: f32[4,64,32], index: 0, kind: input, shape index: {}]
  %s1 = inlined_call_operand.vmem [shape: f32[4,64,32], index: 1, kind: input, shape index: {}]
  %s2 = inlined_call_operand.vmem [shape: f32[4,1,64], index: 2, kind: input, shape index: {}]
  %s3 = inlined_call_operand.vmem [shape: f32[4,64,1], index: 3, kind: input, shape index: {}]
  %s4 = inlined_call_operand.vmem [shape: f32[2,64,64], index: 4, kind: input, shape index: {}]
  %s5 = inlined_call_operand.vmem [shape: f32[4,64,64], index: 5, kind: input, shape index: {}]
  %s6 = inlined_call_operand.vmem [shape: f32[32,32], index: 6, kind: input, shape index: {}]
  %s7 = inlined_call_operand.vmem [shape: f32[1,32], index: 7, kind: input, shape index: {}]
  %s8 = inlined_call_operand.vmem [shape: f32[32,64], index: 8, kind: input, shape index: {}]
  %s9 = inlined_call_operand.vmem [shape: f32[1,64], index: 9, kind: input, shape index: {}]
  %s10 = inlined_call_operand.vmem [shape: f32[32,32], index: 10, kind: input, shape index: {}]
  %s11 = inlined_call_operand.vmem [shape: f32[1,32], index: 11, kind: input, shape index: {}]
  %s12 = inlined_call_operand.vmem [shape: f32[4,64,32], index: 12, kind: output, shape index: {0}]
  %s13 = inlined_call_operand.hbm [shape: f32[4,64,256], index: 13, kind: output, shape index: {1}]
  %14 = xla_tuple %s12, %s13
  %s15 = sld [smem:[#allocation0]]
  $region89: #{tpu_custom_call.1} parent=0
    _
  %s17 = ssub.s32 1, %s15
  %s18 = scalar_select 0, %s17, %s15
  $region1: #{tpu_custom_call.1} parent=0
    #allocation2 [shape = 'u8[262144]{0}', space=vmem, size = 0x40000, scoped, tag = 'output window, operand 1']
    #allocation3 [shape = 's32[2]{0}', space=sflag, size = 0x8, scoped, tag = 'scoped memory for tpu_custom_call.1']
    %19 = vsyncpa [#allocation3], 0
    %s20 = scalar_lea.sflag [#allocation3], 1
    %21 = vsyncpa %s20, 0
    loop: start=0, step=1, limit=4
    $region2: #{tpu_custom_call.1} parent=1 // loop_pre_header
      _
    $region3: #{tpu_custom_call.1} parent=1 // loop_header
      %s23 = sphi 0, %s27
      %p24 = scmp.ge.s32.totalorder %s23, 4
      %s33 = sphi 0, %s35
      %s36 = sphi 0, %s33
      %s37 = sphi 0, %s36
      %s53 = sphi 0, %s37
      %s59 = sphi 0, %s61
      %s62 = sphi 0, %s59
      %s63 = sphi 0, %s62
      %s79 = sphi 0, %s63
      %s85 = sphi 0, %s87
      %s88 = sphi 0, %s85
      %s89 = sphi 0, %s88
      %s105 = sphi 0, %s89
      %s111 = sphi 0, %s113
      %s114 = sphi 0, %s111
      %s115 = sphi 0, %s114
      %s131 = sphi 0, %s115
      %s135 = sphi 0, %s135
      %s137 = sphi 0, %s135
      %s138 = sphi 0, %s137
      %s152 = sphi 0, %s138
      %s156 = sphi 0, %s156
      %s158 = sphi 0, %s156
      %s159 = sphi 0, %s158
      %s173 = sphi 0, %s159
      %s177 = sphi 0, %s177
      %s179 = sphi 0, %s177
      %s180 = sphi 0, %s179
      %s194 = sphi 0, %s180
      %s198 = sphi 0, %s198
      %s200 = sphi 0, %s198
      %s201 = sphi 0, %s200
      %s215 = sphi 0, %s201
      %s219 = sphi 0, %s219
      %s221 = sphi 0, %s219
      %s222 = sphi 0, %s221
      %s236 = sphi 0, %s222
      %s240 = sphi 0, %s240
      %s242 = sphi 0, %s240
      %s243 = sphi 0, %s242
      %s257 = sphi 0, %s243
      %s261 = sphi 0, %s261
      %s263 = sphi 0, %s261
      %s264 = sphi 0, %s263
      %s278 = sphi 0, %s264
      %s282 = sphi 0, %s282
      %s284 = sphi 0, %s282
      %s285 = sphi 0, %s284
      %s299 = sphi 0, %s285
      %s305 = sphi 0, %s307
      %s308 = sphi 0, %s305
      %s309 = sphi 0, %s308
      %s325 = sphi 0, %s309
      %s331 = sphi 0, %s333
      %s334 = sphi 0, %s331
      %s335 = sphi 0, %s334
      %s351 = sphi 0, %s335
    $region4: #{tpu_custom_call.1} parent=1 // loop_header_branch
      %26 = sbr.rel (%p24) target = $region8
    $region5: #{tpu_custom_call.1} parent=1 // loop_body
      %s28 = ssub.s32 %s23, 1
      %s29 = ssub.s32 %s23, 2
      %s30 = sadd.s32 %s23, 1
      %s31 = ssub.s32 %s23, %s30
      %p32 = scmp.eq.s32.totalorder %s31, 0
      %s34 = sadd.s32 %s33, 1
      %s35 = scalar_select %p32, %s33, %s34
      %p38 = pneg %p32
      %p39 = scmp.eq.s32.totalorder %s23, 1
      %p40 = por %p38, %p39
      %p41 = scmp.ne.s32.totalorder %s33, %s36
      %p42 = scmp.eq.s32.totalorder %s23, 0
      %p43 = por %p41, %p42
      %p44 = scmp.ne.s32.totalorder %s33, %s36
      %p45 = scmp.eq.s32.totalorder %s28, 1
      %p46 = por %p44, %p45
      %p47 = scmp.ne.s32.totalorder %s36, %s37
      %p48 = scmp.eq.s32.totalorder %s28, 0
      %p49 = por %p47, %p48
      %p50 = scmp.ne.s32.totalorder %s36, %s37
      %p51 = scmp.eq.s32.totalorder %s29, 1
      %p52 = por %p50, %p51
      %p54 = scmp.ne.s32.totalorder %s37, %s53
      %p55 = scmp.eq.s32.totalorder %s29, 0
      %p56 = por %p54, %p55
      %s57 = ssub.s32 %s23, %s30
      %p58 = scmp.eq.s32.totalorder %s57, 0
      %s60 = sadd.s32 %s59, 1
      %s61 = scalar_select %p58, %s59, %s60
      %p64 = pneg %p58
      %p65 = scmp.eq.s32.totalorder %s23, 1
      %p66 = por %p64, %p65
      %p67 = scmp.ne.s32.totalorder %s59, %s62
      %p68 = scmp.eq.s32.totalorder %s23, 0
      %p69 = por %p67, %p68
      %p70 = scmp.ne.s32.totalorder %s59, %s62
      %p71 = scmp.eq.s32.totalorder %s28, 1
      %p72 = por %p70, %p71
      %p73 = scmp.ne.s32.totalorder %s62, %s63
      %p74 = scmp.eq.s32.totalorder %s28, 0
      %p75 = por %p73, %p74
      %p76 = scmp.ne.s32.totalorder %s62, %s63
      %p77 = scmp.eq.s32.totalorder %s29, 1
      %p78 = por %p76, %p77
      %p80 = scmp.ne.s32.totalorder %s63, %s79
      %p81 = scmp.eq.s32.totalorder %s29, 0
      %p82 = por %p80, %p81
      %s83 = ssub.s32 %s23, %s30
      %p84 = scmp.eq.s32.totalorder %s83, 0
      %s86 = sadd.s32 %s85, 1
      %s87 = scalar_select %p84, %s85, %s86
      %p90 = pneg %p84
      %p91 = scmp.eq.s32.totalorder %s23, 1
      %p92 = por %p90, %p91
      %p93 = scmp.ne.s32.totalorder %s85, %s88
      %p94 = scmp.eq.s32.totalorder %s23, 0
      %p95 = por %p93, %p94
      %p96 = scmp.ne.s32.totalorder %s85, %s88
      %p97 = scmp.eq.s32.totalorder %s28, 1
      %p98 = por %p96, %p97
      %p99 = scmp.ne.s32.totalorder %s88, %s89
      %p100 = scmp.eq.s32.totalorder %s28, 0
      %p101 = por %p99, %p100
      %p102 = scmp.ne.s32.totalorder %s88, %s89
      %p103 = scmp.eq.s32.totalorder %s29, 1
      %p104 = por %p102, %p103
      %p106 = scmp.ne.s32.totalorder %s89, %s105
      %p107 = scmp.eq.s32.totalorder %s29, 0
      %p108 = por %p106, %p107
      %s109 = ssub.s32 %s23, %s30
      %p110 = scmp.eq.s32.totalorder %s109, 0
      %s112 = sadd.s32 %s111, 1
      %s113 = scalar_select %p110, %s111, %s112
      %p116 = pneg %p110
      %p117 = scmp.eq.s32.totalorder %s23, 1
      %p118 = por %p116, %p117
      %p119 = scmp.ne.s32.totalorder %s111, %s114
      %p120 = scmp.eq.s32.totalorder %s23, 0
      %p121 = por %p119, %p120
      %p122 = scmp.ne.s32.totalorder %s111, %s114
      %p123 = scmp.eq.s32.totalorder %s28, 1
      %p124 = por %p122, %p123
      %p125 = scmp.ne.s32.totalorder %s114, %s115
      %p126 = scmp.eq.s32.totalorder %s28, 0
      %p127 = por %p125, %p126
      %p128 = scmp.ne.s32.totalorder %s114, %s115
      %p129 = scmp.eq.s32.totalorder %s29, 1
      %p130 = por %p128, %p129
      %p132 = scmp.ne.s32.totalorder %s115, %s131
      %p133 = scmp.eq.s32.totalorder %s29, 0
      %p134 = por %p132, %p133
      %s136 = sadd.s32 %s135, 1
      %p139 = scmp.eq.s32.totalorder %s23, 1
      %p140 = scmp.ne.s32.totalorder %s135, %s137
      %p141 = scmp.eq.s32.totalorder %s23, 0
      %p142 = por %p140, %p141
      %p143 = scmp.ne.s32.totalorder %s135, %s137
      %p144 = scmp.eq.s32.totalorder %s28, 1
      %p145 = por %p143, %p144
      %p146 = scmp.ne.s32.totalorder %s137, %s138
      %p147 = scmp.eq.s32.totalorder %s28, 0
      %p148 = por %p146, %p147
      %p149 = scmp.ne.s32.totalorder %s137, %s138
      %p150 = scmp.eq.s32.totalorder %s29, 1
      %p151 = por %p149, %p150
      %p153 = scmp.ne.s32.totalorder %s138, %s152
      %p154 = scmp.eq.s32.totalorder %s29, 0
      %p155 = por %p153, %p154
      %s157 = sadd.s32 %s156, 1
      %p160 = scmp.eq.s32.totalorder %s23, 1
      %p161 = scmp.ne.s32.totalorder %s156, %s158
      %p162 = scmp.eq.s32.totalorder %s23, 0
      %p163 = por %p161, %p162
      %p164 = scmp.ne.s32.totalorder %s156, %s158
      %p165 = scmp.eq.s32.totalorder %s28, 1
      %p166 = por %p164, %p165
      %p167 = scmp.ne.s32.totalorder %s158, %s159
      %p168 = scmp.eq.s32.totalorder %s28, 0
      %p169 = por %p167, %p168
      %p170 = scmp.ne.s32.totalorder %s158, %s159
      %p171 = scmp.eq.s32.totalorder %s29, 1
      %p172 = por %p170, %p171
      %p174 = scmp.ne.s32.totalorder %s159, %s173
      %p175 = scmp.eq.s32.totalorder %s29, 0
      %p176 = por %p174, %p175
      %s178 = sadd.s32 %s177, 1
      %p181 = scmp.eq.s32.totalorder %s23, 1
      %p182 = scmp.ne.s32.totalorder %s177, %s179
      %p183 = scmp.eq.s32.totalorder %s23, 0
      %p184 = por %p182, %p183
      %p185 = scmp.ne.s32.totalorder %s177, %s179
      %p186 = scmp.eq.s32.totalorder %s28, 1
      %p187 = por %p185, %p186
      %p188 = scmp.ne.s32.totalorder %s179, %s180
      %p189 = scmp.eq.s32.totalorder %s28, 0
      %p190 = por %p188, %p189
      %p191 = scmp.ne.s32.totalorder %s179, %s180
      %p192 = scmp.eq.s32.totalorder %s29, 1
      %p193 = por %p191, %p192
      %p195 = scmp.ne.s32.totalorder %s180, %s194
      %p196 = scmp.eq.s32.totalorder %s29, 0
      %p197 = por %p195, %p196
      %s199 = sadd.s32 %s198, 1
      %p202 = scmp.eq.s32.totalorder %s23, 1
      %p203 = scmp.ne.s32.totalorder %s198, %s200
      %p204 = scmp.eq.s32.totalorder %s23, 0
      %p205 = por %p203, %p204
      %p206 = scmp.ne.s32.totalorder %s198, %s200
      %p207 = scmp.eq.s32.totalorder %s28, 1
      %p208 = por %p206, %p207
      %p209 = scmp.ne.s32.totalorder %s200, %s201
      %p210 = scmp.eq.s32.totalorder %s28, 0
      %p211 = por %p209, %p210
      %p212 = scmp.ne.s32.totalorder %s200, %s201
      %p213 = scmp.eq.s32.totalorder %s29, 1
      %p214 = por %p212, %p213
      %p216 = scmp.ne.s32.totalorder %s201, %s215
      %p217 = scmp.eq.s32.totalorder %s29, 0
      %p218 = por %p216, %p217
      %s220 = sadd.s32 %s219, 1
      %p223 = scmp.eq.s32.totalorder %s23, 1
      %p224 = scmp.ne.s32.totalorder %s219, %s221
      %p225 = scmp.eq.s32.totalorder %s23, 0
      %p226 = por %p224, %p225
      %p227 = scmp.ne.s32.totalorder %s219, %s221
      %p228 = scmp.eq.s32.totalorder %s28, 1
      %p229 = por %p227, %p228
      %p230 = scmp.ne.s32.totalorder %s221, %s222
      %p231 = scmp.eq.s32.totalorder %s28, 0
      %p232 = por %p230, %p231
      %p233 = scmp.ne.s32.totalorder %s221, %s222
      %p234 = scmp.eq.s32.totalorder %s29, 1
      %p235 = por %p233, %p234
      %p237 = scmp.ne.s32.totalorder %s222, %s236
      %p238 = scmp.eq.s32.totalorder %s29, 0
      %p239 = por %p237, %p238
      %s241 = sadd.s32 %s240, 1
      %p244 = scmp.eq.s32.totalorder %s23, 1
      %p245 = scmp.ne.s32.totalorder %s240, %s242
      %p246 = scmp.eq.s32.totalorder %s23, 0
      %p247 = por %p245, %p246
      %p248 = scmp.ne.s32.totalorder %s240, %s242
      %p249 = scmp.eq.s32.totalorder %s28, 1
      %p250 = por %p248, %p249
      %p251 = scmp.ne.s32.totalorder %s242, %s243
      %p252 = scmp.eq.s32.totalorder %s28, 0
      %p253 = por %p251, %p252
      %p254 = scmp.ne.s32.totalorder %s242, %s243
      %p255 = scmp.eq.s32.totalorder %s29, 1
      %p256 = por %p254, %p255
      %p258 = scmp.ne.s32.totalorder %s243, %s257
      %p259 = scmp.eq.s32.totalorder %s29, 0
      %p260 = por %p258, %p259
      %s262 = sadd.s32 %s261, 1
      %p265 = scmp.eq.s32.totalorder %s23, 1
      %p266 = scmp.ne.s32.totalorder %s261, %s263
      %p267 = scmp.eq.s32.totalorder %s23, 0
      %p268 = por %p266, %p267
      %p269 = scmp.ne.s32.totalorder %s261, %s263
      %p270 = scmp.eq.s32.totalorder %s28, 1
      %p271 = por %p269, %p270
      %p272 = scmp.ne.s32.totalorder %s263, %s264
      %p273 = scmp.eq.s32.totalorder %s28, 0
      %p274 = por %p272, %p273
      %p275 = scmp.ne.s32.totalorder %s263, %s264
      %p276 = scmp.eq.s32.totalorder %s29, 1
      %p277 = por %p275, %p276
      %p279 = scmp.ne.s32.totalorder %s264, %s278
      %p280 = scmp.eq.s32.totalorder %s29, 0
      %p281 = por %p279, %p280
      %s283 = sadd.s32 %s282, 1
      %p286 = scmp.eq.s32.totalorder %s23, 1
      %p287 = scmp.ne.s32.totalorder %s282, %s284
      %p288 = scmp.eq.s32.totalorder %s23, 0
      %p289 = por %p287, %p288
      %p290 = scmp.ne.s32.totalorder %s282, %s284
      %p291 = scmp.eq.s32.totalorder %s28, 1
      %p292 = por %p290, %p291
      %p293 = scmp.ne.s32.totalorder %s284, %s285
      %p294 = scmp.eq.s32.totalorder %s28, 0
      %p295 = por %p293, %p294
      %p296 = scmp.ne.s32.totalorder %s284, %s285
      %p297 = scmp.eq.s32.totalorder %s29, 1
      %p298 = por %p296, %p297
      %p300 = scmp.ne.s32.totalorder %s285, %s299
      %p301 = scmp.eq.s32.totalorder %s29, 0
      %p302 = por %p300, %p301
      %s303 = ssub.s32 %s23, %s30
      %p304 = scmp.eq.s32.totalorder %s303, 0
      %s306 = sadd.s32 %s305, 1
      %s307 = scalar_select %p304, %s305, %s306
      %p310 = pneg %p304
      %p311 = scmp.eq.s32.totalorder %s23, 1
      %p312 = por %p310, %p311
      %p313 = scmp.ne.s32.totalorder %s305, %s308
      %p314 = scmp.eq.s32.totalorder %s23, 0
      %p315 = por %p313, %p314
      %p316 = scmp.ne.s32.totalorder %s305, %s308
      %p317 = scmp.eq.s32.totalorder %s28, 1
      %p318 = por %p316, %p317
      %p319 = scmp.ne.s32.totalorder %s308, %s309
      %p320 = scmp.eq.s32.totalorder %s28, 0
      %p321 = por %p319, %p320
      %p322 = scmp.ne.s32.totalorder %s308, %s309
      %p323 = scmp.eq.s32.totalorder %s29, 1
      %p324 = por %p322, %p323
      %p326 = scmp.ne.s32.totalorder %s309, %s325
      %p327 = scmp.eq.s32.totalorder %s29, 0
      %p328 = por %p326, %p327
      %s329 = ssub.s32 %s23, %s30
      %p330 = scmp.eq.s32.totalorder %s329, 0
      %s332 = sadd.s32 %s331, 1
      %s333 = scalar_select %p330, %s331, %s332
      %p336 = pneg %p330
      %p337 = scmp.eq.s32.totalorder %s23, 1
      %p338 = por %p336, %p337
      %p339 = scmp.ne.s32.totalorder %s331, %s334
      %p340 = scmp.eq.s32.totalorder %s23, 0
      %p341 = por %p339, %p340
      %p342 = scmp.ne.s32.totalorder %s331, %s334
      %p343 = scmp.eq.s32.totalorder %s28, 1
      %p344 = por %p342, %p343
      %p345 = scmp.ne.s32.totalorder %s334, %s335
      %p346 = scmp.eq.s32.totalorder %s28, 0
      %p347 = por %p345, %p346
      %p348 = scmp.ne.s32.totalorder %s334, %s335
      %p349 = scmp.eq.s32.totalorder %s29, 1
      %p350 = por %p348, %p349
      %p352 = scmp.ne.s32.totalorder %s335, %s351
      %p353 = scmp.eq.s32.totalorder %s29, 0
      %p354 = por %p352, %p353
      %p355 = scmp.le.s32.totalorder 1, %s23
      %p356 = scmp.lt.s32.totalorder %s23, 3
      %p357 = pnand %p355, %p356
      %p358 = pneg %p357
      // Predicated region
      $region9: #{tpu_custom_call.1} parent=5 // pred_check
        _
      $region10: #{tpu_custom_call.1} parent=5 // pred_check_branch
        %360 = sbr.rel (%p357) target = $region12
      $region11: #{tpu_custom_call.1} parent=5 // pred_region
        %s361 = ssub.s32 %s23, 1
        // Predicated region
        $region13: #{tpu_custom_call.1} parent=11 // pred_check
          %p362 = pneg %p148
        $region14: #{tpu_custom_call.1} parent=11 // pred_check_branch
          %364 = sbr.rel (%p362) target = $region16
        $region15: #{tpu_custom_call.1} parent=11 // pred_region
          _
        $region16: #{tpu_custom_call.1} parent=11 // pred_fallthru
          _
        // Predicated region
        $region17: #{tpu_custom_call.1} parent=11 // pred_check
          %p365 = pneg %p169
        $region18: #{tpu_custom_call.1} parent=11 // pred_check_branch
          %367 = sbr.rel (%p365) target = $region20
        $region19: #{tpu_custom_call.1} parent=11 // pred_region
          _
        $region20: #{tpu_custom_call.1} parent=11 // pred_fallthru
          _
        // Predicated region
        $region21: #{tpu_custom_call.1} parent=11 // pred_check
          %p368 = pneg %p190
        $region22: #{tpu_custom_call.1} parent=11 // pred_check_branch
          %370 = sbr.rel (%p368) target = $region24
        $region23: #{tpu_custom_call.1} parent=11 // pred_region
          _
        $region24: #{tpu_custom_call.1} parent=11 // pred_fallthru
          _
        // Predicated region
        $region25: #{tpu_custom_call.1} parent=11 // pred_check
          %p371 = pneg %p211
        $region26: #{tpu_custom_call.1} parent=11 // pred_check_branch
          %373 = sbr.rel (%p371) target = $region28
        $region27: #{tpu_custom_call.1} parent=11 // pred_region
          _
        $region28: #{tpu_custom_call.1} parent=11 // pred_fallthru
          _
        // Predicated region
        $region29: #{tpu_custom_call.1} parent=11 // pred_check
          %p374 = pneg %p232
        $region30: #{tpu_custom_call.1} parent=11 // pred_check_branch
          %376 = sbr.rel (%p374) target = $region32
        $region31: #{tpu_custom_call.1} parent=11 // pred_region
          _
        $region32: #{tpu_custom_call.1} parent=11 // pred_fallthru
          _
        // Predicated region
        $region33: #{tpu_custom_call.1} parent=11 // pred_check
          %p377 = pneg %p253
        $region34: #{tpu_custom_call.1} parent=11 // pred_check_branch
          %379 = sbr.rel (%p377) target = $region36
        $region35: #{tpu_custom_call.1} parent=11 // pred_region
          _
        $region36: #{tpu_custom_call.1} parent=11 // pred_fallthru
          _
        // Predicated region
        $region37: #{tpu_custom_call.1} parent=11 // pred_check
          %p380 = pneg %p274
        $region38: #{tpu_custom_call.1} parent=11 // pred_check_branch
          %382 = sbr.rel (%p380) target = $region40
        $region39: #{tpu_custom_call.1} parent=11 // pred_region
          _
        $region40: #{tpu_custom_call.1} parent=11 // pred_fallthru
          _
        // Predicated region
        $region41: #{tpu_custom_call.1} parent=11 // pred_check
          %p383 = pneg %p295
        $region42: #{tpu_custom_call.1} parent=11 // pred_check_branch
          %385 = sbr.rel (%p383) target = $region44
        $region43: #{tpu_custom_call.1} parent=11 // pred_region
          _
        $region44: #{tpu_custom_call.1} parent=11 // pred_fallthru
          _
      $region12: #{tpu_custom_call.1} parent=5 // pred_fallthru
        _
      %p386 = scmp.lt.s32.totalorder %s23, 2
      // Predicated region
      $region45: #{tpu_custom_call.1} parent=5 // pred_check
        %p387 = pneg %p386
      $region46: #{tpu_custom_call.1} parent=5 // pred_check_branch
        %389 = sbr.rel (%p387) target = $region48
      $region47: #{tpu_custom_call.1} parent=5 // pred_region
        // Predicated region
        $region49: #{tpu_custom_call.1} parent=47 // pred_check
          %p390 = pneg %p43
        $region50: #{tpu_custom_call.1} parent=47 // pred_check_branch
          %392 = sbr.rel (%p390) target = $region52
        $region51: #{tpu_custom_call.1} parent=47 // pred_region
          %s393 = smul.u32 2, %s23
          %p394 = scmp.lt.s32.totalorder %s393, 3
          %s395 = scalar_select %p394, %s393, 3
          %s396 = smul.addr %s395, 8
          %s397 = smul.addr %s396, 8
          %s398 = scalar_lea.vmem %s0, %s397
          %s399 = smul.u32 2, %s23
        $region52: #{tpu_custom_call.1} parent=47 // pred_fallthru
          _
        // Predicated region
        $region53: #{tpu_custom_call.1} parent=47 // pred_check
          %p400 = pneg %p69
        $region54: #{tpu_custom_call.1} parent=47 // pred_check_branch
          %402 = sbr.rel (%p400) target = $region56
        $region55: #{tpu_custom_call.1} parent=47 // pred_region
          %s403 = smul.u32 2, %s23
          %p404 = scmp.lt.s32.totalorder %s403, 3
          %s405 = scalar_select %p404, %s403, 3
          %s406 = smul.addr %s405, 8
          %s407 = smul.addr %s406, 8
          %s408 = scalar_lea.vmem %s1, %s407
          %s409 = smul.u32 2, %s23
        $region56: #{tpu_custom_call.1} parent=47 // pred_fallthru
          _
        // Predicated region
        $region57: #{tpu_custom_call.1} parent=47 // pred_check
          %p410 = pneg %p95
        $region58: #{tpu_custom_call.1} parent=47 // pred_check_branch
          %412 = sbr.rel (%p410) target = $region60
        $region59: #{tpu_custom_call.1} parent=47 // pred_region
          %s413 = smul.u32 2, %s23
          %p414 = scmp.lt.s32.totalorder %s413, 3
          %s415 = scalar_select %p414, %s413, 3
          %s416 = scalar_lea.vmem %s2, %s415
          %s417 = smul.u32 2, %s23
        $region60: #{tpu_custom_call.1} parent=47 // pred_fallthru
          _
        // Predicated region
        $region61: #{tpu_custom_call.1} parent=47 // pred_check
          %p418 = pneg %p121
        $region62: #{tpu_custom_call.1} parent=47 // pred_check_branch
          %420 = sbr.rel (%p418) target = $region64
        $region63: #{tpu_custom_call.1} parent=47 // pred_region
          %s421 = smul.u32 2, %s23
          %p422 = scmp.lt.s32.totalorder %s421, 3
          %s423 = scalar_select %p422, %s421, 3
          %s424 = smul.addr %s423, 8
          %s425 = smul.addr %s424, 8
          %s426 = scalar_lea.vmem %s3, %s425
          %s427 = smul.u32 2, %s23
        $region64: #{tpu_custom_call.1} parent=47 // pred_fallthru
          _
      $region48: #{tpu_custom_call.1} parent=5 // pred_fallthru
        _
      %p428 = scmp.le.s32.totalorder 1, %s23
      %p429 = scmp.lt.s32.totalorder %s23, 3
      %p430 = pnand %p428, %p429
      %p431 = pneg %p430
      // Predicated region
      $region65: #{tpu_custom_call.1} parent=5 // pred_check
        _
      $region66: #{tpu_custom_call.1} parent=5 // pred_check_branch
        %433 = sbr.rel (%p430) target = $region68
      $region67: #{tpu_custom_call.1} parent=5 // pred_region
        %s434 = ssub.s32 %s23, 1
        %s435 = smul.u32 2, %s28
        %p436 = scmp.lt.s32.totalorder %s435, 3
        %s437 = scalar_select %p436, %s435, 3
        %s438 = smul.addr %s437, 8
        %s439 = smul.addr %s438, 8
        %s440 = scalar_lea.vmem %s0, %s439
        %p441 = pneg %p49
        %p442 = pneg %p46
        %s443 = smul.u32 2, %s28
        %p444 = scmp.lt.s32.totalorder %s443, 3
        %s445 = scalar_select %p444, %s443, 3
        %s446 = smul.addr %s445, 8
        %s447 = smul.addr %s446, 8
        %s448 = scalar_lea.vmem %s1, %s447
        %p449 = pneg %p75
        %p450 = pneg %p72
        %s451 = smul.u32 2, %s28
        %p452 = scmp.lt.s32.totalorder %s451, 3
        %s453 = scalar_select %p452, %s451, 3
        %s454 = scalar_lea.vmem %s2, %s453
        %p455 = pneg %p101
        %p456 = pneg %p98
        %s457 = smul.u32 2, %s28
        %p458 = scmp.lt.s32.totalorder %s457, 3
        %s459 = scalar_select %p458, %s457, 3
        %s460 = smul.addr %s459, 8
        %s461 = smul.addr %s460, 8
        %s462 = scalar_lea.vmem %s3, %s461
        %p463 = pneg %p127
        %p464 = pneg %p124
        %p465 = pneg %p148
        %p466 = pneg %p145
        %p467 = pneg %p169
        %p468 = pneg %p166
        %p469 = pneg %p190
        %p470 = pneg %p187
        %p471 = pneg %p211
        %p472 = pneg %p208
        %p473 = pneg %p232
        %p474 = pneg %p229
        %p475 = pneg %p253
        %p476 = pneg %p250
        %p477 = pneg %p274
        %p478 = pneg %p271
        %p479 = pneg %p295
        %p480 = pneg %p292
        %p481 = pneg %p321
        %p482 = pneg %p318
        %s483 = smul.u32 2, %s28
        %p484 = scmp.lt.s32.totalorder %s483, 3
        %s485 = scalar_select %p484, %s483, 3
        %s486 = smul.addr %s485, 8
        %s487 = smul.addr %s486, 8
        %s488 = scalar_lea.vmem %s12, %s487
        %p489 = pneg %p347
        %p490 = pneg %p344
        %s491 = sand.u32 %s334, 1
        %s492 = scalar_lea.sflag [#allocation3], %s491
        %s493 = sand.u32 %s334, 1
        %s494 = smul.addr %s493, 256
        %s495 = scalar_lea.vmem [#allocation2], %s494
        %s496 = smul.u32 2, %s28
        %p497 = scmp.lt.s32.totalorder %s496, 3
        %s498 = scalar_select %p497, %s496, 3
        %s499 = smul.addr %s498, 8
        %s500 = smul.addr %s499, 8
        %s501 = scalar_lea.vmem %s0, %s500
        %s502 = smul.u32 2, %s28
        %s503 = smul.u32 2, %s28
        %p504 = scmp.lt.s32.totalorder %s503, 3
        %s505 = scalar_select %p504, %s503, 3
        %s506 = smul.addr %s505, 8
        %s507 = smul.addr %s506, 8
        %s508 = scalar_lea.vmem %s1, %s507
        %s509 = smul.u32 2, %s28
        %s510 = smul.u32 2, %s28
        %p511 = scmp.lt.s32.totalorder %s510, 3
        %s512 = scalar_select %p511, %s510, 3
        %s513 = scalar_lea.vmem %s2, %s512
        %s514 = smul.u32 2, %s28
        %s515 = smul.u32 2, %s28
        %p516 = scmp.lt.s32.totalorder %s515, 3
        %s517 = scalar_select %p516, %s515, 3
        %s518 = smul.addr %s517, 8
        %s519 = smul.addr %s518, 8
        %s520 = scalar_lea.vmem %s3, %s519
        %s521 = smul.u32 2, %s28
        %s522 = smul.u32 2, %s28
        %p523 = scmp.lt.s32.totalorder %s522, 3
        %s524 = scalar_select %p523, %s522, 3
        %s525 = smul.addr %s524, 8
        %s526 = smul.addr %s525, 8
        %s527 = scalar_lea.vmem %s12, %s526
        %s528 = smul.u32 2, %s28
        %s529 = smul.u32 2, %s28
        %v530 = vld [vmem:[%s501] sm:$0xff]
        %v531 = vld [vmem:[%s501 + $0x8] sm:$0xff]
        %v532 = vld [vmem:[%s501 + $0x10] sm:$0xff]
        %v533 = vld [vmem:[%s501 + $0x18] sm:$0xff]
        %v534 = vld [vmem:[%s501 + $0x20] sm:$0xff]
        %v535 = vld [vmem:[%s501 + $0x28] sm:$0xff]
        %v536 = vld [vmem:[%s501 + $0x30] sm:$0xff]
        %v537 = vld [vmem:[%s501 + $0x38] sm:$0xff]
        %v538 = vld [vmem:[%s501 + $0x40] sm:$0xff]
        %v539 = vld [vmem:[%s501 + $0x48] sm:$0xff]
        %v540 = vld [vmem:[%s501 + $0x50] sm:$0xff]
        %v541 = vld [vmem:[%s501 + $0x58] sm:$0xff]
        %v542 = vld [vmem:[%s501 + $0x60] sm:$0xff]
        %v543 = vld [vmem:[%s501 + $0x68] sm:$0xff]
        %v544 = vld [vmem:[%s501 + $0x70] sm:$0xff]
        %v545 = vld [vmem:[%s501 + $0x78] sm:$0xff]
        %v546 = vld [vmem:[%s508] sm:$0xff]
        %v547 = vld [vmem:[%s508 + $0x8] sm:$0xff]
        %v548 = vld [vmem:[%s508 + $0x10] sm:$0xff]
        %v549 = vld [vmem:[%s508 + $0x18] sm:$0xff]
        %v550 = vld [vmem:[%s508 + $0x20] sm:$0xff]
        %v551 = vld [vmem:[%s508 + $0x28] sm:$0xff]
        %v552 = vld [vmem:[%s508 + $0x30] sm:$0xff]
        %v553 = vld [vmem:[%s508 + $0x38] sm:$0xff]
        %v554 = vld [vmem:[%s508 + $0x40] sm:$0xff]
        %v555 = vld [vmem:[%s508 + $0x48] sm:$0xff]
        %v556 = vld [vmem:[%s508 + $0x50] sm:$0xff]
        %v557 = vld [vmem:[%s508 + $0x58] sm:$0xff]
        %v558 = vld [vmem:[%s508 + $0x60] sm:$0xff]
        %v559 = vld [vmem:[%s508 + $0x68] sm:$0xff]
        %v560 = vld [vmem:[%s508 + $0x70] sm:$0xff]
        %v561 = vld [vmem:[%s508 + $0x78] sm:$0xff]
        %v562 = vld [vmem:[%s6] sm:$0xff]
        %v563 = vld [vmem:[%s6 + $0x8] sm:$0xff]
        %v564 = vld [vmem:[%s6 + $0x10] sm:$0xff]
        %v565 = vld [vmem:[%s6 + $0x18] sm:$0xff]
        %v566 = vld [vmem:[%s7] sm:$0x1]
        %v568 = vlaneseq
        %v569 = vshrl.u32 %v568, 7
        %v570 = vsub.s32 0, %v569
        %v571 = vrot.slane %v566, %v570
        %vm573 = vcmask 261120
        %v575 = vsel %vm573, %v530, 0
        %v578 = vsel %vm573, %v531, 0
        %v581 = vsel %vm573, %v532, 0
        %v584 = vsel %vm573, %v533, 0
        %v587 = vsel %vm573, %v534, 0
        %v590 = vsel %vm573, %v535, 0
        %v593 = vsel %vm573, %v536, 0
        %v596 = vsel %vm573, %v537, 0
        %v599 = vsel %vm573, %v538, 0
        %v602 = vsel %vm573, %v539, 0
        %v605 = vsel %vm573, %v540, 0
        %v608 = vsel %vm573, %v541, 0
        %v611 = vsel %vm573, %v542, 0
        %v614 = vsel %vm573, %v543, 0
        %v617 = vsel %vm573, %v544, 0
        %v620 = vsel %vm573, %v545, 0
        %622 = vmatprep.subr.mxu0 0.0
        %623 = vmatpush1.msra.mxu0 %v562
        %624 = vmatprep.subr.mxu0 0.0
        %625 = vmatpush1.msra.mxu0 %v563
        %626 = vmatprep.subr.mxu0 0.0
        %627 = vmatpush1.msra.mxu0 %v564
        %628 = vmatprep.subr.mxu0 0.0
        %629 = vmatpush1.msra.mxu0 %v565
        %630 = vmatprep.subr.mxu0 0.0
        %631 = vmatpush1.msra.mxu0 0.0
        %632 = vmatprep.subr.mxu0 0.0
        %633 = vmatpush1.msra.mxu0 0.0
        %634 = vmatprep.subr.mxu0 0.0
        %635 = vmatpush1.msra.mxu0 0.0
        %636 = vmatprep.subr.mxu0 0.0
        %637 = vmatpush1.msra.mxu0 0.0
        %638 = vmatprep.subr.mxu0 0.0
        %639 = vmatpush1.msra.mxu0 0.0
        %640 = vmatprep.subr.mxu0 0.0
        %641 = vmatpush1.msra.mxu0 0.0
        %642 = vmatprep.subr.mxu0 0.0
        %643 = vmatpush1.msra.mxu0 0.0
        %644 = vmatprep.subr.mxu0 0.0
        %645 = vmatpush1.msra.mxu0 0.0
        %646 = vmatprep.subr.mxu0 0.0
        %647 = vmatpush1.msra.mxu0 0.0
        %648 = vmatprep.subr.mxu0 0.0
        %649 = vmatpush1.msra.mxu0 0.0
        %650 = vmatprep.subr.mxu0 0.0
        %651 = vmatpush1.msra.mxu0 0.0
        %652 = vmatprep.subr.mxu0 0.0
        %653 = vmatpush1.msra.mxu0 0.0
        %654 = vmatprep.subr.mxu0 0.0
        %655 = vmatpush1.msra.mxu0 0.0
        %656 = vmatprep.subr.mxu0 0.0
        %657 = vmatpush1.msra.mxu0 0.0
        %658 = vmatprep.subr.mxu0 0.0
        %659 = vmatpush1.msra.mxu0 0.0
        %660 = vmatprep.subr.mxu0 0.0
        %661 = vmatpush1.msra.mxu0 0.0
        %662 = vmatprep.subr.mxu0 0.0
        %663 = vmatpush1.msra.mxu0 0.0
        %664 = vmatprep.subr.mxu0 0.0
        %665 = vmatpush1.msra.mxu0 0.0
        %666 = vmatprep.subr.mxu0 0.0
        %667 = vmatpush1.msra.mxu0 0.0
        %668 = vmatprep.subr.mxu0 0.0
        %669 = vmatpush1.msra.mxu0 0.0
        %670 = vmatprep.subr.mxu0 0.0
        %671 = vmatpush1.msra.mxu0 0.0
        %672 = vmatprep.subr.mxu0 0.0
        %673 = vmatpush1.msra.mxu0 0.0
        %674 = vmatprep.subr.mxu0 0.0
        %675 = vmatpush1.msra.mxu0 0.0
        %676 = vmatprep.subr.mxu0 0.0
        %677 = vmatpush1.msra.mxu0 0.0
        %678 = vmatprep.subr.mxu0 0.0
        %679 = vmatpush1.msra.mxu0 0.0
        %680 = vmatprep.subr.mxu0 0.0
        %681 = vmatpush1.msra.mxu0 0.0
        %682 = vmatprep.subr.mxu0 0.0
        %683 = vmatpush1.msra.mxu0 0.0
        %684 = vmatprep.subr.mxu0 0.0
        %685 = vmatpush1.msra.mxu0 0.0
        %686 = vmatprep.mubr.f32.mxu0 0.0
        %687 = vmatmul.mubr.f32.gmra.mrb[0].mxu0 %v575
        %v688 = vpop.f32.mrb[0].mxu0
        %v689 = vadd.f32 %v571, %v688
        %v690 = vpop.f32.mrb[0].mxu0
        %691 = vmatprep.mubr.f32.mxu0 0.0
        %692 = vmatmul.mubr.f32.gmra.mrb[0].mxu0 %v578
        %v693 = vpop.f32.mrb[0].mxu0
        %v694 = vadd.f32 %v571, %v693
        %v695 = vpop.f32.mrb[0].mxu0
        %696 = vmatprep.mubr.f32.mxu0 0.0
        %697 = vmatmul.mubr.f32.gmra.mrb[0].mxu0 %v581
        %v698 = vpop.f32.mrb[0].mxu0
        %v699 = vadd.f32 %v571, %v698
        %v700 = vpop.f32.mrb[0].mxu0
        %701 = vmatprep.mubr.f32.mxu0 0.0
        %702 = vmatmul.mubr.f32.gmra.mrb[0].mxu0 %v584
        %v703 = vpop.f32.mrb[0].mxu0
        %v704 = vadd.f32 %v571, %v703
        %v705 = vpop.f32.mrb[0].mxu0
        %706 = vmatprep.mubr.f32.mxu0 0.0
        %707 = vmatmul.mubr.f32.gmra.mrb[0].mxu0 %v587
        %v708 = vpop.f32.mrb[0].mxu0
        %v709 = vadd.f32 %v571, %v708
        %v710 = vpop.f32.mrb[0].mxu0
        %711 = vmatprep.mubr.f32.mxu0 0.0
        %712 = vmatmul.mubr.f32.gmra.mrb[0].mxu0 %v590
        %v713 = vpop.f32.mrb[0].mxu0
        %v714 = vadd.f32 %v571, %v713
        %v715 = vpop.f32.mrb[0].mxu0
        %716 = vmatprep.mubr.f32.mxu0 0.0
        %717 = vmatmul.mubr.f32.gmra.mrb[0].mxu0 %v593
        %v718 = vpop.f32.mrb[0].mxu0
        %v719 = vadd.f32 %v571, %v718
        %v720 = vpop.f32.mrb[0].mxu0
        %721 = vmatprep.mubr.f32.mxu0 0.0
        %722 = vmatmul.mubr.f32.gmra.mrb[0].mxu0 %v596
        %v723 = vpop.f32.mrb[0].mxu0
        %v724 = vadd.f32 %v571, %v723
        %v725 = vpop.f32.mrb[0].mxu0
        %726 = vmatprep.mubr.f32.mxu0 0.0
        %727 = vmatmul.mubr.f32.gmra.mrb[0].mxu0 %v599
        %v728 = vpop.f32.mrb[0].mxu0
        %v729 = vadd.f32 %v571, %v728
        %v730 = vpop.f32.mrb[0].mxu0
        %731 = vmatprep.mubr.f32.mxu0 0.0
        %732 = vmatmul.mubr.f32.gmra.mrb[0].mxu0 %v602
        %v733 = vpop.f32.mrb[0].mxu0
        %v734 = vadd.f32 %v571, %v733
        %v735 = vpop.f32.mrb[0].mxu0
        %736 = vmatprep.mubr.f32.mxu0 0.0
        %737 = vmatmul.mubr.f32.gmra.mrb[0].mxu0 %v605
        %v738 = vpop.f32.mrb[0].mxu0
        %v739 = vadd.f32 %v571, %v738
        %v740 = vpop.f32.mrb[0].mxu0
        %741 = vmatprep.mubr.f32.mxu0 0.0
        %742 = vmatmul.mubr.f32.gmra.mrb[0].mxu0 %v608
        %v743 = vpop.f32.mrb[0].mxu0
        %v744 = vadd.f32 %v571, %v743
        %v745 = vpop.f32.mrb[0].mxu0
        %746 = vmatprep.mubr.f32.mxu0 0.0
        %747 = vmatmul.mubr.f32.gmra.mrb[0].mxu0 %v611
        %v748 = vpop.f32.mrb[0].mxu0
        %v749 = vadd.f32 %v571, %v748
        %v750 = vpop.f32.mrb[0].mxu0
        %751 = vmatprep.mubr.f32.mxu0 0.0
        %752 = vmatmul.mubr.f32.gmra.mrb[0].mxu0 %v614
        %v753 = vpop.f32.mrb[0].mxu0
        %v754 = vadd.f32 %v571, %v753
        %v755 = vpop.f32.mrb[0].mxu0
        %756 = vmatprep.mubr.f32.mxu0 0.0
        %757 = vmatmul.mubr.f32.gmra.mrb[0].mxu0 %v617
        %v758 = vpop.f32.mrb[0].mxu0
        %v759 = vadd.f32 %v571, %v758
        %v760 = vpop.f32.mrb[0].mxu0
        %761 = vmatprep.mubr.f32.mxu0 0.0
        %762 = vmatmul.mubr.f32.gmra.mrb[0].mxu0 %v620
        %v763 = vpop.f32.mrb[0].mxu0
        %v764 = vadd.f32 %v571, %v763
        %v765 = vpop.f32.mrb[0].mxu0
        %766 = vdwg.mxu0
        %v767 = vmul.f32 %v689, 0.35355338
        %v768 = vmul.f32 %v694, 0.35355338
        %v769 = vmul.f32 %v699, 0.35355338
        %v770 = vmul.f32 %v704, 0.35355338
        %v771 = vmul.f32 %v709, 0.35355338
        %v772 = vmul.f32 %v714, 0.35355338
        %v773 = vmul.f32 %v719, 0.35355338
        %v774 = vmul.f32 %v724, 0.35355338
        %v775 = vmul.f32 %v729, 0.35355338
        %v776 = vmul.f32 %v734, 0.35355338
        %v777 = vmul.f32 %v739, 0.35355338
        %v778 = vmul.f32 %v744, 0.35355338
        %v779 = vmul.f32 %v749, 0.35355338
        %v780 = vmul.f32 %v754, 0.35355338
        %v781 = vmul.f32 %v759, 0.35355338
        %v782 = vmul.f32 %v764, 0.35355338
        %v783 = vld [vmem:[%s8] sm:$0xff]
        %v784 = vld [vmem:[%s8 + $0x8] sm:$0xff]
        %v785 = vld [vmem:[%s8 + $0x10] sm:$0xff]
        %v786 = vld [vmem:[%s8 + $0x18] sm:$0xff]
        %v787 = vld [vmem:[%s9] sm:$0x1]
        %v789 = vlaneseq
        %v790 = vshrl.u32 %v789, 7
        %v791 = vsub.s32 0, %v790
        %v792 = vrot.slane %v787, %v791
        %v795 = vsel %vm573, %v546, 0
        %v798 = vsel %vm573, %v547, 0
        %v801 = vsel %vm573, %v548, 0
        %v804 = vsel %vm573, %v549, 0
        %v807 = vsel %vm573, %v550, 0
        %v810 = vsel %vm573, %v551, 0
        %v813 = vsel %vm573, %v552, 0
        %v816 = vsel %vm573, %v553, 0
        %v819 = vsel %vm573, %v554, 0
        %v822 = vsel %vm573, %v555, 0
        %v825 = vsel %vm573, %v556, 0
        %v828 = vsel %vm573, %v557, 0
        %v831 = vsel %vm573, %v558, 0
        %v834 = vsel %vm573, %v559, 0
        %v837 = vsel %vm573, %v560, 0
        %v840 = vsel %vm573, %v561, 0
        %842 = vmatprep.subr.mxu0 0.0
        %843 = vmatpush1.msra.mxu0 %v783
        %844 = vmatprep.subr.mxu0 0.0
        %845 = vmatpush1.msra.mxu0 %v784
        %846 = vmatprep.subr.mxu0 0.0
        %847 = vmatpush1.msra.mxu0 %v785
        %848 = vmatprep.subr.mxu0 0.0
        %849 = vmatpush1.msra.mxu0 %v786
        %850 = vmatprep.subr.mxu0 0.0
        %851 = vmatpush1.msra.mxu0 0.0
        %852 = vmatprep.subr.mxu0 0.0
        %853 = vmatpush1.msra.mxu0 0.0
        %854 = vmatprep.subr.mxu0 0.0
        %855 = vmatpush1.msra.mxu0 0.0
        %856 = vmatprep.subr.mxu0 0.0
        %857 = vmatpush1.msra.mxu0 0.0
        %858 = vmatprep.subr.mxu0 0.0
        %859 = vmatpush1.msra.mxu0 0.0
        %860 = vmatprep.subr.mxu0 0.0
        %861 = vmatpush1.msra.mxu0 0.0
        %862 = vmatprep.subr.mxu0 0.0
        %863 = vmatpush1.msra.mxu0 0.0
        %864 = vmatprep.subr.mxu0 0.0
        %865 = vmatpush1.msra.mxu0 0.0
        %866 = vmatprep.subr.mxu0 0.0
        %867 = vmatpush1.msra.mxu0 0.0
        %868 = vmatprep.subr.mxu0 0.0
        %869 = vmatpush1.msra.mxu0 0.0
        %870 = vmatprep.subr.mxu0 0.0
        %871 = vmatpush1.msra.mxu0 0.0
        %872 = vmatprep.subr.mxu0 0.0
        %873 = vmatpush1.msra.mxu0 0.0
        %874 = vmatprep.subr.mxu0 0.0
        %875 = vmatpush1.msra.mxu0 0.0
        %876 = vmatprep.subr.mxu0 0.0
        %877 = vmatpush1.msra.mxu0 0.0
        %878 = vmatprep.subr.mxu0 0.0
        %879 = vmatpush1.msra.mxu0 0.0
        %880 = vmatprep.subr.mxu0 0.0
        %881 = vmatpush1.msra.mxu0 0.0
        %882 = vmatprep.subr.mxu0 0.0
        %883 = vmatpush1.msra.mxu0 0.0
        %884 = vmatprep.subr.mxu0 0.0
        %885 = vmatpush1.msra.mxu0 0.0
        %886 = vmatprep.subr.mxu0 0.0
        %887 = vmatpush1.msra.mxu0 0.0
        %888 = vmatprep.subr.mxu0 0.0
        %889 = vmatpush1.msra.mxu0 0.0
        %890 = vmatprep.subr.mxu0 0.0
        %891 = vmatpush1.msra.mxu0 0.0
        %892 = vmatprep.subr.mxu0 0.0
        %893 = vmatpush1.msra.mxu0 0.0
        %894 = vmatprep.subr.mxu0 0.0
        %895 = vmatpush1.msra.mxu0 0.0
        %896 = vmatprep.subr.mxu0 0.0
        %897 = vmatpush1.msra.mxu0 0.0
        %898 = vmatprep.subr.mxu0 0.0
        %899 = vmatpush1.msra.mxu0 0.0
        %900 = vmatprep.subr.mxu0 0.0
        %901 = vmatpush1.msra.mxu0 0.0
        %902 = vmatprep.subr.mxu0 0.0
        %903 = vmatpush1.msra.mxu0 0.0
        %904 = vmatprep.subr.mxu0 0.0
        %905 = vmatpush1.msra.mxu0 0.0
        %906 = vmatprep.mubr.f32.mxu0 0.0
        %907 = vmatmul.mubr.f32.gmra.mrb[0].mxu0 %v795
        %v908 = vpop.f32.mrb[0].mxu0
        %v909 = vadd.f32 %v792, %v908
        %v910 = vpop.f32.mrb[0].mxu0
        %911 = vmatprep.mubr.f32.mxu0 0.0
        %912 = vmatmul.mubr.f32.gmra.mrb[0].mxu0 %v798
        %v913 = vpop.f32.mrb[0].mxu0
        %v914 = vadd.f32 %v792, %v913
        %v915 = vpop.f32.mrb[0].mxu0
        %916 = vmatprep.mubr.f32.mxu0 0.0
        %917 = vmatmul.mubr.f32.gmra.mrb[0].mxu0 %v801
        %v918 = vpop.f32.mrb[0].mxu0
        %v919 = vadd.f32 %v792, %v918
        %v920 = vpop.f32.mrb[0].mxu0
        %921 = vmatprep.mubr.f32.mxu0 0.0
        %922 = vmatmul.mubr.f32.gmra.mrb[0].mxu0 %v804
        %v923 = vpop.f32.mrb[0].mxu0
        %v924 = vadd.f32 %v792, %v923
        %v925 = vpop.f32.mrb[0].mxu0
        %926 = vmatprep.mubr.f32.mxu0 0.0
        %927 = vmatmul.mubr.f32.gmra.mrb[0].mxu0 %v807
        %v928 = vpop.f32.mrb[0].mxu0
        %v929 = vadd.f32 %v792, %v928
        %v930 = vpop.f32.mrb[0].mxu0
        %931 = vmatprep.mubr.f32.mxu0 0.0
        %932 = vmatmul.mubr.f32.gmra.mrb[0].mxu0 %v810
        %v933 = vpop.f32.mrb[0].mxu0
        %v934 = vadd.f32 %v792, %v933
        %v935 = vpop.f32.mrb[0].mxu0
        %936 = vmatprep.mubr.f32.mxu0 0.0
        %937 = vmatmul.mubr.f32.gmra.mrb[0].mxu0 %v813
        %v938 = vpop.f32.mrb[0].mxu0
        %v939 = vadd.f32 %v792, %v938
        %v940 = vpop.f32.mrb[0].mxu0
        %941 = vmatprep.mubr.f32.mxu0 0.0
        %942 = vmatmul.mubr.f32.gmra.mrb[0].mxu0 %v816
        %v943 = vpop.f32.mrb[0].mxu0
        %v944 = vadd.f32 %v792, %v943
        %v945 = vpop.f32.mrb[0].mxu0
        %946 = vmatprep.mubr.f32.mxu0 0.0
        %947 = vmatmul.mubr.f32.gmra.mrb[0].mxu0 %v819
        %v948 = vpop.f32.mrb[0].mxu0
        %v949 = vadd.f32 %v792, %v948
        %v950 = vpop.f32.mrb[0].mxu0
        %951 = vmatprep.mubr.f32.mxu0 0.0
        %952 = vmatmul.mubr.f32.gmra.mrb[0].mxu0 %v822
        %v953 = vpop.f32.mrb[0].mxu0
        %v954 = vadd.f32 %v792, %v953
        %v955 = vpop.f32.mrb[0].mxu0
        %956 = vmatprep.mubr.f32.mxu0 0.0
        %957 = vmatmul.mubr.f32.gmra.mrb[0].mxu0 %v825
        %v958 = vpop.f32.mrb[0].mxu0
        %v959 = vadd.f32 %v792, %v958
        %v960 = vpop.f32.mrb[0].mxu0
        %961 = vmatprep.mubr.f32.mxu0 0.0
        %962 = vmatmul.mubr.f32.gmra.mrb[0].mxu0 %v828
        %v963 = vpop.f32.mrb[0].mxu0
        %v964 = vadd.f32 %v792, %v963
        %v965 = vpop.f32.mrb[0].mxu0
        %966 = vmatprep.mubr.f32.mxu0 0.0
        %967 = vmatmul.mubr.f32.gmra.mrb[0].mxu0 %v831
        %v968 = vpop.f32.mrb[0].mxu0
        %v969 = vadd.f32 %v792, %v968
        %v970 = vpop.f32.mrb[0].mxu0
        %971 = vmatprep.mubr.f32.mxu0 0.0
        %972 = vmatmul.mubr.f32.gmra.mrb[0].mxu0 %v834
        %v973 = vpop.f32.mrb[0].mxu0
        %v974 = vadd.f32 %v792, %v973
        %v975 = vpop.f32.mrb[0].mxu0
        %976 = vmatprep.mubr.f32.mxu0 0.0
        %977 = vmatmul.mubr.f32.gmra.mrb[0].mxu0 %v837
        %v978 = vpop.f32.mrb[0].mxu0
        %v979 = vadd.f32 %v792, %v978
        %v980 = vpop.f32.mrb[0].mxu0
        %981 = vmatprep.mubr.f32.mxu0 0.0
        %982 = vmatmul.mubr.f32.gmra.mrb[0].mxu0 %v840
        %v983 = vpop.f32.mrb[0].mxu0
        %v984 = vadd.f32 %v792, %v983
        %v985 = vpop.f32.mrb[0].mxu0
        %986 = vdwg.mxu0
        %v987 = vld [vmem:[%s520] sm:$0xff]
        %v988 = vld [vmem:[%s520 + $0x8] sm:$0xff]
        %v989 = vld [vmem:[%s520 + $0x10] sm:$0xff]
        %v990 = vld [vmem:[%s520 + $0x18] sm:$0xff]
        %v991 = vld [vmem:[%s520 + $0x20] sm:$0xff]
        %v992 = vld [vmem:[%s520 + $0x28] sm:$0xff]
        %v993 = vld [vmem:[%s520 + $0x30] sm:$0xff]
        %v994 = vld [vmem:[%s520 + $0x38] sm:$0xff]
        %v995 = vld [vmem:[%s513] sm:$0x1]
        %997 = vset.pattern.permute.xlu0 0
        %998 = vperm.xlu0 %997, %v987
        %v999 = vpop.permute.xlu0 %998
        %1002 = vset.pattern.permute.xlu0 0
        %1003 = vperm.xlu0 %1002, %v988
        %v1004 = vpop.permute.xlu0 %1003
        %1007 = vset.pattern.permute.xlu0 0
        %1008 = vperm.xlu0 %1007, %v989
        %v1009 = vpop.permute.xlu0 %1008
        %1012 = vset.pattern.permute.xlu0 0
        %1013 = vperm.xlu0 %1012, %v990
        %v1014 = vpop.permute.xlu0 %1013
        %1017 = vset.pattern.permute.xlu0 0
        %1018 = vperm.xlu0 %1017, %v991
        %v1019 = vpop.permute.xlu0 %1018
        %1022 = vset.pattern.permute.xlu0 0
        %1023 = vperm.xlu0 %1022, %v992
        %v1024 = vpop.permute.xlu0 %1023
        %1027 = vset.pattern.permute.xlu0 0
        %1028 = vperm.xlu0 %1027, %v993
        %v1029 = vpop.permute.xlu0 %1028
        %1032 = vset.pattern.permute.xlu0 0
        %1033 = vperm.xlu0 %1032, %v994
        %v1034 = vpop.permute.xlu0 %1033
        %v1037 = vlaneseq
        %v1038 = vshrl.u32 %v1037, 7
        %v1039 = vsub.s32 0, %v1038
        %v1040 = vrot.slane %v995, %v1039
        %v1042 = vmul.f32 %v999, %v1040
        %v1043 = vmul.f32 %v1004, %v1040
        %v1044 = vmul.f32 %v1009, %v1040
        %v1045 = vmul.f32 %v1014, %v1040
        %v1046 = vmul.f32 %v1019, %v1040
        %v1047 = vmul.f32 %v1024, %v1040
        %v1048 = vmul.f32 %v1029, %v1040
        %v1049 = vmul.f32 %v1034, %v1040
        %v1050 = vld [vmem:[%s4] sm:$0xff]
        %v1051 = vld [vmem:[%s4 + $0x8] sm:$0xff]
        %v1052 = vld [vmem:[%s4 + $0x10] sm:$0xff]
        %v1053 = vld [vmem:[%s4 + $0x18] sm:$0xff]
        %v1054 = vld [vmem:[%s4 + $0x20] sm:$0xff]
        %v1055 = vld [vmem:[%s4 + $0x28] sm:$0xff]
        %v1056 = vld [vmem:[%s4 + $0x30] sm:$0xff]
        %v1057 = vld [vmem:[%s4 + $0x38] sm:$0xff]
        %vm1058 = vcmask 64512
        %v1060 = vsel %vm1058, %v767, 0
        %v1063 = vsel %vm1058, %v768, 0
        %v1066 = vsel %vm1058, %v769, 0
        %v1069 = vsel %vm1058, %v770, 0
        %v1072 = vsel %vm1058, %v771, 0
        %v1075 = vsel %vm1058, %v772, 0
        %v1078 = vsel %vm1058, %v773, 0
        %v1081 = vsel %vm1058, %v774, 0
        %v1084 = vsel %vm1058, %v909, 0
        %v1087 = vsel %vm1058, %v914, 0
        %v1090 = vsel %vm1058, %v919, 0
        %v1093 = vsel %vm1058, %v924, 0
        %v1096 = vsel %vm1058, %v929, 0
        %v1099 = vsel %vm1058, %v934, 0
        %v1102 = vsel %vm1058, %v939, 0
        %v1105 = vsel %vm1058, %v944, 0
        %1107 = vmatprep.subr.mxu0 0.0
        %1108 = vmatpush1.xpose.msra.mxu0 %v1084
        %1109 = vmatprep.subr.mxu0 0.0
        %1110 = vmatpush1.xpose.msra.mxu0 %v1087
        %1111 = vmatprep.subr.mxu0 0.0
        %1112 = vmatpush1.xpose.msra.mxu0 %v1090
        %1113 = vmatprep.subr.mxu0 0.0
        %1114 = vmatpush1.xpose.msra.mxu0 %v1093
        %1115 = vmatprep.subr.mxu0 0.0
        %1116 = vmatpush1.xpose.msra.mxu0 %v1096
        %1117 = vmatprep.subr.mxu0 0.0
        %1118 = vmatpush1.xpose.msra.mxu0 %v1099
        %1119 = vmatprep.subr.mxu0 0.0
        %1120 = vmatpush1.xpose.msra.mxu0 %v1102
        %1121 = vmatprep.subr.mxu0 0.0
        %1122 = vmatpush1.xpose.msra.mxu0 %v1105
        %1123 = vmatprep.subr.mxu0 0.0
        %1124 = vmatpush1.xpose.msra.mxu0 0.0
        %1125 = vmatprep.subr.mxu0 0.0
        %1126 = vmatpush1.xpose.msra.mxu0 0.0
        %1127 = vmatprep.subr.mxu0 0.0
        %1128 = vmatpush1.xpose.msra.mxu0 0.0
        %1129 = vmatprep.subr.mxu0 0.0
        %1130 = vmatpush1.xpose.msra.mxu0 0.0
        %1131 = vmatprep.subr.mxu0 0.0
        %1132 = vmatpush1.xpose.msra.mxu0 0.0
        %1133 = vmatprep.subr.mxu0 0.0
        %1134 = vmatpush1.xpose.msra.mxu0 0.0
        %1135 = vmatprep.subr.mxu0 0.0
        %1136 = vmatpush1.xpose.msra.mxu0 0.0
        %1137 = vmatprep.subr.mxu0 0.0
        %1138 = vmatpush1.xpose.msra.mxu0 0.0
        %1139 = vmatprep.subr.mxu0 0.0
        %1140 = vmatpush1.xpose.msra.mxu0 0.0
        %1141 = vmatprep.subr.mxu0 0.0
        %1142 = vmatpush1.xpose.msra.mxu0 0.0
        %1143 = vmatprep.subr.mxu0 0.0
        %1144 = vmatpush1.xpose.msra.mxu0 0.0
        %1145 = vmatprep.subr.mxu0 0.0
        %1146 = vmatpush1.xpose.msra.mxu0 0.0
        %1147 = vmatprep.subr.mxu0 0.0
        %1148 = vmatpush1.xpose.msra.mxu0 0.0
        %1149 = vmatprep.subr.mxu0 0.0
        %1150 = vmatpush1.xpose.msra.mxu0 0.0
        %1151 = vmatprep.subr.mxu0 0.0
        %1152 = vmatpush1.xpose.msra.mxu0 0.0
        %1153 = vmatprep.subr.mxu0 0.0
        %1154 = vmatpush1.xpose.msra.mxu0 0.0
        %1155 = vmatprep.subr.mxu0 0.0
        %1156 = vmatpush1.xpose.msra.mxu0 0.0
        %1157 = vmatprep.subr.mxu0 0.0
        %1158 = vmatpush1.xpose.msra.mxu0 0.0
        %1159 = vmatprep.subr.mxu0 0.0
        %1160 = vmatpush1.xpose.msra.mxu0 0.0
        %1161 = vmatprep.subr.mxu0 0.0
        %1162 = vmatpush1.xpose.msra.mxu0 0.0
        %1163 = vmatprep.subr.mxu0 0.0
        %1164 = vmatpush1.xpose.msra.mxu0 0.0
        %1165 = vmatprep.subr.mxu0 0.0
        %1166 = vmatpush1.xpose.msra.mxu0 0.0
        %1167 = vmatprep.subr.mxu0 0.0
        %1168 = vmatpush1.xpose.msra.mxu0 0.0
        %1169 = vmatprep.subr.mxu0 0.0
        %1170 = vmatpush1.xpose.msra.mxu0 0.0
        %1171 = vmatprep.mubr.f32.mxu0 0.0
        %1172 = vmatmul.mubr.f32.gmra.mrb[0].mxu0 %v1060
        %v1173 = vpop.f32.mrb[0].mxu0
        %v1174 = vadd.f32 0.0, %v1173
        %v1175 = vpop.f32.mrb[0].mxu0
        %1176 = vmatprep.mubr.f32.mxu0 0.0
        %1177 = vmatmul.mubr.f32.gmra.mrb[0].mxu0 %v1063
        %v1178 = vpop.f32.mrb[0].mxu0
        %v1179 = vadd.f32 0.0, %v1178
        %v1180 = vpop.f32.mrb[0].mxu0
        %1181 = vmatprep.mubr.f32.mxu0 0.0
        %1182 = vmatmul.mubr.f32.gmra.mrb[0].mxu0 %v1066
        %v1183 = vpop.f32.mrb[0].mxu0
        %v1184 = vadd.f32 0.0, %v1183
        %v1185 = vpop.f32.mrb[0].mxu0
        %1186 = vmatprep.mubr.f32.mxu0 0.0
        %1187 = vmatmul.mubr.f32.gmra.mrb[0].mxu0 %v1069
        %v1188 = vpop.f32.mrb[0].mxu0
        %v1189 = vadd.f32 0.0, %v1188
        %v1190 = vpop.f32.mrb[0].mxu0
        %1191 = vmatprep.mubr.f32.mxu0 0.0
        %1192 = vmatmul.mubr.f32.gmra.mrb[0].mxu0 %v1072
        %v1193 = vpop.f32.mrb[0].mxu0
        %v1194 = vadd.f32 0.0, %v1193
        %v1195 = vpop.f32.mrb[0].mxu0
        %1196 = vmatprep.mubr.f32.mxu0 0.0
        %1197 = vmatmul.mubr.f32.gmra.mrb[0].mxu0 %v1075
        %v1198 = vpop.f32.mrb[0].mxu0
        %v1199 = vadd.f32 0.0, %v1198
        %v1200 = vpop.f32.mrb[0].mxu0
        %1201 = vmatprep.mubr.f32.mxu0 0.0
        %1202 = vmatmul.mubr.f32.gmra.mrb[0].mxu0 %v1078
        %v1203 = vpop.f32.mrb[0].mxu0
        %v1204 = vadd.f32 0.0, %v1203
        %v1205 = vpop.f32.mrb[0].mxu0
        %1206 = vmatprep.mubr.f32.mxu0 0.0
        %1207 = vmatmul.mubr.f32.gmra.mrb[0].mxu0 %v1081
        %v1208 = vpop.f32.mrb[0].mxu0
        %v1209 = vadd.f32 0.0, %v1208
        %v1210 = vpop.f32.mrb[0].mxu0
        %1211 = vdwg.mxu0
        %v1212 = vmul.f32 %v1174, %v1042
        %v1213 = vmul.f32 %v1179, %v1043
        %v1214 = vmul.f32 %v1184, %v1044
        %v1215 = vmul.f32 %v1189, %v1045
        %v1216 = vmul.f32 %v1194, %v1046
        %v1217 = vmul.f32 %v1199, %v1047
        %v1218 = vmul.f32 %v1204, %v1048
        %v1219 = vmul.f32 %v1209, %v1049
        %v1220 = vld [vmem:[%s5] sm:$0xff]
        %v1221 = vld [vmem:[%s5 + $0x8] sm:$0xff]
        %v1222 = vld [vmem:[%s5 + $0x10] sm:$0xff]
        %v1223 = vld [vmem:[%s5 + $0x18] sm:$0xff]
        %v1224 = vld [vmem:[%s5 + $0x20] sm:$0xff]
        %v1225 = vld [vmem:[%s5 + $0x28] sm:$0xff]
        %v1226 = vld [vmem:[%s5 + $0x30] sm:$0xff]
        %v1227 = vld [vmem:[%s5 + $0x38] sm:$0xff]
        %v1228 = vadd.f32 %v1212, %v1220
        %v1229 = vadd.f32 %v1213, %v1221
        %v1230 = vadd.f32 %v1214, %v1222
        %v1231 = vadd.f32 %v1215, %v1223
        %v1232 = vadd.f32 %v1216, %v1224
        %v1233 = vadd.f32 %v1217, %v1225
        %v1234 = vadd.f32 %v1218, %v1226
        %v1235 = vadd.f32 %v1219, %v1227
        %v1236 = vadd.f32 %v1228, %v1050
        %v1237 = vadd.f32 %v1229, %v1051
        %v1238 = vadd.f32 %v1230, %v1052
        %v1239 = vadd.f32 %v1231, %v1053
        %v1240 = vadd.f32 %v1232, %v1054
        %v1241 = vadd.f32 %v1233, %v1055
        %v1242 = vadd.f32 %v1234, %v1056
        %v1243 = vadd.f32 %v1235, %v1057
        %vm1244 = vcmask 523264
        %v1245 = vsel %vm1244, %v1236, -inf
        %1246 = vmax.xlane.f32.xlu0 %v1245
        %v1247 = vpop.xlane.xlu0 %1246
        %v1248 = vsel %vm1244, %v1237, -inf
        %1249 = vmax.xlane.f32.xlu0 %v1248
        %v1250 = vpop.xlane.xlu0 %1249
        %v1251 = vsel %vm1244, %v1238, -inf
        %1252 = vmax.xlane.f32.xlu0 %v1251
        %v1253 = vpop.xlane.xlu0 %1252
        %v1254 = vsel %vm1244, %v1239, -inf
        %1255 = vmax.xlane.f32.xlu0 %v1254
        %v1256 = vpop.xlane.xlu0 %1255
        %v1257 = vsel %vm1244, %v1240, -inf
        %1258 = vmax.xlane.f32.xlu0 %v1257
        %v1259 = vpop.xlane.xlu0 %1258
        %v1260 = vsel %vm1244, %v1241, -inf
        %1261 = vmax.xlane.f32.xlu0 %v1260
        %v1262 = vpop.xlane.xlu0 %1261
        %v1263 = vsel %vm1244, %v1242, -inf
        %1264 = vmax.xlane.f32.xlu0 %v1263
        %v1265 = vpop.xlane.xlu0 %1264
        %v1266 = vsel %vm1244, %v1243, -inf
        %1267 = vmax.xlane.f32.xlu0 %v1266
        %v1268 = vpop.xlane.xlu0 %1267
        %v1269 = vsub.f32 %v1236, %v1247
        %v1270 = vsub.f32 %v1237, %v1250
        %v1271 = vsub.f32 %v1238, %v1253
        %v1272 = vsub.f32 %v1239, %v1256
        %v1273 = vsub.f32 %v1240, %v1259
        %v1274 = vsub.f32 %v1241, %v1262
        %v1275 = vsub.f32 %v1242, %v1265
        %v1276 = vsub.f32 %v1243, %v1268
        %v1277 = vmul.f32 %v1269, 1.442695
        %v1278 = vpow.pop %v1277
        %v1279 = vmul.f32 %v1270, 1.442695
        %v1280 = vpow.pop %v1279
        %v1281 = vmul.f32 %v1271, 1.442695
        %v1282 = vpow.pop %v1281
        %v1283 = vmul.f32 %v1272, 1.442695
        %v1284 = vpow.pop %v1283
        %v1285 = vmul.f32 %v1273, 1.442695
        %v1286 = vpow.pop %v1285
        %v1287 = vmul.f32 %v1274, 1.442695
        %v1288 = vpow.pop %v1287
        %v1289 = vmul.f32 %v1275, 1.442695
        %v1290 = vpow.pop %v1289
        %v1291 = vmul.f32 %v1276, 1.442695
        %v1292 = vpow.pop %v1291
        %v1293 = vsel %vm1244, %v1278, 0.0
        %1294 = vadd.xlane.f32.xlu0 %v1293
        %v1295 = vpop.xlane.xlu0 %1294
        %v1296 = vsel %vm1244, %v1280, 0.0
        %1297 = vadd.xlane.f32.xlu0 %v1296
        %v1298 = vpop.xlane.xlu0 %1297
        %v1299 = vsel %vm1244, %v1282, 0.0
        %1300 = vadd.xlane.f32.xlu0 %v1299
        %v1301 = vpop.xlane.xlu0 %1300
        %v1302 = vsel %vm1244, %v1284, 0.0
        %1303 = vadd.xlane.f32.xlu0 %v1302
        %v1304 = vpop.xlane.xlu0 %1303
        %v1305 = vsel %vm1244, %v1286, 0.0
        %1306 = vadd.xlane.f32.xlu0 %v1305
        %v1307 = vpop.xlane.xlu0 %1306
        %v1308 = vsel %vm1244, %v1288, 0.0
        %1309 = vadd.xlane.f32.xlu0 %v1308
        %v1310 = vpop.xlane.xlu0 %1309
        %v1311 = vsel %vm1244, %v1290, 0.0
        %1312 = vadd.xlane.f32.xlu0 %v1311
        %v1313 = vpop.xlane.xlu0 %1312
        %v1314 = vsel %vm1244, %v1292, 0.0
        %1315 = vadd.xlane.f32.xlu0 %v1314
        %v1316 = vpop.xlane.xlu0 %1315
        %v1317 = vrcp.pop %v1295
        %v1318 = vrcp.pop %v1298
        %v1319 = vrcp.pop %v1301
        %v1320 = vrcp.pop %v1304
        %v1321 = vrcp.pop %v1307
        %v1322 = vrcp.pop %v1310
        %v1323 = vrcp.pop %v1313
        %v1324 = vrcp.pop %v1316
        %v1325 = vmul.f32 %v1278, %v1317
        %v1326 = vmul.f32 %v1280, %v1318
        %v1327 = vmul.f32 %v1282, %v1319
        %v1328 = vmul.f32 %v1284, %v1320
        %v1329 = vmul.f32 %v1286, %v1321
        %v1330 = vmul.f32 %v1288, %v1322
        %v1331 = vmul.f32 %v1290, %v1323
        %v1332 = vmul.f32 %v1292, %v1324
        %1333 = vst.msk [vmem:[%s495] sm:$0xff] %vm1244, %v1325
        %1334 = vst.msk [vmem:[%s495 + $0x10] sm:$0xff] %vm1244, %v1326
        %1335 = vst.msk [vmem:[%s495 + $0x20] sm:$0xff] %vm1244, %v1327
        %1336 = vst.msk [vmem:[%s495 + $0x30] sm:$0xff] %vm1244, %v1328
        %1337 = vst.msk [vmem:[%s495 + $0x40] sm:$0xff] %vm1244, %v1329
        %1338 = vst.msk [vmem:[%s495 + $0x50] sm:$0xff] %vm1244, %v1330
        %1339 = vst.msk [vmem:[%s495 + $0x60] sm:$0xff] %vm1244, %v1331
        %1340 = vst.msk [vmem:[%s495 + $0x70] sm:$0xff] %vm1244, %v1332
        %1341 = vrot.lane.b32.xlu0 %v909, 96
        %v1342 = vpop.permute.xlu0 %1341
        %1343 = vrot.lane.b32.xlu0 %v914, 96
        %v1344 = vpop.permute.xlu0 %1343
        %1345 = vrot.lane.b32.xlu0 %v919, 96
        %v1346 = vpop.permute.xlu0 %1345
        %1347 = vrot.lane.b32.xlu0 %v924, 96
        %v1348 = vpop.permute.xlu0 %1347
        %1349 = vrot.lane.b32.xlu0 %v929, 96
        %v1350 = vpop.permute.xlu0 %1349
        %1351 = vrot.lane.b32.xlu0 %v934, 96
        %v1352 = vpop.permute.xlu0 %1351
        %1353 = vrot.lane.b32.xlu0 %v939, 96
        %v1354 = vpop.permute.xlu0 %1353
        %1355 = vrot.lane.b32.xlu0 %v944, 96
        %v1356 = vpop.permute.xlu0 %1355
        %v1366 = vsel %vm1244, %v1325, 0
        %v1369 = vsel %vm1244, %v1326, 0
        %v1372 = vsel %vm1244, %v1327, 0
        %v1375 = vsel %vm1244, %v1328, 0
        %v1378 = vsel %vm1244, %v1329, 0
        %v1381 = vsel %vm1244, %v1330, 0
        %v1384 = vsel %vm1244, %v1331, 0
        %v1387 = vsel %vm1244, %v1332, 0
        %1389 = vmatprep.subr.mxu0 0.0
        %1390 = vmatpush1.msra.mxu0 %v1342
        %1391 = vmatprep.subr.mxu0 0.0
        %1392 = vmatpush1.msra.mxu0 %v1344
        %1393 = vmatprep.subr.mxu0 0.0
        %1394 = vmatpush1.msra.mxu0 %v1346
        %1395 = vmatprep.subr.mxu0 0.0
        %1396 = vmatpush1.msra.mxu0 %v1348
        %1397 = vmatprep.subr.mxu0 0.0
        %1398 = vmatpush1.msra.mxu0 %v1350
        %1399 = vmatprep.subr.mxu0 0.0
        %1400 = vmatpush1.msra.mxu0 %v1352
        %1401 = vmatprep.subr.mxu0 0.0
        %1402 = vmatpush1.msra.mxu0 %v1354
        %1403 = vmatprep.subr.mxu0 0.0
        %1404 = vmatpush1.msra.mxu0 %v1356
        %1405 = vmatprep.subr.mxu0 0.0
        %1406 = vmatpush1.msra.mxu0 0.0
        %1407 = vmatprep.subr.mxu0 0.0
        %1408 = vmatpush1.msra.mxu0 0.0
        %1409 = vmatprep.subr.mxu0 0.0
        %1410 = vmatpush1.msra.mxu0 0.0
        %1411 = vmatprep.subr.mxu0 0.0
        %1412 = vmatpush1.msra.mxu0 0.0
        %1413 = vmatprep.subr.mxu0 0.0
        %1414 = vmatpush1.msra.mxu0 0.0
        %1415 = vmatprep.subr.mxu0 0.0
        %1416 = vmatpush1.msra.mxu0 0.0
        %1417 = vmatprep.subr.mxu0 0.0
        %1418 = vmatpush1.msra.mxu0 0.0
        %1419 = vmatprep.subr.mxu0 0.0
        %1420 = vmatpush1.msra.mxu0 0.0
        %1421 = vmatprep.subr.mxu0 0.0
        %1422 = vmatpush1.msra.mxu0 0.0
        %1423 = vmatprep.subr.mxu0 0.0
        %1424 = vmatpush1.msra.mxu0 0.0
        %1425 = vmatprep.subr.mxu0 0.0
        %1426 = vmatpush1.msra.mxu0 0.0
        %1427 = vmatprep.subr.mxu0 0.0
        %1428 = vmatpush1.msra.mxu0 0.0
        %1429 = vmatprep.subr.mxu0 0.0
        %1430 = vmatpush1.msra.mxu0 0.0
        %1431 = vmatprep.subr.mxu0 0.0
        %1432 = vmatpush1.msra.mxu0 0.0
        %1433 = vmatprep.subr.mxu0 0.0
        %1434 = vmatpush1.msra.mxu0 0.0
        %1435 = vmatprep.subr.mxu0 0.0
        %1436 = vmatpush1.msra.mxu0 0.0
        %1437 = vmatprep.subr.mxu0 0.0
        %1438 = vmatpush1.msra.mxu0 0.0
        %1439 = vmatprep.subr.mxu0 0.0
        %1440 = vmatpush1.msra.mxu0 0.0
        %1441 = vmatprep.subr.mxu0 0.0
        %1442 = vmatpush1.msra.mxu0 0.0
        %1443 = vmatprep.subr.mxu0 0.0
        %1444 = vmatpush1.msra.mxu0 0.0
        %1445 = vmatprep.subr.mxu0 0.0
        %1446 = vmatpush1.msra.mxu0 0.0
        %1447 = vmatprep.subr.mxu0 0.0
        %1448 = vmatpush1.msra.mxu0 0.0
        %1449 = vmatprep.subr.mxu0 0.0
        %1450 = vmatpush1.msra.mxu0 0.0
        %1451 = vmatprep.subr.mxu0 0.0
        %1452 = vmatpush1.msra.mxu0 0.0
        %1453 = vmatprep.mubr.f32.mxu0 0.0
        %1454 = vmatmul.mubr.f32.gmra.mrb[0].mxu0 %v1366
        %v1455 = vpop.f32.mrb[0].mxu0
        %v1456 = vadd.f32 0.0, %v1455
        %v1457 = vpop.f32.mrb[0].mxu0
        %1458 = vmatprep.mubr.f32.mxu0 0.0
        %1459 = vmatmul.mubr.f32.gmra.mrb[0].mxu0 %v1369
        %v1460 = vpop.f32.mrb[0].mxu0
        %v1461 = vadd.f32 0.0, %v1460
        %v1462 = vpop.f32.mrb[0].mxu0
        %1463 = vmatprep.mubr.f32.mxu0 0.0
        %1464 = vmatmul.mubr.f32.gmra.mrb[0].mxu0 %v1372
        %v1465 = vpop.f32.mrb[0].mxu0
        %v1466 = vadd.f32 0.0, %v1465
        %v1467 = vpop.f32.mrb[0].mxu0
        %1468 = vmatprep.mubr.f32.mxu0 0.0
        %1469 = vmatmul.mubr.f32.gmra.mrb[0].mxu0 %v1375
        %v1470 = vpop.f32.mrb[0].mxu0
        %v1471 = vadd.f32 0.0, %v1470
        %v1472 = vpop.f32.mrb[0].mxu0
        %1473 = vmatprep.mubr.f32.mxu0 0.0
        %1474 = vmatmul.mubr.f32.gmra.mrb[0].mxu0 %v1378
        %v1475 = vpop.f32.mrb[0].mxu0
        %v1476 = vadd.f32 0.0, %v1475
        %v1477 = vpop.f32.mrb[0].mxu0
        %1478 = vmatprep.mubr.f32.mxu0 0.0
        %1479 = vmatmul.mubr.f32.gmra.mrb[0].mxu0 %v1381
        %v1480 = vpop.f32.mrb[0].mxu0
        %v1481 = vadd.f32 0.0, %v1480
        %v1482 = vpop.f32.mrb[0].mxu0
        %1483 = vmatprep.mubr.f32.mxu0 0.0
        %1484 = vmatmul.mubr.f32.gmra.mrb[0].mxu0 %v1384
        %v1485 = vpop.f32.mrb[0].mxu0
        %v1486 = vadd.f32 0.0, %v1485
        %v1487 = vpop.f32.mrb[0].mxu0
        %1488 = vmatprep.mubr.f32.mxu0 0.0
        %1489 = vmatmul.mubr.f32.gmra.mrb[0].mxu0 %v1387
        %v1490 = vpop.f32.mrb[0].mxu0
        %v1491 = vadd.f32 0.0, %v1490
        %v1492 = vpop.f32.mrb[0].mxu0
        %1493 = vdwg.mxu0
        %v1494 = vld [vmem:[%s10] sm:$0xff]
        %1495 = vrot.lane.b32.xlu0 %v767, 120
        %v1496 = vpop.permute.xlu0 %1495
        %1497 = vrot.lane.b32.xlu0 %v768, 120
        %v1498 = vpop.permute.xlu0 %1497
        %1499 = vrot.lane.b32.xlu0 %v769, 120
        %v1500 = vpop.permute.xlu0 %1499
        %1501 = vrot.lane.b32.xlu0 %v770, 120
        %v1502 = vpop.permute.xlu0 %1501
        %1503 = vrot.lane.b32.xlu0 %v771, 120
        %v1504 = vpop.permute.xlu0 %1503
        %1505 = vrot.lane.b32.xlu0 %v772, 120
        %v1506 = vpop.permute.xlu0 %1505
        %1507 = vrot.lane.b32.xlu0 %v773, 120
        %v1508 = vpop.permute.xlu0 %1507
        %1509 = vrot.lane.b32.xlu0 %v774, 120
        %v1510 = vpop.permute.xlu0 %1509
        %1511 = vrot.lane.b32.xlu0 %v909, 120
        %v1512 = vpop.permute.xlu0 %1511
        %1513 = vrot.lane.b32.xlu0 %v914, 120
        %v1514 = vpop.permute.xlu0 %1513
        %1515 = vrot.lane.b32.xlu0 %v919, 120
        %v1516 = vpop.permute.xlu0 %1515
        %1517 = vrot.lane.b32.xlu0 %v924, 120
        %v1518 = vpop.permute.xlu0 %1517
        %1519 = vrot.lane.b32.xlu0 %v929, 120
        %v1520 = vpop.permute.xlu0 %1519
        %1521 = vrot.lane.b32.xlu0 %v934, 120
        %v1522 = vpop.permute.xlu0 %1521
        %1523 = vrot.lane.b32.xlu0 %v939, 120
        %v1524 = vpop.permute.xlu0 %1523
        %1525 = vrot.lane.b32.xlu0 %v944, 120
        %v1526 = vpop.permute.xlu0 %1525
        %v1527 = vsel %vm1058, %v1496, 0
        %v1529 = vsel %vm1058, %v1498, 0
        %v1531 = vsel %vm1058, %v1500, 0
        %v1533 = vsel %vm1058, %v1502, 0
        %v1535 = vsel %vm1058, %v1504, 0
        %v1537 = vsel %vm1058, %v1506, 0
        %v1539 = vsel %vm1058, %v1508, 0
        %v1541 = vsel %vm1058, %v1510, 0
        %v1543 = vsel %vm1058, %v1512, 0
        %v1545 = vsel %vm1058, %v1514, 0
        %v1547 = vsel %vm1058, %v1516, 0
        %v1549 = vsel %vm1058, %v1518, 0
        %v1551 = vsel %vm1058, %v1520, 0
        %v1553 = vsel %vm1058, %v1522, 0
        %v1555 = vsel %vm1058, %v1524, 0
        %v1557 = vsel %vm1058, %v1526, 0
        %1559 = vmatprep.subr.mxu0 0.0
        %1560 = vmatpush1.xpose.msra.mxu0 %v1543
        %1561 = vmatprep.subr.mxu0 0.0
        %1562 = vmatpush1.xpose.msra.mxu0 %v1545
        %1563 = vmatprep.subr.mxu0 0.0
        %1564 = vmatpush1.xpose.msra.mxu0 %v1547
        %1565 = vmatprep.subr.mxu0 0.0
        %1566 = vmatpush1.xpose.msra.mxu0 %v1549
        %1567 = vmatprep.subr.mxu0 0.0
        %1568 = vmatpush1.xpose.msra.mxu0 %v1551
        %1569 = vmatprep.subr.mxu0 0.0
        %1570 = vmatpush1.xpose.msra.mxu0 %v1553
        %1571 = vmatprep.subr.mxu0 0.0
        %1572 = vmatpush1.xpose.msra.mxu0 %v1555
        %1573 = vmatprep.subr.mxu0 0.0
        %1574 = vmatpush1.xpose.msra.mxu0 %v1557
        %1575 = vmatprep.subr.mxu0 0.0
        %1576 = vmatpush1.xpose.msra.mxu0 0.0
        %1577 = vmatprep.subr.mxu0 0.0
        %1578 = vmatpush1.xpose.msra.mxu0 0.0
        %1579 = vmatprep.subr.mxu0 0.0
        %1580 = vmatpush1.xpose.msra.mxu0 0.0
        %1581 = vmatprep.subr.mxu0 0.0
        %1582 = vmatpush1.xpose.msra.mxu0 0.0
        %1583 = vmatprep.subr.mxu0 0.0
        %1584 = vmatpush1.xpose.msra.mxu0 0.0
        %1585 = vmatprep.subr.mxu0 0.0
        %1586 = vmatpush1.xpose.msra.mxu0 0.0
        %1587 = vmatprep.subr.mxu0 0.0
        %1588 = vmatpush1.xpose.msra.mxu0 0.0
        %1589 = vmatprep.subr.mxu0 0.0
        %1590 = vmatpush1.xpose.msra.mxu0 0.0
        %1591 = vmatprep.subr.mxu0 0.0
        %1592 = vmatpush1.xpose.msra.mxu0 0.0
        %1593 = vmatprep.subr.mxu0 0.0
        %1594 = vmatpush1.xpose.msra.mxu0 0.0
        %1595 = vmatprep.subr.mxu0 0.0
        %1596 = vmatpush1.xpose.msra.mxu0 0.0
        %1597 = vmatprep.subr.mxu0 0.0
        %1598 = vmatpush1.xpose.msra.mxu0 0.0
        %1599 = vmatprep.subr.mxu0 0.0
        %1600 = vmatpush1.xpose.msra.mxu0 0.0
        %1601 = vmatprep.subr.mxu0 0.0
        %1602 = vmatpush1.xpose.msra.mxu0 0.0
        %1603 = vmatprep.subr.mxu0 0.0
        %1604 = vmatpush1.xpose.msra.mxu0 0.0
        %1605 = vmatprep.subr.mxu0 0.0
        %1606 = vmatpush1.xpose.msra.mxu0 0.0
        %1607 = vmatprep.subr.mxu0 0.0
        %1608 = vmatpush1.xpose.msra.mxu0 0.0
        %1609 = vmatprep.subr.mxu0 0.0
        %1610 = vmatpush1.xpose.msra.mxu0 0.0
        %1611 = vmatprep.subr.mxu0 0.0
        %1612 = vmatpush1.xpose.msra.mxu0 0.0
        %1613 = vmatprep.subr.mxu0 0.0
        %1614 = vmatpush1.xpose.msra.mxu0 0.0
        %1615 = vmatprep.subr.mxu0 0.0
        %1616 = vmatpush1.xpose.msra.mxu0 0.0
        %1617 = vmatprep.subr.mxu0 0.0
        %1618 = vmatpush1.xpose.msra.mxu0 0.0
        %1619 = vmatprep.subr.mxu0 0.0
        %1620 = vmatpush1.xpose.msra.mxu0 0.0
        %1621 = vmatprep.subr.mxu0 0.0
        %1622 = vmatpush1.xpose.msra.mxu0 0.0
        %1623 = vmatprep.mubr.f32.mxu0 0.0
        %1624 = vmatmul.mubr.f32.gmra.mrb[0].mxu0 %v1527
        %v1625 = vpop.f32.mrb[0].mxu0
        %v1626 = vadd.f32 0.0, %v1625
        %v1627 = vpop.f32.mrb[0].mxu0
        %1628 = vmatprep.mubr.f32.mxu0 0.0
        %1629 = vmatmul.mubr.f32.gmra.mrb[0].mxu0 %v1529
        %v1630 = vpop.f32.mrb[0].mxu0
        %v1631 = vadd.f32 0.0, %v1630
        %v1632 = vpop.f32.mrb[0].mxu0
        %1633 = vmatprep.mubr.f32.mxu0 0.0
        %1634 = vmatmul.mubr.f32.gmra.mrb[0].mxu0 %v1531
        %v1635 = vpop.f32.mrb[0].mxu0
        %v1636 = vadd.f32 0.0, %v1635
        %v1637 = vpop.f32.mrb[0].mxu0
        %1638 = vmatprep.mubr.f32.mxu0 0.0
        %1639 = vmatmul.mubr.f32.gmra.mrb[0].mxu0 %v1533
        %v1640 = vpop.f32.mrb[0].mxu0
        %v1641 = vadd.f32 0.0, %v1640
        %v1642 = vpop.f32.mrb[0].mxu0
        %1643 = vmatprep.mubr.f32.mxu0 0.0
        %1644 = vmatmul.mubr.f32.gmra.mrb[0].mxu0 %v1535
        %v1645 = vpop.f32.mrb[0].mxu0
        %v1646 = vadd.f32 0.0, %v1645
        %v1647 = vpop.f32.mrb[0].mxu0
        %1648 = vmatprep.mubr.f32.mxu0 0.0
        %1649 = vmatmul.mubr.f32.gmra.mrb[0].mxu0 %v1537
        %v1650 = vpop.f32.mrb[0].mxu0
        %v1651 = vadd.f32 0.0, %v1650
        %v1652 = vpop.f32.mrb[0].mxu0
        %1653 = vmatprep.mubr.f32.mxu0 0.0
        %1654 = vmatmul.mubr.f32.gmra.mrb[0].mxu0 %v1539
        %v1655 = vpop.f32.mrb[0].mxu0
        %v1656 = vadd.f32 0.0, %v1655
        %v1657 = vpop.f32.mrb[0].mxu0
        %1658 = vmatprep.mubr.f32.mxu0 0.0
        %1659 = vmatmul.mubr.f32.gmra.mrb[0].mxu0 %v1541
        %v1660 = vpop.f32.mrb[0].mxu0
        %v1661 = vadd.f32 0.0, %v1660
        %v1662 = vpop.f32.mrb[0].mxu0
        %1663 = vdwg.mxu0
        %v1664 = vmul.f32 %v1626, %v1042
        %v1665 = vmul.f32 %v1631, %v1043
        %v1666 = vmul.f32 %v1636, %v1044
        %v1667 = vmul.f32 %v1641, %v1045
        %v1668 = vmul.f32 %v1646, %v1046
        %v1669 = vmul.f32 %v1651, %v1047
        %v1670 = vmul.f32 %v1656, %v1048
        %v1671 = vmul.f32 %v1661, %v1049
        %s1672 = scalar_lea.vmem %s5, 64
        %v1673 = vld [vmem:[%s1672] sm:$0xff]
        %v1674 = vld [vmem:[%s1672 + $0x8] sm:$0xff]
        %v1675 = vld [vmem:[%s1672 + $0x10] sm:$0xff]
        %v1676 = vld [vmem:[%s1672 + $0x18] sm:$0xff]
        %v1677 = vld [vmem:[%s1672 + $0x20] sm:$0xff]
        %v1678 = vld [vmem:[%s1672 + $0x28] sm:$0xff]
        %v1679 = vld [vmem:[%s1672 + $0x30] sm:$0xff]
        %v1680 = vld [vmem:[%s1672 + $0x38] sm:$0xff]
        %v1681 = vadd.f32 %v1664, %v1673
        %v1682 = vadd.f32 %v1665, %v1674
        %v1683 = vadd.f32 %v1666, %v1675
        %v1684 = vadd.f32 %v1667, %v1676
        %v1685 = vadd.f32 %v1668, %v1677
        %v1686 = vadd.f32 %v1669, %v1678
        %v1687 = vadd.f32 %v1670, %v1679
        %v1688 = vadd.f32 %v1671, %v1680
        %v1689 = vadd.f32 %v1681, %v1050
        %v1690 = vadd.f32 %v1682, %v1051
        %v1691 = vadd.f32 %v1683, %v1052
        %v1692 = vadd.f32 %v1684, %v1053
        %v1693 = vadd.f32 %v1685, %v1054
        %v1694 = vadd.f32 %v1686, %v1055
        %v1695 = vadd.f32 %v1687, %v1056
        %v1696 = vadd.f32 %v1688, %v1057
        %v1697 = vsel %vm1244, %v1689, -inf
        %1698 = vmax.xlane.f32.xlu0 %v1697
        %v1699 = vpop.xlane.xlu0 %1698
        %v1700 = vsel %vm1244, %v1690, -inf
        %1701 = vmax.xlane.f32.xlu0 %v1700
        %v1702 = vpop.xlane.xlu0 %1701
        %v1703 = vsel %vm1244, %v1691, -inf
        %1704 = vmax.xlane.f32.xlu0 %v1703
        %v1705 = vpop.xlane.xlu0 %1704
        %v1706 = vsel %vm1244, %v1692, -inf
        %1707 = vmax.xlane.f32.xlu0 %v1706
        %v1708 = vpop.xlane.xlu0 %1707
        %v1709 = vsel %vm1244, %v1693, -inf
        %1710 = vmax.xlane.f32.xlu0 %v1709
        %v1711 = vpop.xlane.xlu0 %1710
        %v1712 = vsel %vm1244, %v1694, -inf
        %1713 = vmax.xlane.f32.xlu0 %v1712
        %v1714 = vpop.xlane.xlu0 %1713
        %v1715 = vsel %vm1244, %v1695, -inf
        %1716 = vmax.xlane.f32.xlu0 %v1715
        %v1717 = vpop.xlane.xlu0 %1716
        %v1718 = vsel %vm1244, %v1696, -inf
        %1719 = vmax.xlane.f32.xlu0 %v1718
        %v1720 = vpop.xlane.xlu0 %1719
        %v1721 = vsub.f32 %v1689, %v1699
        %v1722 = vsub.f32 %v1690, %v1702
        %v1723 = vsub.f32 %v1691, %v1705
        %v1724 = vsub.f32 %v1692, %v1708
        %v1725 = vsub.f32 %v1693, %v1711
        %v1726 = vsub.f32 %v1694, %v1714
        %v1727 = vsub.f32 %v1695, %v1717
        %v1728 = vsub.f32 %v1696, %v1720
        %v1729 = vmul.f32 %v1721, 1.442695
        %v1730 = vpow.pop %v1729
        %v1731 = vmul.f32 %v1722, 1.442695
        %v1732 = vpow.pop %v1731
        %v1733 = vmul.f32 %v1723, 1.442695
        %v1734 = vpow.pop %v1733
        %v1735 = vmul.f32 %v1724, 1.442695
        %v1736 = vpow.pop %v1735
        %v1737 = vmul.f32 %v1725, 1.442695
        %v1738 = vpow.pop %v1737
        %v1739 = vmul.f32 %v1726, 1.442695
        %v1740 = vpow.pop %v1739
        %v1741 = vmul.f32 %v1727, 1.442695
        %v1742 = vpow.pop %v1741
        %v1743 = vmul.f32 %v1728, 1.442695
        %v1744 = vpow.pop %v1743
        %v1745 = vsel %vm1244, %v1730, 0.0
        %1746 = vadd.xlane.f32.xlu0 %v1745
        %v1747 = vpop.xlane.xlu0 %1746
        %v1748 = vsel %vm1244, %v1732, 0.0
        %1749 = vadd.xlane.f32.xlu0 %v1748
        %v1750 = vpop.xlane.xlu0 %1749
        %v1751 = vsel %vm1244, %v1734, 0.0
        %1752 = vadd.xlane.f32.xlu0 %v1751
        %v1753 = vpop.xlane.xlu0 %1752
        %v1754 = vsel %vm1244, %v1736, 0.0
        %1755 = vadd.xlane.f32.xlu0 %v1754
        %v1756 = vpop.xlane.xlu0 %1755
        %v1757 = vsel %vm1244, %v1738, 0.0
        %1758 = vadd.xlane.f32.xlu0 %v1757
        %v1759 = vpop.xlane.xlu0 %1758
        %v1760 = vsel %vm1244, %v1740, 0.0
        %1761 = vadd.xlane.f32.xlu0 %v1760
        %v1762 = vpop.xlane.xlu0 %1761
        %v1763 = vsel %vm1244, %v1742, 0.0
        %1764 = vadd.xlane.f32.xlu0 %v1763
        %v1765 = vpop.xlane.xlu0 %1764
        %v1766 = vsel %vm1244, %v1744, 0.0
        %1767 = vadd.xlane.f32.xlu0 %v1766
        %v1768 = vpop.xlane.xlu0 %1767
        %v1769 = vrcp.pop %v1747
        %v1770 = vrcp.pop %v1750
        %v1771 = vrcp.pop %v1753
        %v1772 = vrcp.pop %v1756
        %v1773 = vrcp.pop %v1759
        %v1774 = vrcp.pop %v1762
        %v1775 = vrcp.pop %v1765
        %v1776 = vrcp.pop %v1768
        %v1777 = vmul.f32 %v1730, %v1769
        %v1778 = vmul.f32 %v1732, %v1770
        %v1779 = vmul.f32 %v1734, %v1771
        %v1780 = vmul.f32 %v1736, %v1772
        %v1781 = vmul.f32 %v1738, %v1773
        %v1782 = vmul.f32 %v1740, %v1774
        %v1783 = vmul.f32 %v1742, %v1775
        %v1784 = vmul.f32 %v1744, %v1776
        %1793 = vrot.lane.b32.xlu0 %v1777, 64
        %v1794 = vpop.permute.xlu0 %1793
        %1795 = vrot.lane.b32.xlu0 %v1778, 64
        %v1796 = vpop.permute.xlu0 %1795
        %1797 = vrot.lane.b32.xlu0 %v1779, 64
        %v1798 = vpop.permute.xlu0 %1797
        %1799 = vrot.lane.b32.xlu0 %v1780, 64
        %v1800 = vpop.permute.xlu0 %1799
        %1801 = vrot.lane.b32.xlu0 %v1781, 64
        %v1802 = vpop.permute.xlu0 %1801
        %1803 = vrot.lane.b32.xlu0 %v1782, 64
        %v1804 = vpop.permute.xlu0 %1803
        %1805 = vrot.lane.b32.xlu0 %v1783, 64
        %v1806 = vpop.permute.xlu0 %1805
        %1807 = vrot.lane.b32.xlu0 %v1784, 64
        %v1808 = vpop.permute.xlu0 %1807
        %vm1817 = vcmask 1048064
        %1818 = vst.msk [vmem:[%s495] sm:$0xff] %vm1817, %v1794
        %1819 = vst.msk [vmem:[%s495 + $0x10] sm:$0xff] %vm1817, %v1796
        %1820 = vst.msk [vmem:[%s495 + $0x20] sm:$0xff] %vm1817, %v1798
        %1821 = vst.msk [vmem:[%s495 + $0x30] sm:$0xff] %vm1817, %v1800
        %1822 = vst.msk [vmem:[%s495 + $0x40] sm:$0xff] %vm1817, %v1802
        %1823 = vst.msk [vmem:[%s495 + $0x50] sm:$0xff] %vm1817, %v1804
        %1824 = vst.msk [vmem:[%s495 + $0x60] sm:$0xff] %vm1817, %v1806
        %1825 = vst.msk [vmem:[%s495 + $0x70] sm:$0xff] %vm1817, %v1808
        %1826 = vrot.lane.b32.xlu0 %v909, 88
        %v1827 = vpop.permute.xlu0 %1826
        %1828 = vrot.lane.b32.xlu0 %v914, 88
        %v1829 = vpop.permute.xlu0 %1828
        %1830 = vrot.lane.b32.xlu0 %v919, 88
        %v1831 = vpop.permute.xlu0 %1830
        %1832 = vrot.lane.b32.xlu0 %v924, 88
        %v1833 = vpop.permute.xlu0 %1832
        %1834 = vrot.lane.b32.xlu0 %v929, 88
        %v1835 = vpop.permute.xlu0 %1834
        %1836 = vrot.lane.b32.xlu0 %v934, 88
        %v1837 = vpop.permute.xlu0 %1836
        %1838 = vrot.lane.b32.xlu0 %v939, 88
        %v1839 = vpop.permute.xlu0 %1838
        %1840 = vrot.lane.b32.xlu0 %v944, 88
        %v1841 = vpop.permute.xlu0 %1840
        %v1850 = vsel %vm1244, %v1777, 0
        %v1852 = vsel %vm1244, %v1778, 0
        %v1854 = vsel %vm1244, %v1779, 0
        %v1856 = vsel %vm1244, %v1780, 0
        %v1858 = vsel %vm1244, %v1781, 0
        %v1860 = vsel %vm1244, %v1782, 0
        %v1862 = vsel %vm1244, %v1783, 0
        %v1864 = vsel %vm1244, %v1784, 0
        %1866 = vmatprep.subr.mxu0 0.0
        %1867 = vmatpush1.msra.mxu0 %v1827
        %1868 = vmatprep.subr.mxu0 0.0
        %1869 = vmatpush1.msra.mxu0 %v1829
        %1870 = vmatprep.subr.mxu0 0.0
        %1871 = vmatpush1.msra.mxu0 %v1831
        %1872 = vmatprep.subr.mxu0 0.0
        %1873 = vmatpush1.msra.mxu0 %v1833
        %1874 = vmatprep.subr.mxu0 0.0
        %1875 = vmatpush1.msra.mxu0 %v1835
        %1876 = vmatprep.subr.mxu0 0.0
        %1877 = vmatpush1.msra.mxu0 %v1837
        %1878 = vmatprep.subr.mxu0 0.0
        %1879 = vmatpush1.msra.mxu0 %v1839
        %1880 = vmatprep.subr.mxu0 0.0
        %1881 = vmatpush1.msra.mxu0 %v1841
        %1882 = vmatprep.subr.mxu0 0.0
        %1883 = vmatpush1.msra.mxu0 0.0
        %1884 = vmatprep.subr.mxu0 0.0
        %1885 = vmatpush1.msra.mxu0 0.0
        %1886 = vmatprep.subr.mxu0 0.0
        %1887 = vmatpush1.msra.mxu0 0.0
        %1888 = vmatprep.subr.mxu0 0.0
        %1889 = vmatpush1.msra.mxu0 0.0
        %1890 = vmatprep.subr.mxu0 0.0
        %1891 = vmatpush1.msra.mxu0 0.0
        %1892 = vmatprep.subr.mxu0 0.0
        %1893 = vmatpush1.msra.mxu0 0.0
        %1894 = vmatprep.subr.mxu0 0.0
        %1895 = vmatpush1.msra.mxu0 0.0
        %1896 = vmatprep.subr.mxu0 0.0
        %1897 = vmatpush1.msra.mxu0 0.0
        %1898 = vmatprep.subr.mxu0 0.0
        %1899 = vmatpush1.msra.mxu0 0.0
        %1900 = vmatprep.subr.mxu0 0.0
        %1901 = vmatpush1.msra.mxu0 0.0
        %1902 = vmatprep.subr.mxu0 0.0
        %1903 = vmatpush1.msra.mxu0 0.0
        %1904 = vmatprep.subr.mxu0 0.0
        %1905 = vmatpush1.msra.mxu0 0.0
        %1906 = vmatprep.subr.mxu0 0.0
        %1907 = vmatpush1.msra.mxu0 0.0
        %1908 = vmatprep.subr.mxu0 0.0
        %1909 = vmatpush1.msra.mxu0 0.0
        %1910 = vmatprep.subr.mxu0 0.0
        %1911 = vmatpush1.msra.mxu0 0.0
        %1912 = vmatprep.subr.mxu0 0.0
        %1913 = vmatpush1.msra.mxu0 0.0
        %1914 = vmatprep.subr.mxu0 0.0
        %1915 = vmatpush1.msra.mxu0 0.0
        %1916 = vmatprep.subr.mxu0 0.0
        %1917 = vmatpush1.msra.mxu0 0.0
        %1918 = vmatprep.subr.mxu0 0.0
        %1919 = vmatpush1.msra.mxu0 0.0
        %1920 = vmatprep.subr.mxu0 0.0
        %1921 = vmatpush1.msra.mxu0 0.0
        %1922 = vmatprep.subr.mxu0 0.0
        %1923 = vmatpush1.msra.mxu0 0.0
        %1924 = vmatprep.subr.mxu0 0.0
        %1925 = vmatpush1.msra.mxu0 0.0
        %1926 = vmatprep.subr.mxu0 0.0
        %1927 = vmatpush1.msra.mxu0 0.0
        %1928 = vmatprep.subr.mxu0 0.0
        %1929 = vmatpush1.msra.mxu0 0.0
        %1930 = vmatprep.mubr.f32.mxu0 0.0
        %1931 = vmatmul.mubr.f32.gmra.mrb[0].mxu0 %v1850
        %v1932 = vpop.f32.mrb[0].mxu0
        %v1933 = vadd.f32 0.0, %v1932
        %v1934 = vpop.f32.mrb[0].mxu0
        %1935 = vmatprep.mubr.f32.mxu0 0.0
        %1936 = vmatmul.mubr.f32.gmra.mrb[0].mxu0 %v1852
        %v1937 = vpop.f32.mrb[0].mxu0
        %v1938 = vadd.f32 0.0, %v1937
        %v1939 = vpop.f32.mrb[0].mxu0
        %1940 = vmatprep.mubr.f32.mxu0 0.0
        %1941 = vmatmul.mubr.f32.gmra.mrb[0].mxu0 %v1854
        %v1942 = vpop.f32.mrb[0].mxu0
        %v1943 = vadd.f32 0.0, %v1942
        %v1944 = vpop.f32.mrb[0].mxu0
        %1945 = vmatprep.mubr.f32.mxu0 0.0
        %1946 = vmatmul.mubr.f32.gmra.mrb[0].mxu0 %v1856
        %v1947 = vpop.f32.mrb[0].mxu0
        %v1948 = vadd.f32 0.0, %v1947
        %v1949 = vpop.f32.mrb[0].mxu0
        %1950 = vmatprep.mubr.f32.mxu0 0.0
        %1951 = vmatmul.mubr.f32.gmra.mrb[0].mxu0 %v1858
        %v1952 = vpop.f32.mrb[0].mxu0
        %v1953 = vadd.f32 0.0, %v1952
        %v1954 = vpop.f32.mrb[0].mxu0
        %1955 = vmatprep.mubr.f32.mxu0 0.0
        %1956 = vmatmul.mubr.f32.gmra.mrb[0].mxu0 %v1860
        %v1957 = vpop.f32.mrb[0].mxu0
        %v1958 = vadd.f32 0.0, %v1957
        %v1959 = vpop.f32.mrb[0].mxu0
        %1960 = vmatprep.mubr.f32.mxu0 0.0
        %1961 = vmatmul.mubr.f32.gmra.mrb[0].mxu0 %v1862
        %v1962 = vpop.f32.mrb[0].mxu0
        %v1963 = vadd.f32 0.0, %v1962
        %v1964 = vpop.f32.mrb[0].mxu0
        %1965 = vmatprep.mubr.f32.mxu0 0.0
        %1966 = vmatmul.mubr.f32.gmra.mrb[0].mxu0 %v1864
        %v1967 = vpop.f32.mrb[0].mxu0
        %v1968 = vadd.f32 0.0, %v1967
        %v1969 = vpop.f32.mrb[0].mxu0
        %1970 = vdwg.mxu0
        %v1971 = vld [vmem:[%s10 + $0x8] sm:$0xff]
        %v1973 = vsel %vm1058, %v1933, 0
        %v1976 = vsel %vm1058, %v1938, 0
        %v1979 = vsel %vm1058, %v1943, 0
        %v1982 = vsel %vm1058, %v1948, 0
        %v1985 = vsel %vm1058, %v1953, 0
        %v1988 = vsel %vm1058, %v1958, 0
        %v1991 = vsel %vm1058, %v1963, 0
        %v1994 = vsel %vm1058, %v1968, 0
        %1996 = vmatprep.subr.mxu0 0.0
        %1997 = vmatpush1.msra.mxu0 %v1971
        %1998 = vmatprep.subr.mxu0 0.0
        %1999 = vmatpush1.msra.mxu0 0.0
        %2000 = vmatprep.subr.mxu0 0.0
        %2001 = vmatpush1.msra.mxu0 0.0
        %2002 = vmatprep.subr.mxu0 0.0
        %2003 = vmatpush1.msra.mxu0 0.0
        %2004 = vmatprep.subr.mxu0 0.0
        %2005 = vmatpush1.msra.mxu0 0.0
        %2006 = vmatprep.subr.mxu0 0.0
        %2007 = vmatpush1.msra.mxu0 0.0
        %2008 = vmatprep.subr.mxu0 0.0
        %2009 = vmatpush1.msra.mxu0 0.0
        %2010 = vmatprep.subr.mxu0 0.0
        %2011 = vmatpush1.msra.mxu0 0.0
        %2012 = vmatprep.subr.mxu0 0.0
        %2013 = vmatpush1.msra.mxu0 0.0
        %2014 = vmatprep.subr.mxu0 0.0
        %2015 = vmatpush1.msra.mxu0 0.0
        %2016 = vmatprep.subr.mxu0 0.0
        %2017 = vmatpush1.msra.mxu0 0.0
        %2018 = vmatprep.subr.mxu0 0.0
        %2019 = vmatpush1.msra.mxu0 0.0
        %2020 = vmatprep.subr.mxu0 0.0
        %2021 = vmatpush1.msra.mxu0 0.0
        %2022 = vmatprep.subr.mxu0 0.0
        %2023 = vmatpush1.msra.mxu0 0.0
        %2024 = vmatprep.subr.mxu0 0.0
        %2025 = vmatpush1.msra.mxu0 0.0
        %2026 = vmatprep.subr.mxu0 0.0
        %2027 = vmatpush1.msra.mxu0 0.0
        %2028 = vmatprep.subr.mxu0 0.0
        %2029 = vmatpush1.msra.mxu0 0.0
        %2030 = vmatprep.subr.mxu0 0.0
        %2031 = vmatpush1.msra.mxu0 0.0
        %2032 = vmatprep.subr.mxu0 0.0
        %2033 = vmatpush1.msra.mxu0 0.0
        %2034 = vmatprep.subr.mxu0 0.0
        %2035 = vmatpush1.msra.mxu0 0.0
        %2036 = vmatprep.subr.mxu0 0.0
        %2037 = vmatpush1.msra.mxu0 0.0
        %2038 = vmatprep.subr.mxu0 0.0
        %2039 = vmatpush1.msra.mxu0 0.0
        %2040 = vmatprep.subr.mxu0 0.0
        %2041 = vmatpush1.msra.mxu0 0.0
        %2042 = vmatprep.subr.mxu0 0.0
        %2043 = vmatpush1.msra.mxu0 0.0
        %2044 = vmatprep.subr.mxu0 0.0
        %2045 = vmatpush1.msra.mxu0 0.0
        %2046 = vmatprep.subr.mxu0 0.0
        %2047 = vmatpush1.msra.mxu0 0.0
        %2048 = vmatprep.subr.mxu0 0.0
        %2049 = vmatpush1.msra.mxu0 0.0
        %2050 = vmatprep.subr.mxu0 0.0
        %2051 = vmatpush1.msra.mxu0 0.0
        %2052 = vmatprep.subr.mxu0 0.0
        %2053 = vmatpush1.msra.mxu0 0.0
        %2054 = vmatprep.subr.mxu0 0.0
        %2055 = vmatpush1.msra.mxu0 0.0
        %2056 = vmatprep.subr.mxu0 0.0
        %2057 = vmatpush1.msra.mxu0 0.0
        %2058 = vmatprep.subr.mxu0 0.0
        %2059 = vmatpush1.msra.mxu0 0.0
        %2060 = vmatprep.mubr.f32.mxu0 0.0
        %2061 = vmatmul.mubr.f32.gmra.mrb[0].mxu0 %v1973
        %v2062 = vpop.f32.mrb[0].mxu0
        %v2063 = vadd.f32 0.0, %v2062
        %v2064 = vpop.f32.mrb[0].mxu0
        %2065 = vmatprep.mubr.f32.mxu0 0.0
        %2066 = vmatmul.mubr.f32.gmra.mrb[0].mxu0 %v1976
        %v2067 = vpop.f32.mrb[0].mxu0
        %v2068 = vadd.f32 0.0, %v2067
        %v2069 = vpop.f32.mrb[0].mxu0
        %2070 = vmatprep.mubr.f32.mxu0 0.0
        %2071 = vmatmul.mubr.f32.gmra.mrb[0].mxu0 %v1979
        %v2072 = vpop.f32.mrb[0].mxu0
        %v2073 = vadd.f32 0.0, %v2072
        %v2074 = vpop.f32.mrb[0].mxu0
        %2075 = vmatprep.mubr.f32.mxu0 0.0
        %2076 = vmatmul.mubr.f32.gmra.mrb[0].mxu0 %v1982
        %v2077 = vpop.f32.mrb[0].mxu0
        %v2078 = vadd.f32 0.0, %v2077
        %v2079 = vpop.f32.mrb[0].mxu0
        %2080 = vmatprep.mubr.f32.mxu0 0.0
        %2081 = vmatmul.mubr.f32.gmra.mrb[0].mxu0 %v1985
        %v2082 = vpop.f32.mrb[0].mxu0
        %v2083 = vadd.f32 0.0, %v2082
        %v2084 = vpop.f32.mrb[0].mxu0
        %2085 = vmatprep.mubr.f32.mxu0 0.0
        %2086 = vmatmul.mubr.f32.gmra.mrb[0].mxu0 %v1988
        %v2087 = vpop.f32.mrb[0].mxu0
        %v2088 = vadd.f32 0.0, %v2087
        %v2089 = vpop.f32.mrb[0].mxu0
        %2090 = vmatprep.mubr.f32.mxu0 0.0
        %2091 = vmatmul.mubr.f32.gmra.mrb[0].mxu0 %v1991
        %v2092 = vpop.f32.mrb[0].mxu0
        %v2093 = vadd.f32 0.0, %v2092
        %v2094 = vpop.f32.mrb[0].mxu0
        %2095 = vmatprep.mubr.f32.mxu0 0.0
        %2096 = vmatmul.mubr.f32.gmra.mrb[0].mxu0 %v1994
        %v2097 = vpop.f32.mrb[0].mxu0
        %v2098 = vadd.f32 0.0, %v2097
        %v2099 = vpop.f32.mrb[0].mxu0
        %2100 = vdwg.mxu0
        %v2102 = vsel %vm1058, %v1456, 0
        %v2105 = vsel %vm1058, %v1461, 0
        %v2108 = vsel %vm1058, %v1466, 0
        %v2111 = vsel %vm1058, %v1471, 0
        %v2114 = vsel %vm1058, %v1476, 0
        %v2117 = vsel %vm1058, %v1481, 0
        %v2120 = vsel %vm1058, %v1486, 0
        %v2123 = vsel %vm1058, %v1491, 0
        %2125 = vmatprep.subr.mxu0 0.0
        %2126 = vmatpush1.msra.mxu0 %v1494
        %2127 = vmatprep.subr.mxu0 0.0
        %2128 = vmatpush1.msra.mxu0 0.0
        %2129 = vmatprep.subr.mxu0 0.0
        %2130 = vmatpush1.msra.mxu0 0.0
        %2131 = vmatprep.subr.mxu0 0.0
        %2132 = vmatpush1.msra.mxu0 0.0
        %2133 = vmatprep.subr.mxu0 0.0
        %2134 = vmatpush1.msra.mxu0 0.0
        %2135 = vmatprep.subr.mxu0 0.0
        %2136 = vmatpush1.msra.mxu0 0.0
        %2137 = vmatprep.subr.mxu0 0.0
        %2138 = vmatpush1.msra.mxu0 0.0
        %2139 = vmatprep.subr.mxu0 0.0
        %2140 = vmatpush1.msra.mxu0 0.0
        %2141 = vmatprep.subr.mxu0 0.0
        %2142 = vmatpush1.msra.mxu0 0.0
        %2143 = vmatprep.subr.mxu0 0.0
        %2144 = vmatpush1.msra.mxu0 0.0
        %2145 = vmatprep.subr.mxu0 0.0
        %2146 = vmatpush1.msra.mxu0 0.0
        %2147 = vmatprep.subr.mxu0 0.0
        %2148 = vmatpush1.msra.mxu0 0.0
        %2149 = vmatprep.subr.mxu0 0.0
        %2150 = vmatpush1.msra.mxu0 0.0
        %2151 = vmatprep.subr.mxu0 0.0
        %2152 = vmatpush1.msra.mxu0 0.0
        %2153 = vmatprep.subr.mxu0 0.0
        %2154 = vmatpush1.msra.mxu0 0.0
        %2155 = vmatprep.subr.mxu0 0.0
        %2156 = vmatpush1.msra.mxu0 0.0
        %2157 = vmatprep.subr.mxu0 0.0
        %2158 = vmatpush1.msra.mxu0 0.0
        %2159 = vmatprep.subr.mxu0 0.0
        %2160 = vmatpush1.msra.mxu0 0.0
        %2161 = vmatprep.subr.mxu0 0.0
        %2162 = vmatpush1.msra.mxu0 0.0
        %2163 = vmatprep.subr.mxu0 0.0
        %2164 = vmatpush1.msra.mxu0 0.0
        %2165 = vmatprep.subr.mxu0 0.0
        %2166 = vmatpush1.msra.mxu0 0.0
        %2167 = vmatprep.subr.mxu0 0.0
        %2168 = vmatpush1.msra.mxu0 0.0
        %2169 = vmatprep.subr.mxu0 0.0
        %2170 = vmatpush1.msra.mxu0 0.0
        %2171 = vmatprep.subr.mxu0 0.0
        %2172 = vmatpush1.msra.mxu0 0.0
        %2173 = vmatprep.subr.mxu0 0.0
        %2174 = vmatpush1.msra.mxu0 0.0
        %2175 = vmatprep.subr.mxu0 0.0
        %2176 = vmatpush1.msra.mxu0 0.0
        %2177 = vmatprep.subr.mxu0 0.0
        %2178 = vmatpush1.msra.mxu0 0.0
        %2179 = vmatprep.subr.mxu0 0.0
        %2180 = vmatpush1.msra.mxu0 0.0
        %2181 = vmatprep.subr.mxu0 0.0
        %2182 = vmatpush1.msra.mxu0 0.0
        %2183 = vmatprep.subr.mxu0 0.0
        %2184 = vmatpush1.msra.mxu0 0.0
        %2185 = vmatprep.subr.mxu0 0.0
        %2186 = vmatpush1.msra.mxu0 0.0
        %2187 = vmatprep.subr.mxu0 0.0
        %2188 = vmatpush1.msra.mxu0 0.0
        %2189 = vmatprep.mubr.f32.mxu0 0.0
        %2190 = vmatmul.mubr.f32.gmra.mrb[0].mxu0 %v2102
        %v2191 = vpop.f32.mrb[0].mxu0
        %v2192 = vadd.f32 %v2063, %v2191
        %v2193 = vpop.f32.mrb[0].mxu0
        %2194 = vmatprep.mubr.f32.mxu0 0.0
        %2195 = vmatmul.mubr.f32.gmra.mrb[0].mxu0 %v2105
        %v2196 = vpop.f32.mrb[0].mxu0
        %v2197 = vadd.f32 %v2068, %v2196
        %v2198 = vpop.f32.mrb[0].mxu0
        %2199 = vmatprep.mubr.f32.mxu0 0.0
        %2200 = vmatmul.mubr.f32.gmra.mrb[0].mxu0 %v2108
        %v2201 = vpop.f32.mrb[0].mxu0
        %v2202 = vadd.f32 %v2073, %v2201
        %v2203 = vpop.f32.mrb[0].mxu0
        %2204 = vmatprep.mubr.f32.mxu0 0.0
        %2205 = vmatmul.mubr.f32.gmra.mrb[0].mxu0 %v2111
        %v2206 = vpop.f32.mrb[0].mxu0
        %v2207 = vadd.f32 %v2078, %v2206
        %v2208 = vpop.f32.mrb[0].mxu0
        %2209 = vmatprep.mubr.f32.mxu0 0.0
        %2210 = vmatmul.mubr.f32.gmra.mrb[0].mxu0 %v2114
        %v2211 = vpop.f32.mrb[0].mxu0
        %v2212 = vadd.f32 %v2083, %v2211
        %v2213 = vpop.f32.mrb[0].mxu0
        %2214 = vmatprep.mubr.f32.mxu0 0.0
        %2215 = vmatmul.mubr.f32.gmra.mrb[0].mxu0 %v2117
        %v2216 = vpop.f32.mrb[0].mxu0
        %v2217 = vadd.f32 %v2088, %v2216
        %v2218 = vpop.f32.mrb[0].mxu0
        %2219 = vmatprep.mubr.f32.mxu0 0.0
        %2220 = vmatmul.mubr.f32.gmra.mrb[0].mxu0 %v2120
        %v2221 = vpop.f32.mrb[0].mxu0
        %v2222 = vadd.f32 %v2093, %v2221
        %v2223 = vpop.f32.mrb[0].mxu0
        %2224 = vmatprep.mubr.f32.mxu0 0.0
        %2225 = vmatmul.mubr.f32.gmra.mrb[0].mxu0 %v2123
        %v2226 = vpop.f32.mrb[0].mxu0
        %v2227 = vadd.f32 %v2098, %v2226
        %v2228 = vpop.f32.mrb[0].mxu0
        %2229 = vdwg.mxu0
        %2230 = vrot.lane.b32.xlu0 %v767, 112
        %v2231 = vpop.permute.xlu0 %2230
        %2232 = vrot.lane.b32.xlu0 %v768, 112
        %v2233 = vpop.permute.xlu0 %2232
        %2234 = vrot.lane.b32.xlu0 %v769, 112
        %v2235 = vpop.permute.xlu0 %2234
        %2236 = vrot.lane.b32.xlu0 %v770, 112
        %v2237 = vpop.permute.xlu0 %2236
        %2238 = vrot.lane.b32.xlu0 %v771, 112
        %v2239 = vpop.permute.xlu0 %2238
        %2240 = vrot.lane.b32.xlu0 %v772, 112
        %v2241 = vpop.permute.xlu0 %2240
        %2242 = vrot.lane.b32.xlu0 %v773, 112
        %v2243 = vpop.permute.xlu0 %2242
        %2244 = vrot.lane.b32.xlu0 %v774, 112
        %v2245 = vpop.permute.xlu0 %2244
        %2246 = vrot.lane.b32.xlu0 %v909, 112
        %v2247 = vpop.permute.xlu0 %2246
        %2248 = vrot.lane.b32.xlu0 %v914, 112
        %v2249 = vpop.permute.xlu0 %2248
        %2250 = vrot.lane.b32.xlu0 %v919, 112
        %v2251 = vpop.permute.xlu0 %2250
        %2252 = vrot.lane.b32.xlu0 %v924, 112
        %v2253 = vpop.permute.xlu0 %2252
        %2254 = vrot.lane.b32.xlu0 %v929, 112
        %v2255 = vpop.permute.xlu0 %2254
        %2256 = vrot.lane.b32.xlu0 %v934, 112
        %v2257 = vpop.permute.xlu0 %2256
        %2258 = vrot.lane.b32.xlu0 %v939, 112
        %v2259 = vpop.permute.xlu0 %2258
        %2260 = vrot.lane.b32.xlu0 %v944, 112
        %v2261 = vpop.permute.xlu0 %2260
        %v2262 = vsel %vm1058, %v2231, 0
        %v2264 = vsel %vm1058, %v2233, 0
        %v2266 = vsel %vm1058, %v2235, 0
        %v2268 = vsel %vm1058, %v2237, 0
        %v2270 = vsel %vm1058, %v2239, 0
        %v2272 = vsel %vm1058, %v2241, 0
        %v2274 = vsel %vm1058, %v2243, 0
        %v2276 = vsel %vm1058, %v2245, 0
        %v2278 = vsel %vm1058, %v2247, 0
        %v2280 = vsel %vm1058, %v2249, 0
        %v2282 = vsel %vm1058, %v2251, 0
        %v2284 = vsel %vm1058, %v2253, 0
        %v2286 = vsel %vm1058, %v2255, 0
        %v2288 = vsel %vm1058, %v2257, 0
        %v2290 = vsel %vm1058, %v2259, 0
        %v2292 = vsel %vm1058, %v2261, 0
        %2294 = vmatprep.subr.mxu0 0.0
        %2295 = vmatpush1.xpose.msra.mxu0 %v2278
        %2296 = vmatprep.subr.mxu0 0.0
        %2297 = vmatpush1.xpose.msra.mxu0 %v2280
        %2298 = vmatprep.subr.mxu0 0.0
        %2299 = vmatpush1.xpose.msra.mxu0 %v2282
        %2300 = vmatprep.subr.mxu0 0.0
        %2301 = vmatpush1.xpose.msra.mxu0 %v2284
        %2302 = vmatprep.subr.mxu0 0.0
        %2303 = vmatpush1.xpose.msra.mxu0 %v2286
        %2304 = vmatprep.subr.mxu0 0.0
        %2305 = vmatpush1.xpose.msra.mxu0 %v2288
        %2306 = vmatprep.subr.mxu0 0.0
        %2307 = vmatpush1.xpose.msra.mxu0 %v2290
        %2308 = vmatprep.subr.mxu0 0.0
        %2309 = vmatpush1.xpose.msra.mxu0 %v2292
        %2310 = vmatprep.subr.mxu0 0.0
        %2311 = vmatpush1.xpose.msra.mxu0 0.0
        %2312 = vmatprep.subr.mxu0 0.0
        %2313 = vmatpush1.xpose.msra.mxu0 0.0
        %2314 = vmatprep.subr.mxu0 0.0
        %2315 = vmatpush1.xpose.msra.mxu0 0.0
        %2316 = vmatprep.subr.mxu0 0.0
        %2317 = vmatpush1.xpose.msra.mxu0 0.0
        %2318 = vmatprep.subr.mxu0 0.0
        %2319 = vmatpush1.xpose.msra.mxu0 0.0
        %2320 = vmatprep.subr.mxu0 0.0
        %2321 = vmatpush1.xpose.msra.mxu0 0.0
        %2322 = vmatprep.subr.mxu0 0.0
        %2323 = vmatpush1.xpose.msra.mxu0 0.0
        %2324 = vmatprep.subr.mxu0 0.0
        %2325 = vmatpush1.xpose.msra.mxu0 0.0
        %2326 = vmatprep.subr.mxu0 0.0
        %2327 = vmatpush1.xpose.msra.mxu0 0.0
        %2328 = vmatprep.subr.mxu0 0.0
        %2329 = vmatpush1.xpose.msra.mxu0 0.0
        %2330 = vmatprep.subr.mxu0 0.0
        %2331 = vmatpush1.xpose.msra.mxu0 0.0
        %2332 = vmatprep.subr.mxu0 0.0
        %2333 = vmatpush1.xpose.msra.mxu0 0.0
        %2334 = vmatprep.subr.mxu0 0.0
        %2335 = vmatpush1.xpose.msra.mxu0 0.0
        %2336 = vmatprep.subr.mxu0 0.0
        %2337 = vmatpush1.xpose.msra.mxu0 0.0
        %2338 = vmatprep.subr.mxu0 0.0
        %2339 = vmatpush1.xpose.msra.mxu0 0.0
        %2340 = vmatprep.subr.mxu0 0.0
        %2341 = vmatpush1.xpose.msra.mxu0 0.0
        %2342 = vmatprep.subr.mxu0 0.0
        %2343 = vmatpush1.xpose.msra.mxu0 0.0
        %2344 = vmatprep.subr.mxu0 0.0
        %2345 = vmatpush1.xpose.msra.mxu0 0.0
        %2346 = vmatprep.subr.mxu0 0.0
        %2347 = vmatpush1.xpose.msra.mxu0 0.0
        %2348 = vmatprep.subr.mxu0 0.0
        %2349 = vmatpush1.xpose.msra.mxu0 0.0
        %2350 = vmatprep.subr.mxu0 0.0
        %2351 = vmatpush1.xpose.msra.mxu0 0.0
        %2352 = vmatprep.subr.mxu0 0.0
        %2353 = vmatpush1.xpose.msra.mxu0 0.0
        %2354 = vmatprep.subr.mxu0 0.0
        %2355 = vmatpush1.xpose.msra.mxu0 0.0
        %2356 = vmatprep.subr.mxu0 0.0
        %2357 = vmatpush1.xpose.msra.mxu0 0.0
        %2358 = vmatprep.mubr.f32.mxu0 0.0
        %2359 = vmatmul.mubr.f32.gmra.mrb[0].mxu0 %v2262
        %v2360 = vpop.f32.mrb[0].mxu0
        %v2361 = vadd.f32 0.0, %v2360
        %v2362 = vpop.f32.mrb[0].mxu0
        %2363 = vmatprep.mubr.f32.mxu0 0.0
        %2364 = vmatmul.mubr.f32.gmra.mrb[0].mxu0 %v2264
        %v2365 = vpop.f32.mrb[0].mxu0
        %v2366 = vadd.f32 0.0, %v2365
        %v2367 = vpop.f32.mrb[0].mxu0
        %2368 = vmatprep.mubr.f32.mxu0 0.0
        %2369 = vmatmul.mubr.f32.gmra.mrb[0].mxu0 %v2266
        %v2370 = vpop.f32.mrb[0].mxu0
        %v2371 = vadd.f32 0.0, %v2370
        %v2372 = vpop.f32.mrb[0].mxu0
        %2373 = vmatprep.mubr.f32.mxu0 0.0
        %2374 = vmatmul.mubr.f32.gmra.mrb[0].mxu0 %v2268
        %v2375 = vpop.f32.mrb[0].mxu0
        %v2376 = vadd.f32 0.0, %v2375
        %v2377 = vpop.f32.mrb[0].mxu0
        %2378 = vmatprep.mubr.f32.mxu0 0.0
        %2379 = vmatmul.mubr.f32.gmra.mrb[0].mxu0 %v2270
        %v2380 = vpop.f32.mrb[0].mxu0
        %v2381 = vadd.f32 0.0, %v2380
        %v2382 = vpop.f32.mrb[0].mxu0
        %2383 = vmatprep.mubr.f32.mxu0 0.0
        %2384 = vmatmul.mubr.f32.gmra.mrb[0].mxu0 %v2272
        %v2385 = vpop.f32.mrb[0].mxu0
        %v2386 = vadd.f32 0.0, %v2385
        %v2387 = vpop.f32.mrb[0].mxu0
        %2388 = vmatprep.mubr.f32.mxu0 0.0
        %2389 = vmatmul.mubr.f32.gmra.mrb[0].mxu0 %v2274
        %v2390 = vpop.f32.mrb[0].mxu0
        %v2391 = vadd.f32 0.0, %v2390
        %v2392 = vpop.f32.mrb[0].mxu0
        %2393 = vmatprep.mubr.f32.mxu0 0.0
        %2394 = vmatmul.mubr.f32.gmra.mrb[0].mxu0 %v2276
        %v2395 = vpop.f32.mrb[0].mxu0
        %v2396 = vadd.f32 0.0, %v2395
        %v2397 = vpop.f32.mrb[0].mxu0
        %2398 = vdwg.mxu0
        %v2399 = vmul.f32 %v2361, %v1042
        %v2400 = vmul.f32 %v2366, %v1043
        %v2401 = vmul.f32 %v2371, %v1044
        %v2402 = vmul.f32 %v2376, %v1045
        %v2403 = vmul.f32 %v2381, %v1046
        %v2404 = vmul.f32 %v2386, %v1047
        %v2405 = vmul.f32 %v2391, %v1048
        %v2406 = vmul.f32 %v2396, %v1049
        %s2407 = scalar_lea.vmem %s5, 128
        %v2408 = vld [vmem:[%s2407] sm:$0xff]
        %v2409 = vld [vmem:[%s2407 + $0x8] sm:$0xff]
        %v2410 = vld [vmem:[%s2407 + $0x10] sm:$0xff]
        %v2411 = vld [vmem:[%s2407 + $0x18] sm:$0xff]
        %v2412 = vld [vmem:[%s2407 + $0x20] sm:$0xff]
        %v2413 = vld [vmem:[%s2407 + $0x28] sm:$0xff]
        %v2414 = vld [vmem:[%s2407 + $0x30] sm:$0xff]
        %v2415 = vld [vmem:[%s2407 + $0x38] sm:$0xff]
        %v2416 = vadd.f32 %v2399, %v2408
        %v2417 = vadd.f32 %v2400, %v2409
        %v2418 = vadd.f32 %v2401, %v2410
        %v2419 = vadd.f32 %v2402, %v2411
        %v2420 = vadd.f32 %v2403, %v2412
        %v2421 = vadd.f32 %v2404, %v2413
        %v2422 = vadd.f32 %v2405, %v2414
        %v2423 = vadd.f32 %v2406, %v2415
        %v2424 = vadd.f32 %v2416, %v1050
        %v2425 = vadd.f32 %v2417, %v1051
        %v2426 = vadd.f32 %v2418, %v1052
        %v2427 = vadd.f32 %v2419, %v1053
        %v2428 = vadd.f32 %v2420, %v1054
        %v2429 = vadd.f32 %v2421, %v1055
        %v2430 = vadd.f32 %v2422, %v1056
        %v2431 = vadd.f32 %v2423, %v1057
        %v2432 = vsel %vm1244, %v2424, -inf
        %2433 = vmax.xlane.f32.xlu0 %v2432
        %v2434 = vpop.xlane.xlu0 %2433
        %v2435 = vsel %vm1244, %v2425, -inf
        %2436 = vmax.xlane.f32.xlu0 %v2435
        %v2437 = vpop.xlane.xlu0 %2436
        %v2438 = vsel %vm1244, %v2426, -inf
        %2439 = vmax.xlane.f32.xlu0 %v2438
        %v2440 = vpop.xlane.xlu0 %2439
        %v2441 = vsel %vm1244, %v2427, -inf
        %2442 = vmax.xlane.f32.xlu0 %v2441
        %v2443 = vpop.xlane.xlu0 %2442
        %v2444 = vsel %vm1244, %v2428, -inf
        %2445 = vmax.xlane.f32.xlu0 %v2444
        %v2446 = vpop.xlane.xlu0 %2445
        %v2447 = vsel %vm1244, %v2429, -inf
        %2448 = vmax.xlane.f32.xlu0 %v2447
        %v2449 = vpop.xlane.xlu0 %2448
        %v2450 = vsel %vm1244, %v2430, -inf
        %2451 = vmax.xlane.f32.xlu0 %v2450
        %v2452 = vpop.xlane.xlu0 %2451
        %v2453 = vsel %vm1244, %v2431, -inf
        %2454 = vmax.xlane.f32.xlu0 %v2453
        %v2455 = vpop.xlane.xlu0 %2454
        %v2456 = vsub.f32 %v2424, %v2434
        %v2457 = vsub.f32 %v2425, %v2437
        %v2458 = vsub.f32 %v2426, %v2440
        %v2459 = vsub.f32 %v2427, %v2443
        %v2460 = vsub.f32 %v2428, %v2446
        %v2461 = vsub.f32 %v2429, %v2449
        %v2462 = vsub.f32 %v2430, %v2452
        %v2463 = vsub.f32 %v2431, %v2455
        %v2464 = vmul.f32 %v2456, 1.442695
        %v2465 = vpow.pop %v2464
        %v2466 = vmul.f32 %v2457, 1.442695
        %v2467 = vpow.pop %v2466
        %v2468 = vmul.f32 %v2458, 1.442695
        %v2469 = vpow.pop %v2468
        %v2470 = vmul.f32 %v2459, 1.442695
        %v2471 = vpow.pop %v2470
        %v2472 = vmul.f32 %v2460, 1.442695
        %v2473 = vpow.pop %v2472
        %v2474 = vmul.f32 %v2461, 1.442695
        %v2475 = vpow.pop %v2474
        %v2476 = vmul.f32 %v2462, 1.442695
        %v2477 = vpow.pop %v2476
        %v2478 = vmul.f32 %v2463, 1.442695
        %v2479 = vpow.pop %v2478
        %v2480 = vsel %vm1244, %v2465, 0.0
        %2481 = vadd.xlane.f32.xlu0 %v2480
        %v2482 = vpop.xlane.xlu0 %2481
        %v2483 = vsel %vm1244, %v2467, 0.0
        %2484 = vadd.xlane.f32.xlu0 %v2483
        %v2485 = vpop.xlane.xlu0 %2484
        %v2486 = vsel %vm1244, %v2469, 0.0
        %2487 = vadd.xlane.f32.xlu0 %v2486
        %v2488 = vpop.xlane.xlu0 %2487
        %v2489 = vsel %vm1244, %v2471, 0.0
        %2490 = vadd.xlane.f32.xlu0 %v2489
        %v2491 = vpop.xlane.xlu0 %2490
        %v2492 = vsel %vm1244, %v2473, 0.0
        %2493 = vadd.xlane.f32.xlu0 %v2492
        %v2494 = vpop.xlane.xlu0 %2493
        %v2495 = vsel %vm1244, %v2475, 0.0
        %2496 = vadd.xlane.f32.xlu0 %v2495
        %v2497 = vpop.xlane.xlu0 %2496
        %v2498 = vsel %vm1244, %v2477, 0.0
        %2499 = vadd.xlane.f32.xlu0 %v2498
        %v2500 = vpop.xlane.xlu0 %2499
        %v2501 = vsel %vm1244, %v2479, 0.0
        %2502 = vadd.xlane.f32.xlu0 %v2501
        %v2503 = vpop.xlane.xlu0 %2502
        %v2504 = vrcp.pop %v2482
        %v2505 = vrcp.pop %v2485
        %v2506 = vrcp.pop %v2488
        %v2507 = vrcp.pop %v2491
        %v2508 = vrcp.pop %v2494
        %v2509 = vrcp.pop %v2497
        %v2510 = vrcp.pop %v2500
        %v2511 = vrcp.pop %v2503
        %v2512 = vmul.f32 %v2465, %v2504
        %v2513 = vmul.f32 %v2467, %v2505
        %v2514 = vmul.f32 %v2469, %v2506
        %v2515 = vmul.f32 %v2471, %v2507
        %v2516 = vmul.f32 %v2473, %v2508
        %v2517 = vmul.f32 %v2475, %v2509
        %v2518 = vmul.f32 %v2477, %v2510
        %v2519 = vmul.f32 %v2479, %v2511
        %2520 = vst.msk [vmem:[%s495 + $0x8] sm:$0xff] %vm1244, %v2512
        %2521 = vst.msk [vmem:[%s495 + $0x18] sm:$0xff] %vm1244, %v2513
        %2522 = vst.msk [vmem:[%s495 + $0x28] sm:$0xff] %vm1244, %v2514
        %2523 = vst.msk [vmem:[%s495 + $0x38] sm:$0xff] %vm1244, %v2515
        %2524 = vst.msk [vmem:[%s495 + $0x48] sm:$0xff] %vm1244, %v2516
        %2525 = vst.msk [vmem:[%s495 + $0x58] sm:$0xff] %vm1244, %v2517
        %2526 = vst.msk [vmem:[%s495 + $0x68] sm:$0xff] %vm1244, %v2518
        %2527 = vst.msk [vmem:[%s495 + $0x78] sm:$0xff] %vm1244, %v2519
        %2528 = vrot.lane.b32.xlu0 %v909, 80
        %v2529 = vpop.permute.xlu0 %2528
        %2530 = vrot.lane.b32.xlu0 %v914, 80
        %v2531 = vpop.permute.xlu0 %2530
        %2532 = vrot.lane.b32.xlu0 %v919, 80
        %v2533 = vpop.permute.xlu0 %2532
        %2534 = vrot.lane.b32.xlu0 %v924, 80
        %v2535 = vpop.permute.xlu0 %2534
        %2536 = vrot.lane.b32.xlu0 %v929, 80
        %v2537 = vpop.permute.xlu0 %2536
        %2538 = vrot.lane.b32.xlu0 %v934, 80
        %v2539 = vpop.permute.xlu0 %2538
        %2540 = vrot.lane.b32.xlu0 %v939, 80
        %v2541 = vpop.permute.xlu0 %2540
        %2542 = vrot.lane.b32.xlu0 %v944, 80
        %v2543 = vpop.permute.xlu0 %2542
        %v2553 = vsel %vm1244, %v2512, 0
        %v2556 = vsel %vm1244, %v2513, 0
        %v2559 = vsel %vm1244, %v2514, 0
        %v2562 = vsel %vm1244, %v2515, 0
        %v2565 = vsel %vm1244, %v2516, 0
        %v2568 = vsel %vm1244, %v2517, 0
        %v2571 = vsel %vm1244, %v2518, 0
        %v2574 = vsel %vm1244, %v2519, 0
        %2576 = vmatprep.subr.mxu0 0.0
        %2577 = vmatpush1.msra.mxu0 %v2529
        %2578 = vmatprep.subr.mxu0 0.0
        %2579 = vmatpush1.msra.mxu0 %v2531
        %2580 = vmatprep.subr.mxu0 0.0
        %2581 = vmatpush1.msra.mxu0 %v2533
        %2582 = vmatprep.subr.mxu0 0.0
        %2583 = vmatpush1.msra.mxu0 %v2535
        %2584 = vmatprep.subr.mxu0 0.0
        %2585 = vmatpush1.msra.mxu0 %v2537
        %2586 = vmatprep.subr.mxu0 0.0
        %2587 = vmatpush1.msra.mxu0 %v2539
        %2588 = vmatprep.subr.mxu0 0.0
        %2589 = vmatpush1.msra.mxu0 %v2541
        %2590 = vmatprep.subr.mxu0 0.0
        %2591 = vmatpush1.msra.mxu0 %v2543
        %2592 = vmatprep.subr.mxu0 0.0
        %2593 = vmatpush1.msra.mxu0 0.0
        %2594 = vmatprep.subr.mxu0 0.0
        %2595 = vmatpush1.msra.mxu0 0.0
        %2596 = vmatprep.subr.mxu0 0.0
        %2597 = vmatpush1.msra.mxu0 0.0
        %2598 = vmatprep.subr.mxu0 0.0
        %2599 = vmatpush1.msra.mxu0 0.0
        %2600 = vmatprep.subr.mxu0 0.0
        %2601 = vmatpush1.msra.mxu0 0.0
        %2602 = vmatprep.subr.mxu0 0.0
        %2603 = vmatpush1.msra.mxu0 0.0
        %2604 = vmatprep.subr.mxu0 0.0
        %2605 = vmatpush1.msra.mxu0 0.0
        %2606 = vmatprep.subr.mxu0 0.0
        %2607 = vmatpush1.msra.mxu0 0.0
        %2608 = vmatprep.subr.mxu0 0.0
        %2609 = vmatpush1.msra.mxu0 0.0
        %2610 = vmatprep.subr.mxu0 0.0
        %2611 = vmatpush1.msra.mxu0 0.0
        %2612 = vmatprep.subr.mxu0 0.0
        %2613 = vmatpush1.msra.mxu0 0.0
        %2614 = vmatprep.subr.mxu0 0.0
        %2615 = vmatpush1.msra.mxu0 0.0
        %2616 = vmatprep.subr.mxu0 0.0
        %2617 = vmatpush1.msra.mxu0 0.0
        %2618 = vmatprep.subr.mxu0 0.0
        %2619 = vmatpush1.msra.mxu0 0.0
        %2620 = vmatprep.subr.mxu0 0.0
        %2621 = vmatpush1.msra.mxu0 0.0
        %2622 = vmatprep.subr.mxu0 0.0
        %2623 = vmatpush1.msra.mxu0 0.0
        %2624 = vmatprep.subr.mxu0 0.0
        %2625 = vmatpush1.msra.mxu0 0.0
        %2626 = vmatprep.subr.mxu0 0.0
        %2627 = vmatpush1.msra.mxu0 0.0
        %2628 = vmatprep.subr.mxu0 0.0
        %2629 = vmatpush1.msra.mxu0 0.0
        %2630 = vmatprep.subr.mxu0 0.0
        %2631 = vmatpush1.msra.mxu0 0.0
        %2632 = vmatprep.subr.mxu0 0.0
        %2633 = vmatpush1.msra.mxu0 0.0
        %2634 = vmatprep.subr.mxu0 0.0
        %2635 = vmatpush1.msra.mxu0 0.0
        %2636 = vmatprep.subr.mxu0 0.0
        %2637 = vmatpush1.msra.mxu0 0.0
        %2638 = vmatprep.subr.mxu0 0.0
        %2639 = vmatpush1.msra.mxu0 0.0
        %2640 = vmatprep.mubr.f32.mxu0 0.0
        %2641 = vmatmul.mubr.f32.gmra.mrb[0].mxu0 %v2553
        %v2642 = vpop.f32.mrb[0].mxu0
        %v2643 = vadd.f32 0.0, %v2642
        %v2644 = vpop.f32.mrb[0].mxu0
        %2645 = vmatprep.mubr.f32.mxu0 0.0
        %2646 = vmatmul.mubr.f32.gmra.mrb[0].mxu0 %v2556
        %v2647 = vpop.f32.mrb[0].mxu0
        %v2648 = vadd.f32 0.0, %v2647
        %v2649 = vpop.f32.mrb[0].mxu0
        %2650 = vmatprep.mubr.f32.mxu0 0.0
        %2651 = vmatmul.mubr.f32.gmra.mrb[0].mxu0 %v2559
        %v2652 = vpop.f32.mrb[0].mxu0
        %v2653 = vadd.f32 0.0, %v2652
        %v2654 = vpop.f32.mrb[0].mxu0
        %2655 = vmatprep.mubr.f32.mxu0 0.0
        %2656 = vmatmul.mubr.f32.gmra.mrb[0].mxu0 %v2562
        %v2657 = vpop.f32.mrb[0].mxu0
        %v2658 = vadd.f32 0.0, %v2657
        %v2659 = vpop.f32.mrb[0].mxu0
        %2660 = vmatprep.mubr.f32.mxu0 0.0
        %2661 = vmatmul.mubr.f32.gmra.mrb[0].mxu0 %v2565
        %v2662 = vpop.f32.mrb[0].mxu0
        %v2663 = vadd.f32 0.0, %v2662
        %v2664 = vpop.f32.mrb[0].mxu0
        %2665 = vmatprep.mubr.f32.mxu0 0.0
        %2666 = vmatmul.mubr.f32.gmra.mrb[0].mxu0 %v2568
        %v2667 = vpop.f32.mrb[0].mxu0
        %v2668 = vadd.f32 0.0, %v2667
        %v2669 = vpop.f32.mrb[0].mxu0
        %2670 = vmatprep.mubr.f32.mxu0 0.0
        %2671 = vmatmul.mubr.f32.gmra.mrb[0].mxu0 %v2571
        %v2672 = vpop.f32.mrb[0].mxu0
        %v2673 = vadd.f32 0.0, %v2672
        %v2674 = vpop.f32.mrb[0].mxu0
        %2675 = vmatprep.mubr.f32.mxu0 0.0
        %2676 = vmatmul.mubr.f32.gmra.mrb[0].mxu0 %v2574
        %v2677 = vpop.f32.mrb[0].mxu0
        %v2678 = vadd.f32 0.0, %v2677
        %v2679 = vpop.f32.mrb[0].mxu0
        %2680 = vdwg.mxu0
        %v2681 = vld [vmem:[%s10 + $0x10] sm:$0xff]
        %v2683 = vsel %vm1058, %v2643, 0
        %v2686 = vsel %vm1058, %v2648, 0
        %v2689 = vsel %vm1058, %v2653, 0
        %v2692 = vsel %vm1058, %v2658, 0
        %v2695 = vsel %vm1058, %v2663, 0
        %v2698 = vsel %vm1058, %v2668, 0
        %v2701 = vsel %vm1058, %v2673, 0
        %v2704 = vsel %vm1058, %v2678, 0
        %2706 = vmatprep.subr.mxu0 0.0
        %2707 = vmatpush1.msra.mxu0 %v2681
        %2708 = vmatprep.subr.mxu0 0.0
        %2709 = vmatpush1.msra.mxu0 0.0
        %2710 = vmatprep.subr.mxu0 0.0
        %2711 = vmatpush1.msra.mxu0 0.0
        %2712 = vmatprep.subr.mxu0 0.0
        %2713 = vmatpush1.msra.mxu0 0.0
        %2714 = vmatprep.subr.mxu0 0.0
        %2715 = vmatpush1.msra.mxu0 0.0
        %2716 = vmatprep.subr.mxu0 0.0
        %2717 = vmatpush1.msra.mxu0 0.0
        %2718 = vmatprep.subr.mxu0 0.0
        %2719 = vmatpush1.msra.mxu0 0.0
        %2720 = vmatprep.subr.mxu0 0.0
        %2721 = vmatpush1.msra.mxu0 0.0
        %2722 = vmatprep.subr.mxu0 0.0
        %2723 = vmatpush1.msra.mxu0 0.0
        %2724 = vmatprep.subr.mxu0 0.0
        %2725 = vmatpush1.msra.mxu0 0.0
        %2726 = vmatprep.subr.mxu0 0.0
        %2727 = vmatpush1.msra.mxu0 0.0
        %2728 = vmatprep.subr.mxu0 0.0
        %2729 = vmatpush1.msra.mxu0 0.0
        %2730 = vmatprep.subr.mxu0 0.0
        %2731 = vmatpush1.msra.mxu0 0.0
        %2732 = vmatprep.subr.mxu0 0.0
        %2733 = vmatpush1.msra.mxu0 0.0
        %2734 = vmatprep.subr.mxu0 0.0
        %2735 = vmatpush1.msra.mxu0 0.0
        %2736 = vmatprep.subr.mxu0 0.0
        %2737 = vmatpush1.msra.mxu0 0.0
        %2738 = vmatprep.subr.mxu0 0.0
        %2739 = vmatpush1.msra.mxu0 0.0
        %2740 = vmatprep.subr.mxu0 0.0
        %2741 = vmatpush1.msra.mxu0 0.0
        %2742 = vmatprep.subr.mxu0 0.0
        %2743 = vmatpush1.msra.mxu0 0.0
        %2744 = vmatprep.subr.mxu0 0.0
        %2745 = vmatpush1.msra.mxu0 0.0
        %2746 = vmatprep.subr.mxu0 0.0
        %2747 = vmatpush1.msra.mxu0 0.0
        %2748 = vmatprep.subr.mxu0 0.0
        %2749 = vmatpush1.msra.mxu0 0.0
        %2750 = vmatprep.subr.mxu0 0.0
        %2751 = vmatpush1.msra.mxu0 0.0
        %2752 = vmatprep.subr.mxu0 0.0
        %2753 = vmatpush1.msra.mxu0 0.0
        %2754 = vmatprep.subr.mxu0 0.0
        %2755 = vmatpush1.msra.mxu0 0.0
        %2756 = vmatprep.subr.mxu0 0.0
        %2757 = vmatpush1.msra.mxu0 0.0
        %2758 = vmatprep.subr.mxu0 0.0
        %2759 = vmatpush1.msra.mxu0 0.0
        %2760 = vmatprep.subr.mxu0 0.0
        %2761 = vmatpush1.msra.mxu0 0.0
        %2762 = vmatprep.subr.mxu0 0.0
        %2763 = vmatpush1.msra.mxu0 0.0
        %2764 = vmatprep.subr.mxu0 0.0
        %2765 = vmatpush1.msra.mxu0 0.0
        %2766 = vmatprep.subr.mxu0 0.0
        %2767 = vmatpush1.msra.mxu0 0.0
        %2768 = vmatprep.subr.mxu0 0.0
        %2769 = vmatpush1.msra.mxu0 0.0
        %2770 = vmatprep.mubr.f32.mxu0 0.0
        %2771 = vmatmul.mubr.f32.gmra.mrb[0].mxu0 %v2683
        %v2772 = vpop.f32.mrb[0].mxu0
        %v2773 = vadd.f32 0.0, %v2772
        %v2774 = vpop.f32.mrb[0].mxu0
        %2775 = vmatprep.mubr.f32.mxu0 0.0
        %2776 = vmatmul.mubr.f32.gmra.mrb[0].mxu0 %v2686
        %v2777 = vpop.f32.mrb[0].mxu0
        %v2778 = vadd.f32 0.0, %v2777
        %v2779 = vpop.f32.mrb[0].mxu0
        %2780 = vmatprep.mubr.f32.mxu0 0.0
        %2781 = vmatmul.mubr.f32.gmra.mrb[0].mxu0 %v2689
        %v2782 = vpop.f32.mrb[0].mxu0
        %v2783 = vadd.f32 0.0, %v2782
        %v2784 = vpop.f32.mrb[0].mxu0
        %2785 = vmatprep.mubr.f32.mxu0 0.0
        %2786 = vmatmul.mubr.f32.gmra.mrb[0].mxu0 %v2692
        %v2787 = vpop.f32.mrb[0].mxu0
        %v2788 = vadd.f32 0.0, %v2787
        %v2789 = vpop.f32.mrb[0].mxu0
        %2790 = vmatprep.mubr.f32.mxu0 0.0
        %2791 = vmatmul.mubr.f32.gmra.mrb[0].mxu0 %v2695
        %v2792 = vpop.f32.mrb[0].mxu0
        %v2793 = vadd.f32 0.0, %v2792
        %v2794 = vpop.f32.mrb[0].mxu0
        %2795 = vmatprep.mubr.f32.mxu0 0.0
        %2796 = vmatmul.mubr.f32.gmra.mrb[0].mxu0 %v2698
        %v2797 = vpop.f32.mrb[0].mxu0
        %v2798 = vadd.f32 0.0, %v2797
        %v2799 = vpop.f32.mrb[0].mxu0
        %2800 = vmatprep.mubr.f32.mxu0 0.0
        %2801 = vmatmul.mubr.f32.gmra.mrb[0].mxu0 %v2701
        %v2802 = vpop.f32.mrb[0].mxu0
        %v2803 = vadd.f32 0.0, %v2802
        %v2804 = vpop.f32.mrb[0].mxu0
        %2805 = vmatprep.mubr.f32.mxu0 0.0
        %2806 = vmatmul.mubr.f32.gmra.mrb[0].mxu0 %v2704
        %v2807 = vpop.f32.mrb[0].mxu0
        %v2808 = vadd.f32 0.0, %v2807
        %v2809 = vpop.f32.mrb[0].mxu0
        %2810 = vdwg.mxu0
        %v2811 = vadd.f32 %v2192, %v2773
        %v2812 = vadd.f32 %v2197, %v2778
        %v2813 = vadd.f32 %v2202, %v2783
        %v2814 = vadd.f32 %v2207, %v2788
        %v2815 = vadd.f32 %v2212, %v2793
        %v2816 = vadd.f32 %v2217, %v2798
        %v2817 = vadd.f32 %v2222, %v2803
        %v2818 = vadd.f32 %v2227, %v2808
        %2819 = vrot.lane.b32.xlu0 %v767, 104
        %v2820 = vpop.permute.xlu0 %2819
        %2821 = vrot.lane.b32.xlu0 %v768, 104
        %v2822 = vpop.permute.xlu0 %2821
        %2823 = vrot.lane.b32.xlu0 %v769, 104
        %v2824 = vpop.permute.xlu0 %2823
        %2825 = vrot.lane.b32.xlu0 %v770, 104
        %v2826 = vpop.permute.xlu0 %2825
        %2827 = vrot.lane.b32.xlu0 %v771, 104
        %v2828 = vpop.permute.xlu0 %2827
        %2829 = vrot.lane.b32.xlu0 %v772, 104
        %v2830 = vpop.permute.xlu0 %2829
        %2831 = vrot.lane.b32.xlu0 %v773, 104
        %v2832 = vpop.permute.xlu0 %2831
        %2833 = vrot.lane.b32.xlu0 %v774, 104
        %v2834 = vpop.permute.xlu0 %2833
        %2835 = vrot.lane.b32.xlu0 %v909, 104
        %v2836 = vpop.permute.xlu0 %2835
        %2837 = vrot.lane.b32.xlu0 %v914, 104
        %v2838 = vpop.permute.xlu0 %2837
        %2839 = vrot.lane.b32.xlu0 %v919, 104
        %v2840 = vpop.permute.xlu0 %2839
        %2841 = vrot.lane.b32.xlu0 %v924, 104
        %v2842 = vpop.permute.xlu0 %2841
        %2843 = vrot.lane.b32.xlu0 %v929, 104
        %v2844 = vpop.permute.xlu0 %2843
        %2845 = vrot.lane.b32.xlu0 %v934, 104
        %v2846 = vpop.permute.xlu0 %2845
        %2847 = vrot.lane.b32.xlu0 %v939, 104
        %v2848 = vpop.permute.xlu0 %2847
        %2849 = vrot.lane.b32.xlu0 %v944, 104
        %v2850 = vpop.permute.xlu0 %2849
        %v2851 = vsel %vm1058, %v2820, 0
        %v2853 = vsel %vm1058, %v2822, 0
        %v2855 = vsel %vm1058, %v2824, 0
        %v2857 = vsel %vm1058, %v2826, 0
        %v2859 = vsel %vm1058, %v2828, 0
        %v2861 = vsel %vm1058, %v2830, 0
        %v2863 = vsel %vm1058, %v2832, 0
        %v2865 = vsel %vm1058, %v2834, 0
        %v2867 = vsel %vm1058, %v2836, 0
        %v2869 = vsel %vm1058, %v2838, 0
        %v2871 = vsel %vm1058, %v2840, 0
        %v2873 = vsel %vm1058, %v2842, 0
        %v2875 = vsel %vm1058, %v2844, 0
        %v2877 = vsel %vm1058, %v2846, 0
        %v2879 = vsel %vm1058, %v2848, 0
        %v2881 = vsel %vm1058, %v2850, 0
        %2883 = vmatprep.subr.mxu0 0.0
        %2884 = vmatpush1.xpose.msra.mxu0 %v2867
        %2885 = vmatprep.subr.mxu0 0.0
        %2886 = vmatpush1.xpose.msra.mxu0 %v2869
        %2887 = vmatprep.subr.mxu0 0.0
        %2888 = vmatpush1.xpose.msra.mxu0 %v2871
        %2889 = vmatprep.subr.mxu0 0.0
        %2890 = vmatpush1.xpose.msra.mxu0 %v2873
        %2891 = vmatprep.subr.mxu0 0.0
        %2892 = vmatpush1.xpose.msra.mxu0 %v2875
        %2893 = vmatprep.subr.mxu0 0.0
        %2894 = vmatpush1.xpose.msra.mxu0 %v2877
        %2895 = vmatprep.subr.mxu0 0.0
        %2896 = vmatpush1.xpose.msra.mxu0 %v2879
        %2897 = vmatprep.subr.mxu0 0.0
        %2898 = vmatpush1.xpose.msra.mxu0 %v2881
        %2899 = vmatprep.subr.mxu0 0.0
        %2900 = vmatpush1.xpose.msra.mxu0 0.0
        %2901 = vmatprep.subr.mxu0 0.0
        %2902 = vmatpush1.xpose.msra.mxu0 0.0
        %2903 = vmatprep.subr.mxu0 0.0
        %2904 = vmatpush1.xpose.msra.mxu0 0.0
        %2905 = vmatprep.subr.mxu0 0.0
        %2906 = vmatpush1.xpose.msra.mxu0 0.0
        %2907 = vmatprep.subr.mxu0 0.0
        %2908 = vmatpush1.xpose.msra.mxu0 0.0
        %2909 = vmatprep.subr.mxu0 0.0
        %2910 = vmatpush1.xpose.msra.mxu0 0.0
        %2911 = vmatprep.subr.mxu0 0.0
        %2912 = vmatpush1.xpose.msra.mxu0 0.0
        %2913 = vmatprep.subr.mxu0 0.0
        %2914 = vmatpush1.xpose.msra.mxu0 0.0
        %2915 = vmatprep.subr.mxu0 0.0
        %2916 = vmatpush1.xpose.msra.mxu0 0.0
        %2917 = vmatprep.subr.mxu0 0.0
        %2918 = vmatpush1.xpose.msra.mxu0 0.0
        %2919 = vmatprep.subr.mxu0 0.0
        %2920 = vmatpush1.xpose.msra.mxu0 0.0
        %2921 = vmatprep.subr.mxu0 0.0
        %2922 = vmatpush1.xpose.msra.mxu0 0.0
        %2923 = vmatprep.subr.mxu0 0.0
        %2924 = vmatpush1.xpose.msra.mxu0 0.0
        %2925 = vmatprep.subr.mxu0 0.0
        %2926 = vmatpush1.xpose.msra.mxu0 0.0
        %2927 = vmatprep.subr.mxu0 0.0
        %2928 = vmatpush1.xpose.msra.mxu0 0.0
        %2929 = vmatprep.subr.mxu0 0.0
        %2930 = vmatpush1.xpose.msra.mxu0 0.0
        %2931 = vmatprep.subr.mxu0 0.0
        %2932 = vmatpush1.xpose.msra.mxu0 0.0
        %2933 = vmatprep.subr.mxu0 0.0
        %2934 = vmatpush1.xpose.msra.mxu0 0.0
        %2935 = vmatprep.subr.mxu0 0.0
        %2936 = vmatpush1.xpose.msra.mxu0 0.0
        %2937 = vmatprep.subr.mxu0 0.0
        %2938 = vmatpush1.xpose.msra.mxu0 0.0
        %2939 = vmatprep.subr.mxu0 0.0
        %2940 = vmatpush1.xpose.msra.mxu0 0.0
        %2941 = vmatprep.subr.mxu0 0.0
        %2942 = vmatpush1.xpose.msra.mxu0 0.0
        %2943 = vmatprep.subr.mxu0 0.0
        %2944 = vmatpush1.xpose.msra.mxu0 0.0
        %2945 = vmatprep.subr.mxu0 0.0
        %2946 = vmatpush1.xpose.msra.mxu0 0.0
        %2947 = vmatprep.mubr.f32.mxu0 0.0
        %2948 = vmatmul.mubr.f32.gmra.mrb[0].mxu0 %v2851
        %v2949 = vpop.f32.mrb[0].mxu0
        %v2950 = vadd.f32 0.0, %v2949
        %v2951 = vpop.f32.mrb[0].mxu0
        %2952 = vmatprep.mubr.f32.mxu0 0.0
        %2953 = vmatmul.mubr.f32.gmra.mrb[0].mxu0 %v2853
        %v2954 = vpop.f32.mrb[0].mxu0
        %v2955 = vadd.f32 0.0, %v2954
        %v2956 = vpop.f32.mrb[0].mxu0
        %2957 = vmatprep.mubr.f32.mxu0 0.0
        %2958 = vmatmul.mubr.f32.gmra.mrb[0].mxu0 %v2855
        %v2959 = vpop.f32.mrb[0].mxu0
        %v2960 = vadd.f32 0.0, %v2959
        %v2961 = vpop.f32.mrb[0].mxu0
        %2962 = vmatprep.mubr.f32.mxu0 0.0
        %2963 = vmatmul.mubr.f32.gmra.mrb[0].mxu0 %v2857
        %v2964 = vpop.f32.mrb[0].mxu0
        %v2965 = vadd.f32 0.0, %v2964
        %v2966 = vpop.f32.mrb[0].mxu0
        %2967 = vmatprep.mubr.f32.mxu0 0.0
        %2968 = vmatmul.mubr.f32.gmra.mrb[0].mxu0 %v2859
        %v2969 = vpop.f32.mrb[0].mxu0
        %v2970 = vadd.f32 0.0, %v2969
        %v2971 = vpop.f32.mrb[0].mxu0
        %2972 = vmatprep.mubr.f32.mxu0 0.0
        %2973 = vmatmul.mubr.f32.gmra.mrb[0].mxu0 %v2861
        %v2974 = vpop.f32.mrb[0].mxu0
        %v2975 = vadd.f32 0.0, %v2974
        %v2976 = vpop.f32.mrb[0].mxu0
        %2977 = vmatprep.mubr.f32.mxu0 0.0
        %2978 = vmatmul.mubr.f32.gmra.mrb[0].mxu0 %v2863
        %v2979 = vpop.f32.mrb[0].mxu0
        %v2980 = vadd.f32 0.0, %v2979
        %v2981 = vpop.f32.mrb[0].mxu0
        %2982 = vmatprep.mubr.f32.mxu0 0.0
        %2983 = vmatmul.mubr.f32.gmra.mrb[0].mxu0 %v2865
        %v2984 = vpop.f32.mrb[0].mxu0
        %v2985 = vadd.f32 0.0, %v2984
        %v2986 = vpop.f32.mrb[0].mxu0
        %2987 = vdwg.mxu0
        %v2988 = vmul.f32 %v2950, %v1042
        %v2989 = vmul.f32 %v2955, %v1043
        %v2990 = vmul.f32 %v2960, %v1044
        %v2991 = vmul.f32 %v2965, %v1045
        %v2992 = vmul.f32 %v2970, %v1046
        %v2993 = vmul.f32 %v2975, %v1047
        %v2994 = vmul.f32 %v2980, %v1048
        %v2995 = vmul.f32 %v2985, %v1049
        %s2996 = scalar_lea.vmem %s5, 192
        %v2997 = vld [vmem:[%s2996] sm:$0xff]
        %v2998 = vld [vmem:[%s2996 + $0x8] sm:$0xff]
        %v2999 = vld [vmem:[%s2996 + $0x10] sm:$0xff]
        %v3000 = vld [vmem:[%s2996 + $0x18] sm:$0xff]
        %v3001 = vld [vmem:[%s2996 + $0x20] sm:$0xff]
        %v3002 = vld [vmem:[%s2996 + $0x28] sm:$0xff]
        %v3003 = vld [vmem:[%s2996 + $0x30] sm:$0xff]
        %v3004 = vld [vmem:[%s2996 + $0x38] sm:$0xff]
        %v3005 = vadd.f32 %v2988, %v2997
        %v3006 = vadd.f32 %v2989, %v2998
        %v3007 = vadd.f32 %v2990, %v2999
        %v3008 = vadd.f32 %v2991, %v3000
        %v3009 = vadd.f32 %v2992, %v3001
        %v3010 = vadd.f32 %v2993, %v3002
        %v3011 = vadd.f32 %v2994, %v3003
        %v3012 = vadd.f32 %v2995, %v3004
        %v3013 = vadd.f32 %v3005, %v1050
        %v3014 = vadd.f32 %v3006, %v1051
        %v3015 = vadd.f32 %v3007, %v1052
        %v3016 = vadd.f32 %v3008, %v1053
        %v3017 = vadd.f32 %v3009, %v1054
        %v3018 = vadd.f32 %v3010, %v1055
        %v3019 = vadd.f32 %v3011, %v1056
        %v3020 = vadd.f32 %v3012, %v1057
        %v3021 = vsel %vm1244, %v3013, -inf
        %3022 = vmax.xlane.f32.xlu0 %v3021
        %v3023 = vpop.xlane.xlu0 %3022
        %v3024 = vsel %vm1244, %v3014, -inf
        %3025 = vmax.xlane.f32.xlu0 %v3024
        %v3026 = vpop.xlane.xlu0 %3025
        %v3027 = vsel %vm1244, %v3015, -inf
        %3028 = vmax.xlane.f32.xlu0 %v3027
        %v3029 = vpop.xlane.xlu0 %3028
        %v3030 = vsel %vm1244, %v3016, -inf
        %3031 = vmax.xlane.f32.xlu0 %v3030
        %v3032 = vpop.xlane.xlu0 %3031
        %v3033 = vsel %vm1244, %v3017, -inf
        %3034 = vmax.xlane.f32.xlu0 %v3033
        %v3035 = vpop.xlane.xlu0 %3034
        %v3036 = vsel %vm1244, %v3018, -inf
        %3037 = vmax.xlane.f32.xlu0 %v3036
        %v3038 = vpop.xlane.xlu0 %3037
        %v3039 = vsel %vm1244, %v3019, -inf
        %3040 = vmax.xlane.f32.xlu0 %v3039
        %v3041 = vpop.xlane.xlu0 %3040
        %v3042 = vsel %vm1244, %v3020, -inf
        %3043 = vmax.xlane.f32.xlu0 %v3042
        %v3044 = vpop.xlane.xlu0 %3043
        %v3045 = vsub.f32 %v3013, %v3023
        %v3046 = vsub.f32 %v3014, %v3026
        %v3047 = vsub.f32 %v3015, %v3029
        %v3048 = vsub.f32 %v3016, %v3032
        %v3049 = vsub.f32 %v3017, %v3035
        %v3050 = vsub.f32 %v3018, %v3038
        %v3051 = vsub.f32 %v3019, %v3041
        %v3052 = vsub.f32 %v3020, %v3044
        %v3053 = vmul.f32 %v3045, 1.442695
        %v3054 = vpow.pop %v3053
        %v3055 = vmul.f32 %v3046, 1.442695
        %v3056 = vpow.pop %v3055
        %v3057 = vmul.f32 %v3047, 1.442695
        %v3058 = vpow.pop %v3057
        %v3059 = vmul.f32 %v3048, 1.442695
        %v3060 = vpow.pop %v3059
        %v3061 = vmul.f32 %v3049, 1.442695
        %v3062 = vpow.pop %v3061
        %v3063 = vmul.f32 %v3050, 1.442695
        %v3064 = vpow.pop %v3063
        %v3065 = vmul.f32 %v3051, 1.442695
        %v3066 = vpow.pop %v3065
        %v3067 = vmul.f32 %v3052, 1.442695
        %v3068 = vpow.pop %v3067
        %v3069 = vsel %vm1244, %v3054, 0.0
        %3070 = vadd.xlane.f32.xlu0 %v3069
        %v3071 = vpop.xlane.xlu0 %3070
        %v3072 = vsel %vm1244, %v3056, 0.0
        %3073 = vadd.xlane.f32.xlu0 %v3072
        %v3074 = vpop.xlane.xlu0 %3073
        %v3075 = vsel %vm1244, %v3058, 0.0
        %3076 = vadd.xlane.f32.xlu0 %v3075
        %v3077 = vpop.xlane.xlu0 %3076
        %v3078 = vsel %vm1244, %v3060, 0.0
        %3079 = vadd.xlane.f32.xlu0 %v3078
        %v3080 = vpop.xlane.xlu0 %3079
        %v3081 = vsel %vm1244, %v3062, 0.0
        %3082 = vadd.xlane.f32.xlu0 %v3081
        %v3083 = vpop.xlane.xlu0 %3082
        %v3084 = vsel %vm1244, %v3064, 0.0
        %3085 = vadd.xlane.f32.xlu0 %v3084
        %v3086 = vpop.xlane.xlu0 %3085
        %v3087 = vsel %vm1244, %v3066, 0.0
        %3088 = vadd.xlane.f32.xlu0 %v3087
        %v3089 = vpop.xlane.xlu0 %3088
        %v3090 = vsel %vm1244, %v3068, 0.0
        %3091 = vadd.xlane.f32.xlu0 %v3090
        %v3092 = vpop.xlane.xlu0 %3091
        %v3093 = vrcp.pop %v3071
        %v3094 = vrcp.pop %v3074
        %v3095 = vrcp.pop %v3077
        %v3096 = vrcp.pop %v3080
        %v3097 = vrcp.pop %v3083
        %v3098 = vrcp.pop %v3086
        %v3099 = vrcp.pop %v3089
        %v3100 = vrcp.pop %v3092
        %v3101 = vmul.f32 %v3054, %v3093
        %v3102 = vmul.f32 %v3056, %v3094
        %v3103 = vmul.f32 %v3058, %v3095
        %v3104 = vmul.f32 %v3060, %v3096
        %v3105 = vmul.f32 %v3062, %v3097
        %v3106 = vmul.f32 %v3064, %v3098
        %v3107 = vmul.f32 %v3066, %v3099
        %v3108 = vmul.f32 %v3068, %v3100
        %3117 = vrot.lane.b32.xlu0 %v3101, 64
        %v3118 = vpop.permute.xlu0 %3117
        %3119 = vrot.lane.b32.xlu0 %v3102, 64
        %v3120 = vpop.permute.xlu0 %3119
        %3121 = vrot.lane.b32.xlu0 %v3103, 64
        %v3122 = vpop.permute.xlu0 %3121
        %3123 = vrot.lane.b32.xlu0 %v3104, 64
        %v3124 = vpop.permute.xlu0 %3123
        %3125 = vrot.lane.b32.xlu0 %v3105, 64
        %v3126 = vpop.permute.xlu0 %3125
        %3127 = vrot.lane.b32.xlu0 %v3106, 64
        %v3128 = vpop.permute.xlu0 %3127
        %3129 = vrot.lane.b32.xlu0 %v3107, 64
        %v3130 = vpop.permute.xlu0 %3129
        %3131 = vrot.lane.b32.xlu0 %v3108, 64
        %v3132 = vpop.permute.xlu0 %3131
        %3141 = vst.msk [vmem:[%s495 + $0x8] sm:$0xff] %vm1817, %v3118
        %3142 = vst.msk [vmem:[%s495 + $0x18] sm:$0xff] %vm1817, %v3120
        %3143 = vst.msk [vmem:[%s495 + $0x28] sm:$0xff] %vm1817, %v3122
        %3144 = vst.msk [vmem:[%s495 + $0x38] sm:$0xff] %vm1817, %v3124
        %3145 = vst.msk [vmem:[%s495 + $0x48] sm:$0xff] %vm1817, %v3126
        %3146 = vst.msk [vmem:[%s495 + $0x58] sm:$0xff] %vm1817, %v3128
        %3147 = vst.msk [vmem:[%s495 + $0x68] sm:$0xff] %vm1817, %v3130
        %3148 = vst.msk [vmem:[%s495 + $0x78] sm:$0xff] %vm1817, %v3132
        %3149 = vrot.lane.b32.xlu0 %v909, 72
        %v3150 = vpop.permute.xlu0 %3149
        %3151 = vrot.lane.b32.xlu0 %v914, 72
        %v3152 = vpop.permute.xlu0 %3151
        %3153 = vrot.lane.b32.xlu0 %v919, 72
        %v3154 = vpop.permute.xlu0 %3153
        %3155 = vrot.lane.b32.xlu0 %v924, 72
        %v3156 = vpop.permute.xlu0 %3155
        %3157 = vrot.lane.b32.xlu0 %v929, 72
        %v3158 = vpop.permute.xlu0 %3157
        %3159 = vrot.lane.b32.xlu0 %v934, 72
        %v3160 = vpop.permute.xlu0 %3159
        %3161 = vrot.lane.b32.xlu0 %v939, 72
        %v3162 = vpop.permute.xlu0 %3161
        %3163 = vrot.lane.b32.xlu0 %v944, 72
        %v3164 = vpop.permute.xlu0 %3163
        %v3173 = vsel %vm1244, %v3101, 0
        %v3175 = vsel %vm1244, %v3102, 0
        %v3177 = vsel %vm1244, %v3103, 0
        %v3179 = vsel %vm1244, %v3104, 0
        %v3181 = vsel %vm1244, %v3105, 0
        %v3183 = vsel %vm1244, %v3106, 0
        %v3185 = vsel %vm1244, %v3107, 0
        %v3187 = vsel %vm1244, %v3108, 0
        %3189 = vmatprep.subr.mxu0 0.0
        %3190 = vmatpush1.msra.mxu0 %v3150
        %3191 = vmatprep.subr.mxu0 0.0
        %3192 = vmatpush1.msra.mxu0 %v3152
        %3193 = vmatprep.subr.mxu0 0.0
        %3194 = vmatpush1.msra.mxu0 %v3154
        %3195 = vmatprep.subr.mxu0 0.0
        %3196 = vmatpush1.msra.mxu0 %v3156
        %3197 = vmatprep.subr.mxu0 0.0
        %3198 = vmatpush1.msra.mxu0 %v3158
        %3199 = vmatprep.subr.mxu0 0.0
        %3200 = vmatpush1.msra.mxu0 %v3160
        %3201 = vmatprep.subr.mxu0 0.0
        %3202 = vmatpush1.msra.mxu0 %v3162
        %3203 = vmatprep.subr.mxu0 0.0
        %3204 = vmatpush1.msra.mxu0 %v3164
        %3205 = vmatprep.subr.mxu0 0.0
        %3206 = vmatpush1.msra.mxu0 0.0
        %3207 = vmatprep.subr.mxu0 0.0
        %3208 = vmatpush1.msra.mxu0 0.0
        %3209 = vmatprep.subr.mxu0 0.0
        %3210 = vmatpush1.msra.mxu0 0.0
        %3211 = vmatprep.subr.mxu0 0.0
        %3212 = vmatpush1.msra.mxu0 0.0
        %3213 = vmatprep.subr.mxu0 0.0
        %3214 = vmatpush1.msra.mxu0 0.0
        %3215 = vmatprep.subr.mxu0 0.0
        %3216 = vmatpush1.msra.mxu0 0.0
        %3217 = vmatprep.subr.mxu0 0.0
        %3218 = vmatpush1.msra.mxu0 0.0
        %3219 = vmatprep.subr.mxu0 0.0
        %3220 = vmatpush1.msra.mxu0 0.0
        %3221 = vmatprep.subr.mxu0 0.0
        %3222 = vmatpush1.msra.mxu0 0.0
        %3223 = vmatprep.subr.mxu0 0.0
        %3224 = vmatpush1.msra.mxu0 0.0
        %3225 = vmatprep.subr.mxu0 0.0
        %3226 = vmatpush1.msra.mxu0 0.0
        %3227 = vmatprep.subr.mxu0 0.0
        %3228 = vmatpush1.msra.mxu0 0.0
        %3229 = vmatprep.subr.mxu0 0.0
        %3230 = vmatpush1.msra.mxu0 0.0
        %3231 = vmatprep.subr.mxu0 0.0
        %3232 = vmatpush1.msra.mxu0 0.0
        %3233 = vmatprep.subr.mxu0 0.0
        %3234 = vmatpush1.msra.mxu0 0.0
        %3235 = vmatprep.subr.mxu0 0.0
        %3236 = vmatpush1.msra.mxu0 0.0
        %3237 = vmatprep.subr.mxu0 0.0
        %3238 = vmatpush1.msra.mxu0 0.0
        %3239 = vmatprep.subr.mxu0 0.0
        %3240 = vmatpush1.msra.mxu0 0.0
        %3241 = vmatprep.subr.mxu0 0.0
        %3242 = vmatpush1.msra.mxu0 0.0
        %3243 = vmatprep.subr.mxu0 0.0
        %3244 = vmatpush1.msra.mxu0 0.0
        %3245 = vmatprep.subr.mxu0 0.0
        %3246 = vmatpush1.msra.mxu0 0.0
        %3247 = vmatprep.subr.mxu0 0.0
        %3248 = vmatpush1.msra.mxu0 0.0
        %3249 = vmatprep.subr.mxu0 0.0
        %3250 = vmatpush1.msra.mxu0 0.0
        %3251 = vmatprep.subr.mxu0 0.0
        %3252 = vmatpush1.msra.mxu0 0.0
        %3253 = vmatprep.mubr.f32.mxu0 0.0
        %3254 = vmatmul.mubr.f32.gmra.mrb[0].mxu0 %v3173
        %v3255 = vpop.f32.mrb[0].mxu0
        %v3256 = vadd.f32 0.0, %v3255
        %v3257 = vpop.f32.mrb[0].mxu0
        %3258 = vmatprep.mubr.f32.mxu0 0.0
        %3259 = vmatmul.mubr.f32.gmra.mrb[0].mxu0 %v3175
        %v3260 = vpop.f32.mrb[0].mxu0
        %v3261 = vadd.f32 0.0, %v3260
        %v3262 = vpop.f32.mrb[0].mxu0
        %3263 = vmatprep.mubr.f32.mxu0 0.0
        %3264 = vmatmul.mubr.f32.gmra.mrb[0].mxu0 %v3177
        %v3265 = vpop.f32.mrb[0].mxu0
        %v3266 = vadd.f32 0.0, %v3265
        %v3267 = vpop.f32.mrb[0].mxu0
        %3268 = vmatprep.mubr.f32.mxu0 0.0
        %3269 = vmatmul.mubr.f32.gmra.mrb[0].mxu0 %v3179
        %v3270 = vpop.f32.mrb[0].mxu0
        %v3271 = vadd.f32 0.0, %v3270
        %v3272 = vpop.f32.mrb[0].mxu0
        %3273 = vmatprep.mubr.f32.mxu0 0.0
        %3274 = vmatmul.mubr.f32.gmra.mrb[0].mxu0 %v3181
        %v3275 = vpop.f32.mrb[0].mxu0
        %v3276 = vadd.f32 0.0, %v3275
        %v3277 = vpop.f32.mrb[0].mxu0
        %3278 = vmatprep.mubr.f32.mxu0 0.0
        %3279 = vmatmul.mubr.f32.gmra.mrb[0].mxu0 %v3183
        %v3280 = vpop.f32.mrb[0].mxu0
        %v3281 = vadd.f32 0.0, %v3280
        %v3282 = vpop.f32.mrb[0].mxu0
        %3283 = vmatprep.mubr.f32.mxu0 0.0
        %3284 = vmatmul.mubr.f32.gmra.mrb[0].mxu0 %v3185
        %v3285 = vpop.f32.mrb[0].mxu0
        %v3286 = vadd.f32 0.0, %v3285
        %v3287 = vpop.f32.mrb[0].mxu0
        %3288 = vmatprep.mubr.f32.mxu0 0.0
        %3289 = vmatmul.mubr.f32.gmra.mrb[0].mxu0 %v3187
        %v3290 = vpop.f32.mrb[0].mxu0
        %v3291 = vadd.f32 0.0, %v3290
        %v3292 = vpop.f32.mrb[0].mxu0
        %3293 = vdwg.mxu0
        %v3294 = vld [vmem:[%s10 + $0x18] sm:$0xff]
        %v3296 = vsel %vm1058, %v3256, 0
        %v3299 = vsel %vm1058, %v3261, 0
        %v3302 = vsel %vm1058, %v3266, 0
        %v3305 = vsel %vm1058, %v3271, 0
        %v3308 = vsel %vm1058, %v3276, 0
        %v3311 = vsel %vm1058, %v3281, 0
        %v3314 = vsel %vm1058, %v3286, 0
        %v3317 = vsel %vm1058, %v3291, 0
        %3319 = vmatprep.subr.mxu0 0.0
        %3320 = vmatpush1.msra.mxu0 %v3294
        %3321 = vmatprep.subr.mxu0 0.0
        %3322 = vmatpush1.msra.mxu0 0.0
        %3323 = vmatprep.subr.mxu0 0.0
        %3324 = vmatpush1.msra.mxu0 0.0
        %3325 = vmatprep.subr.mxu0 0.0
        %3326 = vmatpush1.msra.mxu0 0.0
        %3327 = vmatprep.subr.mxu0 0.0
        %3328 = vmatpush1.msra.mxu0 0.0
        %3329 = vmatprep.subr.mxu0 0.0
        %3330 = vmatpush1.msra.mxu0 0.0
        %3331 = vmatprep.subr.mxu0 0.0
        %3332 = vmatpush1.msra.mxu0 0.0
        %3333 = vmatprep.subr.mxu0 0.0
        %3334 = vmatpush1.msra.mxu0 0.0
        %3335 = vmatprep.subr.mxu0 0.0
        %3336 = vmatpush1.msra.mxu0 0.0
        %3337 = vmatprep.subr.mxu0 0.0
        %3338 = vmatpush1.msra.mxu0 0.0
        %3339 = vmatprep.subr.mxu0 0.0
        %3340 = vmatpush1.msra.mxu0 0.0
        %3341 = vmatprep.subr.mxu0 0.0
        %3342 = vmatpush1.msra.mxu0 0.0
        %3343 = vmatprep.subr.mxu0 0.0
        %3344 = vmatpush1.msra.mxu0 0.0
        %3345 = vmatprep.subr.mxu0 0.0
        %3346 = vmatpush1.msra.mxu0 0.0
        %3347 = vmatprep.subr.mxu0 0.0
        %3348 = vmatpush1.msra.mxu0 0.0
        %3349 = vmatprep.subr.mxu0 0.0
        %3350 = vmatpush1.msra.mxu0 0.0
        %3351 = vmatprep.subr.mxu0 0.0
        %3352 = vmatpush1.msra.mxu0 0.0
        %3353 = vmatprep.subr.mxu0 0.0
        %3354 = vmatpush1.msra.mxu0 0.0
        %3355 = vmatprep.subr.mxu0 0.0
        %3356 = vmatpush1.msra.mxu0 0.0
        %3357 = vmatprep.subr.mxu0 0.0
        %3358 = vmatpush1.msra.mxu0 0.0
        %3359 = vmatprep.subr.mxu0 0.0
        %3360 = vmatpush1.msra.mxu0 0.0
        %3361 = vmatprep.subr.mxu0 0.0
        %3362 = vmatpush1.msra.mxu0 0.0
        %3363 = vmatprep.subr.mxu0 0.0
        %3364 = vmatpush1.msra.mxu0 0.0
        %3365 = vmatprep.subr.mxu0 0.0
        %3366 = vmatpush1.msra.mxu0 0.0
        %3367 = vmatprep.subr.mxu0 0.0
        %3368 = vmatpush1.msra.mxu0 0.0
        %3369 = vmatprep.subr.mxu0 0.0
        %3370 = vmatpush1.msra.mxu0 0.0
        %3371 = vmatprep.subr.mxu0 0.0
        %3372 = vmatpush1.msra.mxu0 0.0
        %3373 = vmatprep.subr.mxu0 0.0
        %3374 = vmatpush1.msra.mxu0 0.0
        %3375 = vmatprep.subr.mxu0 0.0
        %3376 = vmatpush1.msra.mxu0 0.0
        %3377 = vmatprep.subr.mxu0 0.0
        %3378 = vmatpush1.msra.mxu0 0.0
        %3379 = vmatprep.subr.mxu0 0.0
        %3380 = vmatpush1.msra.mxu0 0.0
        %3381 = vmatprep.subr.mxu0 0.0
        %3382 = vmatpush1.msra.mxu0 0.0
        %3383 = vmatprep.mubr.f32.mxu0 0.0
        %3384 = vmatmul.mubr.f32.gmra.mrb[0].mxu0 %v3296
        %v3385 = vpop.f32.mrb[0].mxu0
        %v3386 = vadd.f32 0.0, %v3385
        %v3387 = vpop.f32.mrb[0].mxu0
        %3388 = vmatprep.mubr.f32.mxu0 0.0
        %3389 = vmatmul.mubr.f32.gmra.mrb[0].mxu0 %v3299
        %v3390 = vpop.f32.mrb[0].mxu0
        %v3391 = vadd.f32 0.0, %v3390
        %v3392 = vpop.f32.mrb[0].mxu0
        %3393 = vmatprep.mubr.f32.mxu0 0.0
        %3394 = vmatmul.mubr.f32.gmra.mrb[0].mxu0 %v3302
        %v3395 = vpop.f32.mrb[0].mxu0
        %v3396 = vadd.f32 0.0, %v3395
        %v3397 = vpop.f32.mrb[0].mxu0
        %3398 = vmatprep.mubr.f32.mxu0 0.0
        %3399 = vmatmul.mubr.f32.gmra.mrb[0].mxu0 %v3305
        %v3400 = vpop.f32.mrb[0].mxu0
        %v3401 = vadd.f32 0.0, %v3400
        %v3402 = vpop.f32.mrb[0].mxu0
        %3403 = vmatprep.mubr.f32.mxu0 0.0
        %3404 = vmatmul.mubr.f32.gmra.mrb[0].mxu0 %v3308
        %v3405 = vpop.f32.mrb[0].mxu0
        %v3406 = vadd.f32 0.0, %v3405
        %v3407 = vpop.f32.mrb[0].mxu0
        %3408 = vmatprep.mubr.f32.mxu0 0.0
        %3409 = vmatmul.mubr.f32.gmra.mrb[0].mxu0 %v3311
        %v3410 = vpop.f32.mrb[0].mxu0
        %v3411 = vadd.f32 0.0, %v3410
        %v3412 = vpop.f32.mrb[0].mxu0
        %3413 = vmatprep.mubr.f32.mxu0 0.0
        %3414 = vmatmul.mubr.f32.gmra.mrb[0].mxu0 %v3314
        %v3415 = vpop.f32.mrb[0].mxu0
        %v3416 = vadd.f32 0.0, %v3415
        %v3417 = vpop.f32.mrb[0].mxu0
        %3418 = vmatprep.mubr.f32.mxu0 0.0
        %3419 = vmatmul.mubr.f32.gmra.mrb[0].mxu0 %v3317
        %v3420 = vpop.f32.mrb[0].mxu0
        %v3421 = vadd.f32 0.0, %v3420
        %v3422 = vpop.f32.mrb[0].mxu0
        %3423 = vdwg.mxu0
        %v3424 = vadd.f32 %v2811, %v3386
        %v3425 = vadd.f32 %v2812, %v3391
        %v3426 = vadd.f32 %v2813, %v3396
        %v3427 = vadd.f32 %v2814, %v3401
        %v3428 = vadd.f32 %v2815, %v3406
        %v3429 = vadd.f32 %v2816, %v3411
        %v3430 = vadd.f32 %v2817, %v3416
        %v3431 = vadd.f32 %v2818, %v3421
        %v3432 = vld [vmem:[%s11] sm:$0x1]
        %v3434 = vlaneseq
        %v3435 = vshrl.u32 %v3434, 7
        %v3436 = vsub.s32 0, %v3435
        %v3437 = vrot.slane %v3432, %v3436
        %v3439 = vadd.f32 %v3424, %v3437
        %v3440 = vadd.f32 %v3425, %v3437
        %v3441 = vadd.f32 %v3426, %v3437
        %v3442 = vadd.f32 %v3427, %v3437
        %v3443 = vadd.f32 %v3428, %v3437
        %v3444 = vadd.f32 %v3429, %v3437
        %v3445 = vadd.f32 %v3430, %v3437
        %v3446 = vadd.f32 %v3431, %v3437
        %3447 = vst.msk [vmem:[%s527] sm:$0xff] %vm573, %v3439
        %3448 = vst.msk [vmem:[%s527 + $0x8] sm:$0xff] %vm573, %v3440
        %3449 = vst.msk [vmem:[%s527 + $0x10] sm:$0xff] %vm573, %v3441
        %3450 = vst.msk [vmem:[%s527 + $0x18] sm:$0xff] %vm573, %v3442
        %3451 = vst.msk [vmem:[%s527 + $0x20] sm:$0xff] %vm573, %v3443
        %3452 = vst.msk [vmem:[%s527 + $0x28] sm:$0xff] %vm573, %v3444
        %3453 = vst.msk [vmem:[%s527 + $0x30] sm:$0xff] %vm573, %v3445
        %3454 = vst.msk [vmem:[%s527 + $0x38] sm:$0xff] %vm573, %v3446
        %s3455 = scalar_lea.vmem %s520, 64
        %v3456 = vld [vmem:[%s3455] sm:$0xff]
        %v3457 = vld [vmem:[%s3455 + $0x8] sm:$0xff]
        %v3458 = vld [vmem:[%s3455 + $0x10] sm:$0xff]
        %v3459 = vld [vmem:[%s3455 + $0x18] sm:$0xff]
        %v3460 = vld [vmem:[%s3455 + $0x20] sm:$0xff]
        %v3461 = vld [vmem:[%s3455 + $0x28] sm:$0xff]
        %v3462 = vld [vmem:[%s3455 + $0x30] sm:$0xff]
        %v3463 = vld [vmem:[%s3455 + $0x38] sm:$0xff]
        %s3464 = scalar_lea.vmem %s513, 1
        %v3465 = vld [vmem:[%s3464] sm:$0x1]
        %3467 = vset.pattern.permute.xlu0 0
        %3468 = vperm.xlu0 %3467, %v3456
        %v3469 = vpop.permute.xlu0 %3468
        %3472 = vset.pattern.permute.xlu0 0
        %3473 = vperm.xlu0 %3472, %v3457
        %v3474 = vpop.permute.xlu0 %3473
        %3477 = vset.pattern.permute.xlu0 0
        %3478 = vperm.xlu0 %3477, %v3458
        %v3479 = vpop.permute.xlu0 %3478
        %3482 = vset.pattern.permute.xlu0 0
        %3483 = vperm.xlu0 %3482, %v3459
        %v3484 = vpop.permute.xlu0 %3483
        %3487 = vset.pattern.permute.xlu0 0
        %3488 = vperm.xlu0 %3487, %v3460
        %v3489 = vpop.permute.xlu0 %3488
        %3492 = vset.pattern.permute.xlu0 0
        %3493 = vperm.xlu0 %3492, %v3461
        %v3494 = vpop.permute.xlu0 %3493
        %3497 = vset.pattern.permute.xlu0 0
        %3498 = vperm.xlu0 %3497, %v3462
        %v3499 = vpop.permute.xlu0 %3498
        %3502 = vset.pattern.permute.xlu0 0
        %3503 = vperm.xlu0 %3502, %v3463
        %v3504 = vpop.permute.xlu0 %3503
        %v3507 = vlaneseq
        %v3508 = vshrl.u32 %v3507, 7
        %v3509 = vsub.s32 0, %v3508
        %v3510 = vrot.slane %v3465, %v3509
        %v3512 = vmul.f32 %v3469, %v3510
        %v3513 = vmul.f32 %v3474, %v3510
        %v3514 = vmul.f32 %v3479, %v3510
        %v3515 = vmul.f32 %v3484, %v3510
        %v3516 = vmul.f32 %v3489, %v3510
        %v3517 = vmul.f32 %v3494, %v3510
        %v3518 = vmul.f32 %v3499, %v3510
        %v3519 = vmul.f32 %v3504, %v3510
        %s3520 = scalar_lea.vmem %s4, 64
        %v3521 = vld [vmem:[%s3520] sm:$0xff]
        %v3522 = vld [vmem:[%s3520 + $0x8] sm:$0xff]
        %v3523 = vld [vmem:[%s3520 + $0x10] sm:$0xff]
        %v3524 = vld [vmem:[%s3520 + $0x18] sm:$0xff]
        %v3525 = vld [vmem:[%s3520 + $0x20] sm:$0xff]
        %v3526 = vld [vmem:[%s3520 + $0x28] sm:$0xff]
        %v3527 = vld [vmem:[%s3520 + $0x30] sm:$0xff]
        %v3528 = vld [vmem:[%s3520 + $0x38] sm:$0xff]
        %v3530 = vsel %vm1058, %v775, 0
        %v3533 = vsel %vm1058, %v776, 0
        %v3536 = vsel %vm1058, %v777, 0
        %v3539 = vsel %vm1058, %v778, 0
        %v3542 = vsel %vm1058, %v779, 0
        %v3545 = vsel %vm1058, %v780, 0
        %v3548 = vsel %vm1058, %v781, 0
        %v3551 = vsel %vm1058, %v782, 0
        %v3554 = vsel %vm1058, %v949, 0
        %v3557 = vsel %vm1058, %v954, 0
        %v3560 = vsel %vm1058, %v959, 0
        %v3563 = vsel %vm1058, %v964, 0
        %v3566 = vsel %vm1058, %v969, 0
        %v3569 = vsel %vm1058, %v974, 0
        %v3572 = vsel %vm1058, %v979, 0
        %v3575 = vsel %vm1058, %v984, 0
        %3577 = vmatprep.subr.mxu0 0.0
        %3578 = vmatpush1.xpose.msra.mxu0 %v3554
        %3579 = vmatprep.subr.mxu0 0.0
        %3580 = vmatpush1.xpose.msra.mxu0 %v3557
        %3581 = vmatprep.subr.mxu0 0.0
        %3582 = vmatpush1.xpose.msra.mxu0 %v3560
        %3583 = vmatprep.subr.mxu0 0.0
        %3584 = vmatpush1.xpose.msra.mxu0 %v3563
        %3585 = vmatprep.subr.mxu0 0.0
        %3586 = vmatpush1.xpose.msra.mxu0 %v3566
        %3587 = vmatprep.subr.mxu0 0.0
        %3588 = vmatpush1.xpose.msra.mxu0 %v3569
        %3589 = vmatprep.subr.mxu0 0.0
        %3590 = vmatpush1.xpose.msra.mxu0 %v3572
        %3591 = vmatprep.subr.mxu0 0.0
        %3592 = vmatpush1.xpose.msra.mxu0 %v3575
        %3593 = vmatprep.subr.mxu0 0.0
        %3594 = vmatpush1.xpose.msra.mxu0 0.0
        %3595 = vmatprep.subr.mxu0 0.0
        %3596 = vmatpush1.xpose.msra.mxu0 0.0
        %3597 = vmatprep.subr.mxu0 0.0
        %3598 = vmatpush1.xpose.msra.mxu0 0.0
        %3599 = vmatprep.subr.mxu0 0.0
        %3600 = vmatpush1.xpose.msra.mxu0 0.0
        %3601 = vmatprep.subr.mxu0 0.0
        %3602 = vmatpush1.xpose.msra.mxu0 0.0
        %3603 = vmatprep.subr.mxu0 0.0
        %3604 = vmatpush1.xpose.msra.mxu0 0.0
        %3605 = vmatprep.subr.mxu0 0.0
        %3606 = vmatpush1.xpose.msra.mxu0 0.0
        %3607 = vmatprep.subr.mxu0 0.0
        %3608 = vmatpush1.xpose.msra.mxu0 0.0
        %3609 = vmatprep.subr.mxu0 0.0
        %3610 = vmatpush1.xpose.msra.mxu0 0.0
        %3611 = vmatprep.subr.mxu0 0.0
        %3612 = vmatpush1.xpose.msra.mxu0 0.0
        %3613 = vmatprep.subr.mxu0 0.0
        %3614 = vmatpush1.xpose.msra.mxu0 0.0
        %3615 = vmatprep.subr.mxu0 0.0
        %3616 = vmatpush1.xpose.msra.mxu0 0.0
        %3617 = vmatprep.subr.mxu0 0.0
        %3618 = vmatpush1.xpose.msra.mxu0 0.0
        %3619 = vmatprep.subr.mxu0 0.0
        %3620 = vmatpush1.xpose.msra.mxu0 0.0
        %3621 = vmatprep.subr.mxu0 0.0
        %3622 = vmatpush1.xpose.msra.mxu0 0.0
        %3623 = vmatprep.subr.mxu0 0.0
        %3624 = vmatpush1.xpose.msra.mxu0 0.0
        %3625 = vmatprep.subr.mxu0 0.0
        %3626 = vmatpush1.xpose.msra.mxu0 0.0
        %3627 = vmatprep.subr.mxu0 0.0
        %3628 = vmatpush1.xpose.msra.mxu0 0.0
        %3629 = vmatprep.subr.mxu0 0.0
        %3630 = vmatpush1.xpose.msra.mxu0 0.0
        %3631 = vmatprep.subr.mxu0 0.0
        %3632 = vmatpush1.xpose.msra.mxu0 0.0
        %3633 = vmatprep.subr.mxu0 0.0
        %3634 = vmatpush1.xpose.msra.mxu0 0.0
        %3635 = vmatprep.subr.mxu0 0.0
        %3636 = vmatpush1.xpose.msra.mxu0 0.0
        %3637 = vmatprep.subr.mxu0 0.0
        %3638 = vmatpush1.xpose.msra.mxu0 0.0
        %3639 = vmatprep.subr.mxu0 0.0
        %3640 = vmatpush1.xpose.msra.mxu0 0.0
        %3641 = vmatprep.mubr.f32.mxu0 0.0
        %3642 = vmatmul.mubr.f32.gmra.mrb[0].mxu0 %v3530
        %v3643 = vpop.f32.mrb[0].mxu0
        %v3644 = vadd.f32 0.0, %v3643
        %v3645 = vpop.f32.mrb[0].mxu0
        %3646 = vmatprep.mubr.f32.mxu0 0.0
        %3647 = vmatmul.mubr.f32.gmra.mrb[0].mxu0 %v3533
        %v3648 = vpop.f32.mrb[0].mxu0
        %v3649 = vadd.f32 0.0, %v3648
        %v3650 = vpop.f32.mrb[0].mxu0
        %3651 = vmatprep.mubr.f32.mxu0 0.0
        %3652 = vmatmul.mubr.f32.gmra.mrb[0].mxu0 %v3536
        %v3653 = vpop.f32.mrb[0].mxu0
        %v3654 = vadd.f32 0.0, %v3653
        %v3655 = vpop.f32.mrb[0].mxu0
        %3656 = vmatprep.mubr.f32.mxu0 0.0
        %3657 = vmatmul.mubr.f32.gmra.mrb[0].mxu0 %v3539
        %v3658 = vpop.f32.mrb[0].mxu0
        %v3659 = vadd.f32 0.0, %v3658
        %v3660 = vpop.f32.mrb[0].mxu0
        %3661 = vmatprep.mubr.f32.mxu0 0.0
        %3662 = vmatmul.mubr.f32.gmra.mrb[0].mxu0 %v3542
        %v3663 = vpop.f32.mrb[0].mxu0
        %v3664 = vadd.f32 0.0, %v3663
        %v3665 = vpop.f32.mrb[0].mxu0
        %3666 = vmatprep.mubr.f32.mxu0 0.0
        %3667 = vmatmul.mubr.f32.gmra.mrb[0].mxu0 %v3545
        %v3668 = vpop.f32.mrb[0].mxu0
        %v3669 = vadd.f32 0.0, %v3668
        %v3670 = vpop.f32.mrb[0].mxu0
        %3671 = vmatprep.mubr.f32.mxu0 0.0
        %3672 = vmatmul.mubr.f32.gmra.mrb[0].mxu0 %v3548
        %v3673 = vpop.f32.mrb[0].mxu0
        %v3674 = vadd.f32 0.0, %v3673
        %v3675 = vpop.f32.mrb[0].mxu0
        %3676 = vmatprep.mubr.f32.mxu0 0.0
        %3677 = vmatmul.mubr.f32.gmra.mrb[0].mxu0 %v3551
        %v3678 = vpop.f32.mrb[0].mxu0
        %v3679 = vadd.f32 0.0, %v3678
        %v3680 = vpop.f32.mrb[0].mxu0
        %3681 = vdwg.mxu0
        %v3682 = vmul.f32 %v3644, %v3512
        %v3683 = vmul.f32 %v3649, %v3513
        %v3684 = vmul.f32 %v3654, %v3514
        %v3685 = vmul.f32 %v3659, %v3515
        %v3686 = vmul.f32 %v3664, %v3516
        %v3687 = vmul.f32 %v3669, %v3517
        %v3688 = vmul.f32 %v3674, %v3518
        %v3689 = vmul.f32 %v3679, %v3519
        %v3690 = vld [vmem:[%s5] sm:$0xff]
        %v3691 = vld [vmem:[%s5 + $0x8] sm:$0xff]
        %v3692 = vld [vmem:[%s5 + $0x10] sm:$0xff]
        %v3693 = vld [vmem:[%s5 + $0x18] sm:$0xff]
        %v3694 = vld [vmem:[%s5 + $0x20] sm:$0xff]
        %v3695 = vld [vmem:[%s5 + $0x28] sm:$0xff]
        %v3696 = vld [vmem:[%s5 + $0x30] sm:$0xff]
        %v3697 = vld [vmem:[%s5 + $0x38] sm:$0xff]
        %v3698 = vadd.f32 %v3682, %v3690
        %v3699 = vadd.f32 %v3683, %v3691
        %v3700 = vadd.f32 %v3684, %v3692
        %v3701 = vadd.f32 %v3685, %v3693
        %v3702 = vadd.f32 %v3686, %v3694
        %v3703 = vadd.f32 %v3687, %v3695
        %v3704 = vadd.f32 %v3688, %v3696
        %v3705 = vadd.f32 %v3689, %v3697
        %v3706 = vadd.f32 %v3698, %v3521
        %v3707 = vadd.f32 %v3699, %v3522
        %v3708 = vadd.f32 %v3700, %v3523
        %v3709 = vadd.f32 %v3701, %v3524
        %v3710 = vadd.f32 %v3702, %v3525
        %v3711 = vadd.f32 %v3703, %v3526
        %v3712 = vadd.f32 %v3704, %v3527
        %v3713 = vadd.f32 %v3705, %v3528
        %v3714 = vsel %vm1244, %v3706, -inf
        %3715 = vmax.xlane.f32.xlu0 %v3714
        %v3716 = vpop.xlane.xlu0 %3715
        %v3717 = vsel %vm1244, %v3707, -inf
        %3718 = vmax.xlane.f32.xlu0 %v3717
        %v3719 = vpop.xlane.xlu0 %3718
        %v3720 = vsel %vm1244, %v3708, -inf
        %3721 = vmax.xlane.f32.xlu0 %v3720
        %v3722 = vpop.xlane.xlu0 %3721
        %v3723 = vsel %vm1244, %v3709, -inf
        %3724 = vmax.xlane.f32.xlu0 %v3723
        %v3725 = vpop.xlane.xlu0 %3724
        %v3726 = vsel %vm1244, %v3710, -inf
        %3727 = vmax.xlane.f32.xlu0 %v3726
        %v3728 = vpop.xlane.xlu0 %3727
        %v3729 = vsel %vm1244, %v3711, -inf
        %3730 = vmax.xlane.f32.xlu0 %v3729
        %v3731 = vpop.xlane.xlu0 %3730
        %v3732 = vsel %vm1244, %v3712, -inf
        %3733 = vmax.xlane.f32.xlu0 %v3732
        %v3734 = vpop.xlane.xlu0 %3733
        %v3735 = vsel %vm1244, %v3713, -inf
        %3736 = vmax.xlane.f32.xlu0 %v3735
        %v3737 = vpop.xlane.xlu0 %3736
        %v3738 = vsub.f32 %v3706, %v3716
        %v3739 = vsub.f32 %v3707, %v3719
        %v3740 = vsub.f32 %v3708, %v3722
        %v3741 = vsub.f32 %v3709, %v3725
        %v3742 = vsub.f32 %v3710, %v3728
        %v3743 = vsub.f32 %v3711, %v3731
        %v3744 = vsub.f32 %v3712, %v3734
        %v3745 = vsub.f32 %v3713, %v3737
        %v3746 = vmul.f32 %v3738, 1.442695
        %v3747 = vpow.pop %v3746
        %v3748 = vmul.f32 %v3739, 1.442695
        %v3749 = vpow.pop %v3748
        %v3750 = vmul.f32 %v3740, 1.442695
        %v3751 = vpow.pop %v3750
        %v3752 = vmul.f32 %v3741, 1.442695
        %v3753 = vpow.pop %v3752
        %v3754 = vmul.f32 %v3742, 1.442695
        %v3755 = vpow.pop %v3754
        %v3756 = vmul.f32 %v3743, 1.442695
        %v3757 = vpow.pop %v3756
        %v3758 = vmul.f32 %v3744, 1.442695
        %v3759 = vpow.pop %v3758
        %v3760 = vmul.f32 %v3745, 1.442695
        %v3761 = vpow.pop %v3760
        %v3762 = vsel %vm1244, %v3747, 0.0
        %3763 = vadd.xlane.f32.xlu0 %v3762
        %v3764 = vpop.xlane.xlu0 %3763
        %v3765 = vsel %vm1244, %v3749, 0.0
        %3766 = vadd.xlane.f32.xlu0 %v3765
        %v3767 = vpop.xlane.xlu0 %3766
        %v3768 = vsel %vm1244, %v3751, 0.0
        %3769 = vadd.xlane.f32.xlu0 %v3768
        %v3770 = vpop.xlane.xlu0 %3769
        %v3771 = vsel %vm1244, %v3753, 0.0
        %3772 = vadd.xlane.f32.xlu0 %v3771
        %v3773 = vpop.xlane.xlu0 %3772
        %v3774 = vsel %vm1244, %v3755, 0.0
        %3775 = vadd.xlane.f32.xlu0 %v3774
        %v3776 = vpop.xlane.xlu0 %3775
        %v3777 = vsel %vm1244, %v3757, 0.0
        %3778 = vadd.xlane.f32.xlu0 %v3777
        %v3779 = vpop.xlane.xlu0 %3778
        %v3780 = vsel %vm1244, %v3759, 0.0
        %3781 = vadd.xlane.f32.xlu0 %v3780
        %v3782 = vpop.xlane.xlu0 %3781
        %v3783 = vsel %vm1244, %v3761, 0.0
        %3784 = vadd.xlane.f32.xlu0 %v3783
        %v3785 = vpop.xlane.xlu0 %3784
        %v3786 = vrcp.pop %v3764
        %v3787 = vrcp.pop %v3767
        %v3788 = vrcp.pop %v3770
        %v3789 = vrcp.pop %v3773
        %v3790 = vrcp.pop %v3776
        %v3791 = vrcp.pop %v3779
        %v3792 = vrcp.pop %v3782
        %v3793 = vrcp.pop %v3785
        %v3794 = vmul.f32 %v3747, %v3786
        %v3795 = vmul.f32 %v3749, %v3787
        %v3796 = vmul.f32 %v3751, %v3788
        %v3797 = vmul.f32 %v3753, %v3789
        %v3798 = vmul.f32 %v3755, %v3790
        %v3799 = vmul.f32 %v3757, %v3791
        %v3800 = vmul.f32 %v3759, %v3792
        %v3801 = vmul.f32 %v3761, %v3793
        %s3802 = scalar_lea.vmem %s495, 128 [#allocation2]
        %3803 = vst.msk [vmem:[%s3802] sm:$0xff] %vm1244, %v3794
        %3804 = vst.msk [vmem:[%s3802 + $0x10] sm:$0xff] %vm1244, %v3795
        %3805 = vst.msk [vmem:[%s3802 + $0x20] sm:$0xff] %vm1244, %v3796
        %3806 = vst.msk [vmem:[%s3802 + $0x30] sm:$0xff] %vm1244, %v3797
        %3807 = vst.msk [vmem:[%s3802 + $0x40] sm:$0xff] %vm1244, %v3798
        %3808 = vst.msk [vmem:[%s3802 + $0x50] sm:$0xff] %vm1244, %v3799
        %3809 = vst.msk [vmem:[%s3802 + $0x60] sm:$0xff] %vm1244, %v3800
        %3810 = vst.msk [vmem:[%s3802 + $0x70] sm:$0xff] %vm1244, %v3801
        %3811 = vrot.lane.b32.xlu0 %v949, 96
        %v3812 = vpop.permute.xlu0 %3811
        %3813 = vrot.lane.b32.xlu0 %v954, 96
        %v3814 = vpop.permute.xlu0 %3813
        %3815 = vrot.lane.b32.xlu0 %v959, 96
        %v3816 = vpop.permute.xlu0 %3815
        %3817 = vrot.lane.b32.xlu0 %v964, 96
        %v3818 = vpop.permute.xlu0 %3817
        %3819 = vrot.lane.b32.xlu0 %v969, 96
        %v3820 = vpop.permute.xlu0 %3819
        %3821 = vrot.lane.b32.xlu0 %v974, 96
        %v3822 = vpop.permute.xlu0 %3821
        %3823 = vrot.lane.b32.xlu0 %v979, 96
        %v3824 = vpop.permute.xlu0 %3823
        %3825 = vrot.lane.b32.xlu0 %v984, 96
        %v3826 = vpop.permute.xlu0 %3825
        %v3836 = vsel %vm1244, %v3794, 0
        %v3839 = vsel %vm1244, %v3795, 0
        %v3842 = vsel %vm1244, %v3796, 0
        %v3845 = vsel %vm1244, %v3797, 0
        %v3848 = vsel %vm1244, %v3798, 0
        %v3851 = vsel %vm1244, %v3799, 0
        %v3854 = vsel %vm1244, %v3800, 0
        %v3857 = vsel %vm1244, %v3801, 0
        %3859 = vmatprep.subr.mxu0 0.0
        %3860 = vmatpush1.msra.mxu0 %v3812
        %3861 = vmatprep.subr.mxu0 0.0
        %3862 = vmatpush1.msra.mxu0 %v3814
        %3863 = vmatprep.subr.mxu0 0.0
        %3864 = vmatpush1.msra.mxu0 %v3816
        %3865 = vmatprep.subr.mxu0 0.0
        %3866 = vmatpush1.msra.mxu0 %v3818
        %3867 = vmatprep.subr.mxu0 0.0
        %3868 = vmatpush1.msra.mxu0 %v3820
        %3869 = vmatprep.subr.mxu0 0.0
        %3870 = vmatpush1.msra.mxu0 %v3822
        %3871 = vmatprep.subr.mxu0 0.0
        %3872 = vmatpush1.msra.mxu0 %v3824
        %3873 = vmatprep.subr.mxu0 0.0
        %3874 = vmatpush1.msra.mxu0 %v3826
        %3875 = vmatprep.subr.mxu0 0.0
        %3876 = vmatpush1.msra.mxu0 0.0
        %3877 = vmatprep.subr.mxu0 0.0
        %3878 = vmatpush1.msra.mxu0 0.0
        %3879 = vmatprep.subr.mxu0 0.0
        %3880 = vmatpush1.msra.mxu0 0.0
        %3881 = vmatprep.subr.mxu0 0.0
        %3882 = vmatpush1.msra.mxu0 0.0
        %3883 = vmatprep.subr.mxu0 0.0
        %3884 = vmatpush1.msra.mxu0 0.0
        %3885 = vmatprep.subr.mxu0 0.0
        %3886 = vmatpush1.msra.mxu0 0.0
        %3887 = vmatprep.subr.mxu0 0.0
        %3888 = vmatpush1.msra.mxu0 0.0
        %3889 = vmatprep.subr.mxu0 0.0
        %3890 = vmatpush1.msra.mxu0 0.0
        %3891 = vmatprep.subr.mxu0 0.0
        %3892 = vmatpush1.msra.mxu0 0.0
        %3893 = vmatprep.subr.mxu0 0.0
        %3894 = vmatpush1.msra.mxu0 0.0
        %3895 = vmatprep.subr.mxu0 0.0
        %3896 = vmatpush1.msra.mxu0 0.0
        %3897 = vmatprep.subr.mxu0 0.0
        %3898 = vmatpush1.msra.mxu0 0.0
        %3899 = vmatprep.subr.mxu0 0.0
        %3900 = vmatpush1.msra.mxu0 0.0
        %3901 = vmatprep.subr.mxu0 0.0
        %3902 = vmatpush1.msra.mxu0 0.0
        %3903 = vmatprep.subr.mxu0 0.0
        %3904 = vmatpush1.msra.mxu0 0.0
        %3905 = vmatprep.subr.mxu0 0.0
        %3906 = vmatpush1.msra.mxu0 0.0
        %3907 = vmatprep.subr.mxu0 0.0
        %3908 = vmatpush1.msra.mxu0 0.0
        %3909 = vmatprep.subr.mxu0 0.0
        %3910 = vmatpush1.msra.mxu0 0.0
        %3911 = vmatprep.subr.mxu0 0.0
        %3912 = vmatpush1.msra.mxu0 0.0
        %3913 = vmatprep.subr.mxu0 0.0
        %3914 = vmatpush1.msra.mxu0 0.0
        %3915 = vmatprep.subr.mxu0 0.0
        %3916 = vmatpush1.msra.mxu0 0.0
        %3917 = vmatprep.subr.mxu0 0.0
        %3918 = vmatpush1.msra.mxu0 0.0
        %3919 = vmatprep.subr.mxu0 0.0
        %3920 = vmatpush1.msra.mxu0 0.0
        %3921 = vmatprep.subr.mxu0 0.0
        %3922 = vmatpush1.msra.mxu0 0.0
        %3923 = vmatprep.mubr.f32.mxu0 0.0
        %3924 = vmatmul.mubr.f32.gmra.mrb[0].mxu0 %v3836
        %v3925 = vpop.f32.mrb[0].mxu0
        %v3926 = vadd.f32 0.0, %v3925
        %v3927 = vpop.f32.mrb[0].mxu0
        %3928 = vmatprep.mubr.f32.mxu0 0.0
        %3929 = vmatmul.mubr.f32.gmra.mrb[0].mxu0 %v3839
        %v3930 = vpop.f32.mrb[0].mxu0
        %v3931 = vadd.f32 0.0, %v3930
        %v3932 = vpop.f32.mrb[0].mxu0
        %3933 = vmatprep.mubr.f32.mxu0 0.0
        %3934 = vmatmul.mubr.f32.gmra.mrb[0].mxu0 %v3842
        %v3935 = vpop.f32.mrb[0].mxu0
        %v3936 = vadd.f32 0.0, %v3935
        %v3937 = vpop.f32.mrb[0].mxu0
        %3938 = vmatprep.mubr.f32.mxu0 0.0
        %3939 = vmatmul.mubr.f32.gmra.mrb[0].mxu0 %v3845
        %v3940 = vpop.f32.mrb[0].mxu0
        %v3941 = vadd.f32 0.0, %v3940
        %v3942 = vpop.f32.mrb[0].mxu0
        %3943 = vmatprep.mubr.f32.mxu0 0.0
        %3944 = vmatmul.mubr.f32.gmra.mrb[0].mxu0 %v3848
        %v3945 = vpop.f32.mrb[0].mxu0
        %v3946 = vadd.f32 0.0, %v3945
        %v3947 = vpop.f32.mrb[0].mxu0
        %3948 = vmatprep.mubr.f32.mxu0 0.0
        %3949 = vmatmul.mubr.f32.gmra.mrb[0].mxu0 %v3851
        %v3950 = vpop.f32.mrb[0].mxu0
        %v3951 = vadd.f32 0.0, %v3950
        %v3952 = vpop.f32.mrb[0].mxu0
        %3953 = vmatprep.mubr.f32.mxu0 0.0
        %3954 = vmatmul.mubr.f32.gmra.mrb[0].mxu0 %v3854
        %v3955 = vpop.f32.mrb[0].mxu0
        %v3956 = vadd.f32 0.0, %v3955
        %v3957 = vpop.f32.mrb[0].mxu0
        %3958 = vmatprep.mubr.f32.mxu0 0.0
        %3959 = vmatmul.mubr.f32.gmra.mrb[0].mxu0 %v3857
        %v3960 = vpop.f32.mrb[0].mxu0
        %v3961 = vadd.f32 0.0, %v3960
        %v3962 = vpop.f32.mrb[0].mxu0
        %3963 = vdwg.mxu0
        %v3964 = vld [vmem:[%s10] sm:$0xff]
        %3965 = vrot.lane.b32.xlu0 %v775, 120
        %v3966 = vpop.permute.xlu0 %3965
        %3967 = vrot.lane.b32.xlu0 %v776, 120
        %v3968 = vpop.permute.xlu0 %3967
        %3969 = vrot.lane.b32.xlu0 %v777, 120
        %v3970 = vpop.permute.xlu0 %3969
        %3971 = vrot.lane.b32.xlu0 %v778, 120
        %v3972 = vpop.permute.xlu0 %3971
        %3973 = vrot.lane.b32.xlu0 %v779, 120
        %v3974 = vpop.permute.xlu0 %3973
        %3975 = vrot.lane.b32.xlu0 %v780, 120
        %v3976 = vpop.permute.xlu0 %3975
        %3977 = vrot.lane.b32.xlu0 %v781, 120
        %v3978 = vpop.permute.xlu0 %3977
        %3979 = vrot.lane.b32.xlu0 %v782, 120
        %v3980 = vpop.permute.xlu0 %3979
        %3981 = vrot.lane.b32.xlu0 %v949, 120
        %v3982 = vpop.permute.xlu0 %3981
        %3983 = vrot.lane.b32.xlu0 %v954, 120
        %v3984 = vpop.permute.xlu0 %3983
        %3985 = vrot.lane.b32.xlu0 %v959, 120
        %v3986 = vpop.permute.xlu0 %3985
        %3987 = vrot.lane.b32.xlu0 %v964, 120
        %v3988 = vpop.permute.xlu0 %3987
        %3989 = vrot.lane.b32.xlu0 %v969, 120
        %v3990 = vpop.permute.xlu0 %3989
        %3991 = vrot.lane.b32.xlu0 %v974, 120
        %v3992 = vpop.permute.xlu0 %3991
        %3993 = vrot.lane.b32.xlu0 %v979, 120
        %v3994 = vpop.permute.xlu0 %3993
        %3995 = vrot.lane.b32.xlu0 %v984, 120
        %v3996 = vpop.permute.xlu0 %3995
        %v3997 = vsel %vm1058, %v3966, 0
        %v3999 = vsel %vm1058, %v3968, 0
        %v4001 = vsel %vm1058, %v3970, 0
        %v4003 = vsel %vm1058, %v3972, 0
        %v4005 = vsel %vm1058, %v3974, 0
        %v4007 = vsel %vm1058, %v3976, 0
        %v4009 = vsel %vm1058, %v3978, 0
        %v4011 = vsel %vm1058, %v3980, 0
        %v4013 = vsel %vm1058, %v3982, 0
        %v4015 = vsel %vm1058, %v3984, 0
        %v4017 = vsel %vm1058, %v3986, 0
        %v4019 = vsel %vm1058, %v3988, 0
        %v4021 = vsel %vm1058, %v3990, 0
        %v4023 = vsel %vm1058, %v3992, 0
        %v4025 = vsel %vm1058, %v3994, 0
        %v4027 = vsel %vm1058, %v3996, 0
        %4029 = vmatprep.subr.mxu0 0.0
        %4030 = vmatpush1.xpose.msra.mxu0 %v4013
        %4031 = vmatprep.subr.mxu0 0.0
        %4032 = vmatpush1.xpose.msra.mxu0 %v4015
        %4033 = vmatprep.subr.mxu0 0.0
        %4034 = vmatpush1.xpose.msra.mxu0 %v4017
        %4035 = vmatprep.subr.mxu0 0.0
        %4036 = vmatpush1.xpose.msra.mxu0 %v4019
        %4037 = vmatprep.subr.mxu0 0.0
        %4038 = vmatpush1.xpose.msra.mxu0 %v4021
        %4039 = vmatprep.subr.mxu0 0.0
        %4040 = vmatpush1.xpose.msra.mxu0 %v4023
        %4041 = vmatprep.subr.mxu0 0.0
        %4042 = vmatpush1.xpose.msra.mxu0 %v4025
        %4043 = vmatprep.subr.mxu0 0.0
        %4044 = vmatpush1.xpose.msra.mxu0 %v4027
        %4045 = vmatprep.subr.mxu0 0.0
        %4046 = vmatpush1.xpose.msra.mxu0 0.0
        %4047 = vmatprep.subr.mxu0 0.0
        %4048 = vmatpush1.xpose.msra.mxu0 0.0
        %4049 = vmatprep.subr.mxu0 0.0
        %4050 = vmatpush1.xpose.msra.mxu0 0.0
        %4051 = vmatprep.subr.mxu0 0.0
        %4052 = vmatpush1.xpose.msra.mxu0 0.0
        %4053 = vmatprep.subr.mxu0 0.0
        %4054 = vmatpush1.xpose.msra.mxu0 0.0
        %4055 = vmatprep.subr.mxu0 0.0
        %4056 = vmatpush1.xpose.msra.mxu0 0.0
        %4057 = vmatprep.subr.mxu0 0.0
        %4058 = vmatpush1.xpose.msra.mxu0 0.0
        %4059 = vmatprep.subr.mxu0 0.0
        %4060 = vmatpush1.xpose.msra.mxu0 0.0
        %4061 = vmatprep.subr.mxu0 0.0
        %4062 = vmatpush1.xpose.msra.mxu0 0.0
        %4063 = vmatprep.subr.mxu0 0.0
        %4064 = vmatpush1.xpose.msra.mxu0 0.0
        %4065 = vmatprep.subr.mxu0 0.0
        %4066 = vmatpush1.xpose.msra.mxu0 0.0
        %4067 = vmatprep.subr.mxu0 0.0
        %4068 = vmatpush1.xpose.msra.mxu0 0.0
        %4069 = vmatprep.subr.mxu0 0.0
        %4070 = vmatpush1.xpose.msra.mxu0 0.0
        %4071 = vmatprep.subr.mxu0 0.0
        %4072 = vmatpush1.xpose.msra.mxu0 0.0
        %4073 = vmatprep.subr.mxu0 0.0
        %4074 = vmatpush1.xpose.msra.mxu0 0.0
        %4075 = vmatprep.subr.mxu0 0.0
        %4076 = vmatpush1.xpose.msra.mxu0 0.0
        %4077 = vmatprep.subr.mxu0 0.0
        %4078 = vmatpush1.xpose.msra.mxu0 0.0
        %4079 = vmatprep.subr.mxu0 0.0
        %4080 = vmatpush1.xpose.msra.mxu0 0.0
        %4081 = vmatprep.subr.mxu0 0.0
        %4082 = vmatpush1.xpose.msra.mxu0 0.0
        %4083 = vmatprep.subr.mxu0 0.0
        %4084 = vmatpush1.xpose.msra.mxu0 0.0
        %4085 = vmatprep.subr.mxu0 0.0
        %4086 = vmatpush1.xpose.msra.mxu0 0.0
        %4087 = vmatprep.subr.mxu0 0.0
        %4088 = vmatpush1.xpose.msra.mxu0 0.0
        %4089 = vmatprep.subr.mxu0 0.0
        %4090 = vmatpush1.xpose.msra.mxu0 0.0
        %4091 = vmatprep.subr.mxu0 0.0
        %4092 = vmatpush1.xpose.msra.mxu0 0.0
        %4093 = vmatprep.mubr.f32.mxu0 0.0
        %4094 = vmatmul.mubr.f32.gmra.mrb[0].mxu0 %v3997
        %v4095 = vpop.f32.mrb[0].mxu0
        %v4096 = vadd.f32 0.0, %v4095
        %v4097 = vpop.f32.mrb[0].mxu0
        %4098 = vmatprep.mubr.f32.mxu0 0.0
        %4099 = vmatmul.mubr.f32.gmra.mrb[0].mxu0 %v3999
        %v4100 = vpop.f32.mrb[0].mxu0
        %v4101 = vadd.f32 0.0, %v4100
        %v4102 = vpop.f32.mrb[0].mxu0
        %4103 = vmatprep.mubr.f32.mxu0 0.0
        %4104 = vmatmul.mubr.f32.gmra.mrb[0].mxu0 %v4001
        %v4105 = vpop.f32.mrb[0].mxu0
        %v4106 = vadd.f32 0.0, %v4105
        %v4107 = vpop.f32.mrb[0].mxu0
        %4108 = vmatprep.mubr.f32.mxu0 0.0
        %4109 = vmatmul.mubr.f32.gmra.mrb[0].mxu0 %v4003
        %v4110 = vpop.f32.mrb[0].mxu0
        %v4111 = vadd.f32 0.0, %v4110
        %v4112 = vpop.f32.mrb[0].mxu0
        %4113 = vmatprep.mubr.f32.mxu0 0.0
        %4114 = vmatmul.mubr.f32.gmra.mrb[0].mxu0 %v4005
        %v4115 = vpop.f32.mrb[0].mxu0
        %v4116 = vadd.f32 0.0, %v4115
        %v4117 = vpop.f32.mrb[0].mxu0
        %4118 = vmatprep.mubr.f32.mxu0 0.0
        %4119 = vmatmul.mubr.f32.gmra.mrb[0].mxu0 %v4007
        %v4120 = vpop.f32.mrb[0].mxu0
        %v4121 = vadd.f32 0.0, %v4120
        %v4122 = vpop.f32.mrb[0].mxu0
        %4123 = vmatprep.mubr.f32.mxu0 0.0
        %4124 = vmatmul.mubr.f32.gmra.mrb[0].mxu0 %v4009
        %v4125 = vpop.f32.mrb[0].mxu0
        %v4126 = vadd.f32 0.0, %v4125
        %v4127 = vpop.f32.mrb[0].mxu0
        %4128 = vmatprep.mubr.f32.mxu0 0.0
        %4129 = vmatmul.mubr.f32.gmra.mrb[0].mxu0 %v4011
        %v4130 = vpop.f32.mrb[0].mxu0
        %v4131 = vadd.f32 0.0, %v4130
        %v4132 = vpop.f32.mrb[0].mxu0
        %4133 = vdwg.mxu0
        %v4134 = vmul.f32 %v4096, %v3512
        %v4135 = vmul.f32 %v4101, %v3513
        %v4136 = vmul.f32 %v4106, %v3514
        %v4137 = vmul.f32 %v4111, %v3515
        %v4138 = vmul.f32 %v4116, %v3516
        %v4139 = vmul.f32 %v4121, %v3517
        %v4140 = vmul.f32 %v4126, %v3518
        %v4141 = vmul.f32 %v4131, %v3519
        %v4142 = vld [vmem:[%s1672] sm:$0xff]
        %v4143 = vld [vmem:[%s1672 + $0x8] sm:$0xff]
        %v4144 = vld [vmem:[%s1672 + $0x10] sm:$0xff]
        %v4145 = vld [vmem:[%s1672 + $0x18] sm:$0xff]
        %v4146 = vld [vmem:[%s1672 + $0x20] sm:$0xff]
        %v4147 = vld [vmem:[%s1672 + $0x28] sm:$0xff]
        %v4148 = vld [vmem:[%s1672 + $0x30] sm:$0xff]
        %v4149 = vld [vmem:[%s1672 + $0x38] sm:$0xff]
        %v4150 = vadd.f32 %v4134, %v4142
        %v4151 = vadd.f32 %v4135, %v4143
        %v4152 = vadd.f32 %v4136, %v4144
        %v4153 = vadd.f32 %v4137, %v4145
        %v4154 = vadd.f32 %v4138, %v4146
        %v4155 = vadd.f32 %v4139, %v4147
        %v4156 = vadd.f32 %v4140, %v4148
        %v4157 = vadd.f32 %v4141, %v4149
        %v4158 = vadd.f32 %v4150, %v3521
        %v4159 = vadd.f32 %v4151, %v3522
        %v4160 = vadd.f32 %v4152, %v3523
        %v4161 = vadd.f32 %v4153, %v3524
        %v4162 = vadd.f32 %v4154, %v3525
        %v4163 = vadd.f32 %v4155, %v3526
        %v4164 = vadd.f32 %v4156, %v3527
        %v4165 = vadd.f32 %v4157, %v3528
        %v4166 = vsel %vm1244, %v4158, -inf
        %4167 = vmax.xlane.f32.xlu0 %v4166
        %v4168 = vpop.xlane.xlu0 %4167
        %v4169 = vsel %vm1244, %v4159, -inf
        %4170 = vmax.xlane.f32.xlu0 %v4169
        %v4171 = vpop.xlane.xlu0 %4170
        %v4172 = vsel %vm1244, %v4160, -inf
        %4173 = vmax.xlane.f32.xlu0 %v4172
        %v4174 = vpop.xlane.xlu0 %4173
        %v4175 = vsel %vm1244, %v4161, -inf
        %4176 = vmax.xlane.f32.xlu0 %v4175
        %v4177 = vpop.xlane.xlu0 %4176
        %v4178 = vsel %vm1244, %v4162, -inf
        %4179 = vmax.xlane.f32.xlu0 %v4178
        %v4180 = vpop.xlane.xlu0 %4179
        %v4181 = vsel %vm1244, %v4163, -inf
        %4182 = vmax.xlane.f32.xlu0 %v4181
        %v4183 = vpop.xlane.xlu0 %4182
        %v4184 = vsel %vm1244, %v4164, -inf
        %4185 = vmax.xlane.f32.xlu0 %v4184
        %v4186 = vpop.xlane.xlu0 %4185
        %v4187 = vsel %vm1244, %v4165, -inf
        %4188 = vmax.xlane.f32.xlu0 %v4187
        %v4189 = vpop.xlane.xlu0 %4188
        %v4190 = vsub.f32 %v4158, %v4168
        %v4191 = vsub.f32 %v4159, %v4171
        %v4192 = vsub.f32 %v4160, %v4174
        %v4193 = vsub.f32 %v4161, %v4177
        %v4194 = vsub.f32 %v4162, %v4180
        %v4195 = vsub.f32 %v4163, %v4183
        %v4196 = vsub.f32 %v4164, %v4186
        %v4197 = vsub.f32 %v4165, %v4189
        %v4198 = vmul.f32 %v4190, 1.442695
        %v4199 = vpow.pop %v4198
        %v4200 = vmul.f32 %v4191, 1.442695
        %v4201 = vpow.pop %v4200
        %v4202 = vmul.f32 %v4192, 1.442695
        %v4203 = vpow.pop %v4202
        %v4204 = vmul.f32 %v4193, 1.442695
        %v4205 = vpow.pop %v4204
        %v4206 = vmul.f32 %v4194, 1.442695
        %v4207 = vpow.pop %v4206
        %v4208 = vmul.f32 %v4195, 1.442695
        %v4209 = vpow.pop %v4208
        %v4210 = vmul.f32 %v4196, 1.442695
        %v4211 = vpow.pop %v4210
        %v4212 = vmul.f32 %v4197, 1.442695
        %v4213 = vpow.pop %v4212
        %v4214 = vsel %vm1244, %v4199, 0.0
        %4215 = vadd.xlane.f32.xlu0 %v4214
        %v4216 = vpop.xlane.xlu0 %4215
        %v4217 = vsel %vm1244, %v4201, 0.0
        %4218 = vadd.xlane.f32.xlu0 %v4217
        %v4219 = vpop.xlane.xlu0 %4218
        %v4220 = vsel %vm1244, %v4203, 0.0
        %4221 = vadd.xlane.f32.xlu0 %v4220
        %v4222 = vpop.xlane.xlu0 %4221
        %v4223 = vsel %vm1244, %v4205, 0.0
        %4224 = vadd.xlane.f32.xlu0 %v4223
        %v4225 = vpop.xlane.xlu0 %4224
        %v4226 = vsel %vm1244, %v4207, 0.0
        %4227 = vadd.xlane.f32.xlu0 %v4226
        %v4228 = vpop.xlane.xlu0 %4227
        %v4229 = vsel %vm1244, %v4209, 0.0
        %4230 = vadd.xlane.f32.xlu0 %v4229
        %v4231 = vpop.xlane.xlu0 %4230
        %v4232 = vsel %vm1244, %v4211, 0.0
        %4233 = vadd.xlane.f32.xlu0 %v4232
        %v4234 = vpop.xlane.xlu0 %4233
        %v4235 = vsel %vm1244, %v4213, 0.0
        %4236 = vadd.xlane.f32.xlu0 %v4235
        %v4237 = vpop.xlane.xlu0 %4236
        %v4238 = vrcp.pop %v4216
        %v4239 = vrcp.pop %v4219
        %v4240 = vrcp.pop %v4222
        %v4241 = vrcp.pop %v4225
        %v4242 = vrcp.pop %v4228
        %v4243 = vrcp.pop %v4231
        %v4244 = vrcp.pop %v4234
        %v4245 = vrcp.pop %v4237
        %v4246 = vmul.f32 %v4199, %v4238
        %v4247 = vmul.f32 %v4201, %v4239
        %v4248 = vmul.f32 %v4203, %v4240
        %v4249 = vmul.f32 %v4205, %v4241
        %v4250 = vmul.f32 %v4207, %v4242
        %v4251 = vmul.f32 %v4209, %v4243
        %v4252 = vmul.f32 %v4211, %v4244
        %v4253 = vmul.f32 %v4213, %v4245
        %4262 = vrot.lane.b32.xlu0 %v4246, 64
        %v4263 = vpop.permute.xlu0 %4262
        %4264 = vrot.lane.b32.xlu0 %v4247, 64
        %v4265 = vpop.permute.xlu0 %4264
        %4266 = vrot.lane.b32.xlu0 %v4248, 64
        %v4267 = vpop.permute.xlu0 %4266
        %4268 = vrot.lane.b32.xlu0 %v4249, 64
        %v4269 = vpop.permute.xlu0 %4268
        %4270 = vrot.lane.b32.xlu0 %v4250, 64
        %v4271 = vpop.permute.xlu0 %4270
        %4272 = vrot.lane.b32.xlu0 %v4251, 64
        %v4273 = vpop.permute.xlu0 %4272
        %4274 = vrot.lane.b32.xlu0 %v4252, 64
        %v4275 = vpop.permute.xlu0 %4274
        %4276 = vrot.lane.b32.xlu0 %v4253, 64
        %v4277 = vpop.permute.xlu0 %4276
        %4286 = vst.msk [vmem:[%s3802] sm:$0xff] %vm1817, %v4263
        %4287 = vst.msk [vmem:[%s3802 + $0x10] sm:$0xff] %vm1817, %v4265
        %4288 = vst.msk [vmem:[%s3802 + $0x20] sm:$0xff] %vm1817, %v4267
        %4289 = vst.msk [vmem:[%s3802 + $0x30] sm:$0xff] %vm1817, %v4269
        %4290 = vst.msk [vmem:[%s3802 + $0x40] sm:$0xff] %vm1817, %v4271
        %4291 = vst.msk [vmem:[%s3802 + $0x50] sm:$0xff] %vm1817, %v4273
        %4292 = vst.msk [vmem:[%s3802 + $0x60] sm:$0xff] %vm1817, %v4275
        %4293 = vst.msk [vmem:[%s3802 + $0x70] sm:$0xff] %vm1817, %v4277
        %4294 = vrot.lane.b32.xlu0 %v949, 88
        %v4295 = vpop.permute.xlu0 %4294
        %4296 = vrot.lane.b32.xlu0 %v954, 88
        %v4297 = vpop.permute.xlu0 %4296
        %4298 = vrot.lane.b32.xlu0 %v959, 88
        %v4299 = vpop.permute.xlu0 %4298
        %4300 = vrot.lane.b32.xlu0 %v964, 88
        %v4301 = vpop.permute.xlu0 %4300
        %4302 = vrot.lane.b32.xlu0 %v969, 88
        %v4303 = vpop.permute.xlu0 %4302
        %4304 = vrot.lane.b32.xlu0 %v974, 88
        %v4305 = vpop.permute.xlu0 %4304
        %4306 = vrot.lane.b32.xlu0 %v979, 88
        %v4307 = vpop.permute.xlu0 %4306
        %4308 = vrot.lane.b32.xlu0 %v984, 88
        %v4309 = vpop.permute.xlu0 %4308
        %v4318 = vsel %vm1244, %v4246, 0
        %v4320 = vsel %vm1244, %v4247, 0
        %v4322 = vsel %vm1244, %v4248, 0
        %v4324 = vsel %vm1244, %v4249, 0
        %v4326 = vsel %vm1244, %v4250, 0
        %v4328 = vsel %vm1244, %v4251, 0
        %v4330 = vsel %vm1244, %v4252, 0
        %v4332 = vsel %vm1244, %v4253, 0
        %4334 = vmatprep.subr.mxu0 0.0
        %4335 = vmatpush1.msra.mxu0 %v4295
        %4336 = vmatprep.subr.mxu0 0.0
        %4337 = vmatpush1.msra.mxu0 %v4297
        %4338 = vmatprep.subr.mxu0 0.0
        %4339 = vmatpush1.msra.mxu0 %v4299
        %4340 = vmatprep.subr.mxu0 0.0
        %4341 = vmatpush1.msra.mxu0 %v4301
        %4342 = vmatprep.subr.mxu0 0.0
        %4343 = vmatpush1.msra.mxu0 %v4303
        %4344 = vmatprep.subr.mxu0 0.0
        %4345 = vmatpush1.msra.mxu0 %v4305
        %4346 = vmatprep.subr.mxu0 0.0
        %4347 = vmatpush1.msra.mxu0 %v4307
        %4348 = vmatprep.subr.mxu0 0.0
        %4349 = vmatpush1.msra.mxu0 %v4309
        %4350 = vmatprep.subr.mxu0 0.0
        %4351 = vmatpush1.msra.mxu0 0.0
        %4352 = vmatprep.subr.mxu0 0.0
        %4353 = vmatpush1.msra.mxu0 0.0
        %4354 = vmatprep.subr.mxu0 0.0
        %4355 = vmatpush1.msra.mxu0 0.0
        %4356 = vmatprep.subr.mxu0 0.0
        %4357 = vmatpush1.msra.mxu0 0.0
        %4358 = vmatprep.subr.mxu0 0.0
        %4359 = vmatpush1.msra.mxu0 0.0
        %4360 = vmatprep.subr.mxu0 0.0
        %4361 = vmatpush1.msra.mxu0 0.0
        %4362 = vmatprep.subr.mxu0 0.0
        %4363 = vmatpush1.msra.mxu0 0.0
        %4364 = vmatprep.subr.mxu0 0.0
        %4365 = vmatpush1.msra.mxu0 0.0
        %4366 = vmatprep.subr.mxu0 0.0
        %4367 = vmatpush1.msra.mxu0 0.0
        %4368 = vmatprep.subr.mxu0 0.0
        %4369 = vmatpush1.msra.mxu0 0.0
        %4370 = vmatprep.subr.mxu0 0.0
        %4371 = vmatpush1.msra.mxu0 0.0
        %4372 = vmatprep.subr.mxu0 0.0
        %4373 = vmatpush1.msra.mxu0 0.0
        %4374 = vmatprep.subr.mxu0 0.0
        %4375 = vmatpush1.msra.mxu0 0.0
        %4376 = vmatprep.subr.mxu0 0.0
        %4377 = vmatpush1.msra.mxu0 0.0
        %4378 = vmatprep.subr.mxu0 0.0
        %4379 = vmatpush1.msra.mxu0 0.0
        %4380 = vmatprep.subr.mxu0 0.0
        %4381 = vmatpush1.msra.mxu0 0.0
        %4382 = vmatprep.subr.mxu0 0.0
        %4383 = vmatpush1.msra.mxu0 0.0
        %4384 = vmatprep.subr.mxu0 0.0
        %4385 = vmatpush1.msra.mxu0 0.0
        %4386 = vmatprep.subr.mxu0 0.0
        %4387 = vmatpush1.msra.mxu0 0.0
        %4388 = vmatprep.subr.mxu0 0.0
        %4389 = vmatpush1.msra.mxu0 0.0
        %4390 = vmatprep.subr.mxu0 0.0
        %4391 = vmatpush1.msra.mxu0 0.0
        %4392 = vmatprep.subr.mxu0 0.0
        %4393 = vmatpush1.msra.mxu0 0.0
        %4394 = vmatprep.subr.mxu0 0.0
        %4395 = vmatpush1.msra.mxu0 0.0
        %4396 = vmatprep.subr.mxu0 0.0
        %4397 = vmatpush1.msra.mxu0 0.0
        %4398 = vmatprep.mubr.f32.mxu0 0.0
        %4399 = vmatmul.mubr.f32.gmra.mrb[0].mxu0 %v4318
        %v4400 = vpop.f32.mrb[0].mxu0
        %v4401 = vadd.f32 0.0, %v4400
        %v4402 = vpop.f32.mrb[0].mxu0
        %4403 = vmatprep.mubr.f32.mxu0 0.0
        %4404 = vmatmul.mubr.f32.gmra.mrb[0].mxu0 %v4320
        %v4405 = vpop.f32.mrb[0].mxu0
        %v4406 = vadd.f32 0.0, %v4405
        %v4407 = vpop.f32.mrb[0].mxu0
        %4408 = vmatprep.mubr.f32.mxu0 0.0
        %4409 = vmatmul.mubr.f32.gmra.mrb[0].mxu0 %v4322
        %v4410 = vpop.f32.mrb[0].mxu0
        %v4411 = vadd.f32 0.0, %v4410
        %v4412 = vpop.f32.mrb[0].mxu0
        %4413 = vmatprep.mubr.f32.mxu0 0.0
        %4414 = vmatmul.mubr.f32.gmra.mrb[0].mxu0 %v4324
        %v4415 = vpop.f32.mrb[0].mxu0
        %v4416 = vadd.f32 0.0, %v4415
        %v4417 = vpop.f32.mrb[0].mxu0
        %4418 = vmatprep.mubr.f32.mxu0 0.0
        %4419 = vmatmul.mubr.f32.gmra.mrb[0].mxu0 %v4326
        %v4420 = vpop.f32.mrb[0].mxu0
        %v4421 = vadd.f32 0.0, %v4420
        %v4422 = vpop.f32.mrb[0].mxu0
        %4423 = vmatprep.mubr.f32.mxu0 0.0
        %4424 = vmatmul.mubr.f32.gmra.mrb[0].mxu0 %v4328
        %v4425 = vpop.f32.mrb[0].mxu0
        %v4426 = vadd.f32 0.0, %v4425
        %v4427 = vpop.f32.mrb[0].mxu0
        %4428 = vmatprep.mubr.f32.mxu0 0.0
        %4429 = vmatmul.mubr.f32.gmra.mrb[0].mxu0 %v4330
        %v4430 = vpop.f32.mrb[0].mxu0
        %v4431 = vadd.f32 0.0, %v4430
        %v4432 = vpop.f32.mrb[0].mxu0
        %4433 = vmatprep.mubr.f32.mxu0 0.0
        %4434 = vmatmul.mubr.f32.gmra.mrb[0].mxu0 %v4332
        %v4435 = vpop.f32.mrb[0].mxu0
        %v4436 = vadd.f32 0.0, %v4435
        %v4437 = vpop.f32.mrb[0].mxu0
        %4438 = vdwg.mxu0
        %v4439 = vld [vmem:[%s10 + $0x8] sm:$0xff]
        %v4441 = vsel %vm1058, %v4401, 0
        %v4444 = vsel %vm1058, %v4406, 0
        %v4447 = vsel %vm1058, %v4411, 0
        %v4450 = vsel %vm1058, %v4416, 0
        %v4453 = vsel %vm1058, %v4421, 0
        %v4456 = vsel %vm1058, %v4426, 0
        %v4459 = vsel %vm1058, %v4431, 0
        %v4462 = vsel %vm1058, %v4436, 0
        %4464 = vmatprep.subr.mxu0 0.0
        %4465 = vmatpush1.msra.mxu0 %v4439
        %4466 = vmatprep.subr.mxu0 0.0
        %4467 = vmatpush1.msra.mxu0 0.0
        %4468 = vmatprep.subr.mxu0 0.0
        %4469 = vmatpush1.msra.mxu0 0.0
        %4470 = vmatprep.subr.mxu0 0.0
        %4471 = vmatpush1.msra.mxu0 0.0
        %4472 = vmatprep.subr.mxu0 0.0
        %4473 = vmatpush1.msra.mxu0 0.0
        %4474 = vmatprep.subr.mxu0 0.0
        %4475 = vmatpush1.msra.mxu0 0.0
        %4476 = vmatprep.subr.mxu0 0.0
        %4477 = vmatpush1.msra.mxu0 0.0
        %4478 = vmatprep.subr.mxu0 0.0
        %4479 = vmatpush1.msra.mxu0 0.0
        %4480 = vmatprep.subr.mxu0 0.0
        %4481 = vmatpush1.msra.mxu0 0.0
        %4482 = vmatprep.subr.mxu0 0.0
        %4483 = vmatpush1.msra.mxu0 0.0
        %4484 = vmatprep.subr.mxu0 0.0
        %4485 = vmatpush1.msra.mxu0 0.0
        %4486 = vmatprep.subr.mxu0 0.0
        %4487 = vmatpush1.msra.mxu0 0.0
        %4488 = vmatprep.subr.mxu0 0.0
        %4489 = vmatpush1.msra.mxu0 0.0
        %4490 = vmatprep.subr.mxu0 0.0
        %4491 = vmatpush1.msra.mxu0 0.0
        %4492 = vmatprep.subr.mxu0 0.0
        %4493 = vmatpush1.msra.mxu0 0.0
        %4494 = vmatprep.subr.mxu0 0.0
        %4495 = vmatpush1.msra.mxu0 0.0
        %4496 = vmatprep.subr.mxu0 0.0
        %4497 = vmatpush1.msra.mxu0 0.0
        %4498 = vmatprep.subr.mxu0 0.0
        %4499 = vmatpush1.msra.mxu0 0.0
        %4500 = vmatprep.subr.mxu0 0.0
        %4501 = vmatpush1.msra.mxu0 0.0
        %4502 = vmatprep.subr.mxu0 0.0
        %4503 = vmatpush1.msra.mxu0 0.0
        %4504 = vmatprep.subr.mxu0 0.0
        %4505 = vmatpush1.msra.mxu0 0.0
        %4506 = vmatprep.subr.mxu0 0.0
        %4507 = vmatpush1.msra.mxu0 0.0
        %4508 = vmatprep.subr.mxu0 0.0
        %4509 = vmatpush1.msra.mxu0 0.0
        %4510 = vmatprep.subr.mxu0 0.0
        %4511 = vmatpush1.msra.mxu0 0.0
        %4512 = vmatprep.subr.mxu0 0.0
        %4513 = vmatpush1.msra.mxu0 0.0
        %4514 = vmatprep.subr.mxu0 0.0
        %4515 = vmatpush1.msra.mxu0 0.0
        %4516 = vmatprep.subr.mxu0 0.0
        %4517 = vmatpush1.msra.mxu0 0.0
        %4518 = vmatprep.subr.mxu0 0.0
        %4519 = vmatpush1.msra.mxu0 0.0
        %4520 = vmatprep.subr.mxu0 0.0
        %4521 = vmatpush1.msra.mxu0 0.0
        %4522 = vmatprep.subr.mxu0 0.0
        %4523 = vmatpush1.msra.mxu0 0.0
        %4524 = vmatprep.subr.mxu0 0.0
        %4525 = vmatpush1.msra.mxu0 0.0
        %4526 = vmatprep.subr.mxu0 0.0
        %4527 = vmatpush1.msra.mxu0 0.0
        %4528 = vmatprep.mubr.f32.mxu0 0.0
        %4529 = vmatmul.mubr.f32.gmra.mrb[0].mxu0 %v4441
        %v4530 = vpop.f32.mrb[0].mxu0
        %v4531 = vadd.f32 0.0, %v4530
        %v4532 = vpop.f32.mrb[0].mxu0
        %4533 = vmatprep.mubr.f32.mxu0 0.0
        %4534 = vmatmul.mubr.f32.gmra.mrb[0].mxu0 %v4444
        %v4535 = vpop.f32.mrb[0].mxu0
        %v4536 = vadd.f32 0.0, %v4535
        %v4537 = vpop.f32.mrb[0].mxu0
        %4538 = vmatprep.mubr.f32.mxu0 0.0
        %4539 = vmatmul.mubr.f32.gmra.mrb[0].mxu0 %v4447
        %v4540 = vpop.f32.mrb[0].mxu0
        %v4541 = vadd.f32 0.0, %v4540
        %v4542 = vpop.f32.mrb[0].mxu0
        %4543 = vmatprep.mubr.f32.mxu0 0.0
        %4544 = vmatmul.mubr.f32.gmra.mrb[0].mxu0 %v4450
        %v4545 = vpop.f32.mrb[0].mxu0
        %v4546 = vadd.f32 0.0, %v4545
        %v4547 = vpop.f32.mrb[0].mxu0
        %4548 = vmatprep.mubr.f32.mxu0 0.0
        %4549 = vmatmul.mubr.f32.gmra.mrb[0].mxu0 %v4453
        %v4550 = vpop.f32.mrb[0].mxu0
        %v4551 = vadd.f32 0.0, %v4550
        %v4552 = vpop.f32.mrb[0].mxu0
        %4553 = vmatprep.mubr.f32.mxu0 0.0
        %4554 = vmatmul.mubr.f32.gmra.mrb[0].mxu0 %v4456
        %v4555 = vpop.f32.mrb[0].mxu0
        %v4556 = vadd.f32 0.0, %v4555
        %v4557 = vpop.f32.mrb[0].mxu0
        %4558 = vmatprep.mubr.f32.mxu0 0.0
        %4559 = vmatmul.mubr.f32.gmra.mrb[0].mxu0 %v4459
        %v4560 = vpop.f32.mrb[0].mxu0
        %v4561 = vadd.f32 0.0, %v4560
        %v4562 = vpop.f32.mrb[0].mxu0
        %4563 = vmatprep.mubr.f32.mxu0 0.0
        %4564 = vmatmul.mubr.f32.gmra.mrb[0].mxu0 %v4462
        %v4565 = vpop.f32.mrb[0].mxu0
        %v4566 = vadd.f32 0.0, %v4565
        %v4567 = vpop.f32.mrb[0].mxu0
        %4568 = vdwg.mxu0
        %v4570 = vsel %vm1058, %v3926, 0
        %v4573 = vsel %vm1058, %v3931, 0
        %v4576 = vsel %vm1058, %v3936, 0
        %v4579 = vsel %vm1058, %v3941, 0
        %v4582 = vsel %vm1058, %v3946, 0
        %v4585 = vsel %vm1058, %v3951, 0
        %v4588 = vsel %vm1058, %v3956, 0
        %v4591 = vsel %vm1058, %v3961, 0
        %4593 = vmatprep.subr.mxu0 0.0
        %4594 = vmatpush1.msra.mxu0 %v3964
        %4595 = vmatprep.subr.mxu0 0.0
        %4596 = vmatpush1.msra.mxu0 0.0
        %4597 = vmatprep.subr.mxu0 0.0
        %4598 = vmatpush1.msra.mxu0 0.0
        %4599 = vmatprep.subr.mxu0 0.0
        %4600 = vmatpush1.msra.mxu0 0.0
        %4601 = vmatprep.subr.mxu0 0.0
        %4602 = vmatpush1.msra.mxu0 0.0
        %4603 = vmatprep.subr.mxu0 0.0
        %4604 = vmatpush1.msra.mxu0 0.0
        %4605 = vmatprep.subr.mxu0 0.0
        %4606 = vmatpush1.msra.mxu0 0.0
        %4607 = vmatprep.subr.mxu0 0.0
        %4608 = vmatpush1.msra.mxu0 0.0
        %4609 = vmatprep.subr.mxu0 0.0
        %4610 = vmatpush1.msra.mxu0 0.0
        %4611 = vmatprep.subr.mxu0 0.0
        %4612 = vmatpush1.msra.mxu0 0.0
        %4613 = vmatprep.subr.mxu0 0.0
        %4614 = vmatpush1.msra.mxu0 0.0
        %4615 = vmatprep.subr.mxu0 0.0
        %4616 = vmatpush1.msra.mxu0 0.0
        %4617 = vmatprep.subr.mxu0 0.0
        %4618 = vmatpush1.msra.mxu0 0.0
        %4619 = vmatprep.subr.mxu0 0.0
        %4620 = vmatpush1.msra.mxu0 0.0
        %4621 = vmatprep.subr.mxu0 0.0
        %4622 = vmatpush1.msra.mxu0 0.0
        %4623 = vmatprep.subr.mxu0 0.0
        %4624 = vmatpush1.msra.mxu0 0.0
        %4625 = vmatprep.subr.mxu0 0.0
        %4626 = vmatpush1.msra.mxu0 0.0
        %4627 = vmatprep.subr.mxu0 0.0
        %4628 = vmatpush1.msra.mxu0 0.0
        %4629 = vmatprep.subr.mxu0 0.0
        %4630 = vmatpush1.msra.mxu0 0.0
        %4631 = vmatprep.subr.mxu0 0.0
        %4632 = vmatpush1.msra.mxu0 0.0
        %4633 = vmatprep.subr.mxu0 0.0
        %4634 = vmatpush1.msra.mxu0 0.0
        %4635 = vmatprep.subr.mxu0 0.0
        %4636 = vmatpush1.msra.mxu0 0.0
        %4637 = vmatprep.subr.mxu0 0.0
        %4638 = vmatpush1.msra.mxu0 0.0
        %4639 = vmatprep.subr.mxu0 0.0
        %4640 = vmatpush1.msra.mxu0 0.0
        %4641 = vmatprep.subr.mxu0 0.0
        %4642 = vmatpush1.msra.mxu0 0.0
        %4643 = vmatprep.subr.mxu0 0.0
        %4644 = vmatpush1.msra.mxu0 0.0
        %4645 = vmatprep.subr.mxu0 0.0
        %4646 = vmatpush1.msra.mxu0 0.0
        %4647 = vmatprep.subr.mxu0 0.0
        %4648 = vmatpush1.msra.mxu0 0.0
        %4649 = vmatprep.subr.mxu0 0.0
        %4650 = vmatpush1.msra.mxu0 0.0
        %4651 = vmatprep.subr.mxu0 0.0
        %4652 = vmatpush1.msra.mxu0 0.0
        %4653 = vmatprep.subr.mxu0 0.0
        %4654 = vmatpush1.msra.mxu0 0.0
        %4655 = vmatprep.subr.mxu0 0.0
        %4656 = vmatpush1.msra.mxu0 0.0
        %4657 = vmatprep.mubr.f32.mxu0 0.0
        %4658 = vmatmul.mubr.f32.gmra.mrb[0].mxu0 %v4570
        %v4659 = vpop.f32.mrb[0].mxu0
        %v4660 = vadd.f32 %v4531, %v4659
        %v4661 = vpop.f32.mrb[0].mxu0
        %4662 = vmatprep.mubr.f32.mxu0 0.0
        %4663 = vmatmul.mubr.f32.gmra.mrb[0].mxu0 %v4573
        %v4664 = vpop.f32.mrb[0].mxu0
        %v4665 = vadd.f32 %v4536, %v4664
        %v4666 = vpop.f32.mrb[0].mxu0
        %4667 = vmatprep.mubr.f32.mxu0 0.0
        %4668 = vmatmul.mubr.f32.gmra.mrb[0].mxu0 %v4576
        %v4669 = vpop.f32.mrb[0].mxu0
        %v4670 = vadd.f32 %v4541, %v4669
        %v4671 = vpop.f32.mrb[0].mxu0
        %4672 = vmatprep.mubr.f32.mxu0 0.0
        %4673 = vmatmul.mubr.f32.gmra.mrb[0].mxu0 %v4579
        %v4674 = vpop.f32.mrb[0].mxu0
        %v4675 = vadd.f32 %v4546, %v4674
        %v4676 = vpop.f32.mrb[0].mxu0
        %4677 = vmatprep.mubr.f32.mxu0 0.0
        %4678 = vmatmul.mubr.f32.gmra.mrb[0].mxu0 %v4582
        %v4679 = vpop.f32.mrb[0].mxu0
        %v4680 = vadd.f32 %v4551, %v4679
        %v4681 = vpop.f32.mrb[0].mxu0
        %4682 = vmatprep.mubr.f32.mxu0 0.0
        %4683 = vmatmul.mubr.f32.gmra.mrb[0].mxu0 %v4585
        %v4684 = vpop.f32.mrb[0].mxu0
        %v4685 = vadd.f32 %v4556, %v4684
        %v4686 = vpop.f32.mrb[0].mxu0
        %4687 = vmatprep.mubr.f32.mxu0 0.0
        %4688 = vmatmul.mubr.f32.gmra.mrb[0].mxu0 %v4588
        %v4689 = vpop.f32.mrb[0].mxu0
        %v4690 = vadd.f32 %v4561, %v4689
        %v4691 = vpop.f32.mrb[0].mxu0
        %4692 = vmatprep.mubr.f32.mxu0 0.0
        %4693 = vmatmul.mubr.f32.gmra.mrb[0].mxu0 %v4591
        %v4694 = vpop.f32.mrb[0].mxu0
        %v4695 = vadd.f32 %v4566, %v4694
        %v4696 = vpop.f32.mrb[0].mxu0
        %4697 = vdwg.mxu0
        %4698 = vrot.lane.b32.xlu0 %v775, 112
        %v4699 = vpop.permute.xlu0 %4698
        %4700 = vrot.lane.b32.xlu0 %v776, 112
        %v4701 = vpop.permute.xlu0 %4700
        %4702 = vrot.lane.b32.xlu0 %v777, 112
        %v4703 = vpop.permute.xlu0 %4702
        %4704 = vrot.lane.b32.xlu0 %v778, 112
        %v4705 = vpop.permute.xlu0 %4704
        %4706 = vrot.lane.b32.xlu0 %v779, 112
        %v4707 = vpop.permute.xlu0 %4706
        %4708 = vrot.lane.b32.xlu0 %v780, 112
        %v4709 = vpop.permute.xlu0 %4708
        %4710 = vrot.lane.b32.xlu0 %v781, 112
        %v4711 = vpop.permute.xlu0 %4710
        %4712 = vrot.lane.b32.xlu0 %v782, 112
        %v4713 = vpop.permute.xlu0 %4712
        %4714 = vrot.lane.b32.xlu0 %v949, 112
        %v4715 = vpop.permute.xlu0 %4714
        %4716 = vrot.lane.b32.xlu0 %v954, 112
        %v4717 = vpop.permute.xlu0 %4716
        %4718 = vrot.lane.b32.xlu0 %v959, 112
        %v4719 = vpop.permute.xlu0 %4718
        %4720 = vrot.lane.b32.xlu0 %v964, 112
        %v4721 = vpop.permute.xlu0 %4720
        %4722 = vrot.lane.b32.xlu0 %v969, 112
        %v4723 = vpop.permute.xlu0 %4722
        %4724 = vrot.lane.b32.xlu0 %v974, 112
        %v4725 = vpop.permute.xlu0 %4724
        %4726 = vrot.lane.b32.xlu0 %v979, 112
        %v4727 = vpop.permute.xlu0 %4726
        %4728 = vrot.lane.b32.xlu0 %v984, 112
        %v4729 = vpop.permute.xlu0 %4728
        %v4730 = vsel %vm1058, %v4699, 0
        %v4732 = vsel %vm1058, %v4701, 0
        %v4734 = vsel %vm1058, %v4703, 0
        %v4736 = vsel %vm1058, %v4705, 0
        %v4738 = vsel %vm1058, %v4707, 0
        %v4740 = vsel %vm1058, %v4709, 0
        %v4742 = vsel %vm1058, %v4711, 0
        %v4744 = vsel %vm1058, %v4713, 0
        %v4746 = vsel %vm1058, %v4715, 0
        %v4748 = vsel %vm1058, %v4717, 0
        %v4750 = vsel %vm1058, %v4719, 0
        %v4752 = vsel %vm1058, %v4721, 0
        %v4754 = vsel %vm1058, %v4723, 0
        %v4756 = vsel %vm1058, %v4725, 0
        %v4758 = vsel %vm1058, %v4727, 0
        %v4760 = vsel %vm1058, %v4729, 0
        %4762 = vmatprep.subr.mxu0 0.0
        %4763 = vmatpush1.xpose.msra.mxu0 %v4746
        %4764 = vmatprep.subr.mxu0 0.0
        %4765 = vmatpush1.xpose.msra.mxu0 %v4748
        %4766 = vmatprep.subr.mxu0 0.0
        %4767 = vmatpush1.xpose.msra.mxu0 %v4750
        %4768 = vmatprep.subr.mxu0 0.0
        %4769 = vmatpush1.xpose.msra.mxu0 %v4752
        %4770 = vmatprep.subr.mxu0 0.0
        %4771 = vmatpush1.xpose.msra.mxu0 %v4754
        %4772 = vmatprep.subr.mxu0 0.0
        %4773 = vmatpush1.xpose.msra.mxu0 %v4756
        %4774 = vmatprep.subr.mxu0 0.0
        %4775 = vmatpush1.xpose.msra.mxu0 %v4758
        %4776 = vmatprep.subr.mxu0 0.0
        %4777 = vmatpush1.xpose.msra.mxu0 %v4760
        %4778 = vmatprep.subr.mxu0 0.0
        %4779 = vmatpush1.xpose.msra.mxu0 0.0
        %4780 = vmatprep.subr.mxu0 0.0
        %4781 = vmatpush1.xpose.msra.mxu0 0.0
        %4782 = vmatprep.subr.mxu0 0.0
        %4783 = vmatpush1.xpose.msra.mxu0 0.0
        %4784 = vmatprep.subr.mxu0 0.0
        %4785 = vmatpush1.xpose.msra.mxu0 0.0
        %4786 = vmatprep.subr.mxu0 0.0
        %4787 = vmatpush1.xpose.msra.mxu0 0.0
        %4788 = vmatprep.subr.mxu0 0.0
        %4789 = vmatpush1.xpose.msra.mxu0 0.0
        %4790 = vmatprep.subr.mxu0 0.0
        %4791 = vmatpush1.xpose.msra.mxu0 0.0
        %4792 = vmatprep.subr.mxu0 0.0
        %4793 = vmatpush1.xpose.msra.mxu0 0.0
        %4794 = vmatprep.subr.mxu0 0.0
        %4795 = vmatpush1.xpose.msra.mxu0 0.0
        %4796 = vmatprep.subr.mxu0 0.0
        %4797 = vmatpush1.xpose.msra.mxu0 0.0
        %4798 = vmatprep.subr.mxu0 0.0
        %4799 = vmatpush1.xpose.msra.mxu0 0.0
        %4800 = vmatprep.subr.mxu0 0.0
        %4801 = vmatpush1.xpose.msra.mxu0 0.0
        %4802 = vmatprep.subr.mxu0 0.0
        %4803 = vmatpush1.xpose.msra.mxu0 0.0
        %4804 = vmatprep.subr.mxu0 0.0
        %4805 = vmatpush1.xpose.msra.mxu0 0.0
        %4806 = vmatprep.subr.mxu0 0.0
        %4807 = vmatpush1.xpose.msra.mxu0 0.0
        %4808 = vmatprep.subr.mxu0 0.0
        %4809 = vmatpush1.xpose.msra.mxu0 0.0
        %4810 = vmatprep.subr.mxu0 0.0
        %4811 = vmatpush1.xpose.msra.mxu0 0.0
        %4812 = vmatprep.subr.mxu0 0.0
        %4813 = vmatpush1.xpose.msra.mxu0 0.0
        %4814 = vmatprep.subr.mxu0 0.0
        %4815 = vmatpush1.xpose.msra.mxu0 0.0
        %4816 = vmatprep.subr.mxu0 0.0
        %4817 = vmatpush1.xpose.msra.mxu0 0.0
        %4818 = vmatprep.subr.mxu0 0.0
        %4819 = vmatpush1.xpose.msra.mxu0 0.0
        %4820 = vmatprep.subr.mxu0 0.0
        %4821 = vmatpush1.xpose.msra.mxu0 0.0
        %4822 = vmatprep.subr.mxu0 0.0
        %4823 = vmatpush1.xpose.msra.mxu0 0.0
        %4824 = vmatprep.subr.mxu0 0.0
        %4825 = vmatpush1.xpose.msra.mxu0 0.0
        %4826 = vmatprep.mubr.f32.mxu0 0.0
        %4827 = vmatmul.mubr.f32.gmra.mrb[0].mxu0 %v4730
        %v4828 = vpop.f32.mrb[0].mxu0
        %v4829 = vadd.f32 0.0, %v4828
        %v4830 = vpop.f32.mrb[0].mxu0
        %4831 = vmatprep.mubr.f32.mxu0 0.0
        %4832 = vmatmul.mubr.f32.gmra.mrb[0].mxu0 %v4732
        %v4833 = vpop.f32.mrb[0].mxu0
        %v4834 = vadd.f32 0.0, %v4833
        %v4835 = vpop.f32.mrb[0].mxu0
        %4836 = vmatprep.mubr.f32.mxu0 0.0
        %4837 = vmatmul.mubr.f32.gmra.mrb[0].mxu0 %v4734
        %v4838 = vpop.f32.mrb[0].mxu0
        %v4839 = vadd.f32 0.0, %v4838
        %v4840 = vpop.f32.mrb[0].mxu0
        %4841 = vmatprep.mubr.f32.mxu0 0.0
        %4842 = vmatmul.mubr.f32.gmra.mrb[0].mxu0 %v4736
        %v4843 = vpop.f32.mrb[0].mxu0
        %v4844 = vadd.f32 0.0, %v4843
        %v4845 = vpop.f32.mrb[0].mxu0
        %4846 = vmatprep.mubr.f32.mxu0 0.0
        %4847 = vmatmul.mubr.f32.gmra.mrb[0].mxu0 %v4738
        %v4848 = vpop.f32.mrb[0].mxu0
        %v4849 = vadd.f32 0.0, %v4848
        %v4850 = vpop.f32.mrb[0].mxu0
        %4851 = vmatprep.mubr.f32.mxu0 0.0
        %4852 = vmatmul.mubr.f32.gmra.mrb[0].mxu0 %v4740
        %v4853 = vpop.f32.mrb[0].mxu0
        %v4854 = vadd.f32 0.0, %v4853
        %v4855 = vpop.f32.mrb[0].mxu0
        %4856 = vmatprep.mubr.f32.mxu0 0.0
        %4857 = vmatmul.mubr.f32.gmra.mrb[0].mxu0 %v4742
        %v4858 = vpop.f32.mrb[0].mxu0
        %v4859 = vadd.f32 0.0, %v4858
        %v4860 = vpop.f32.mrb[0].mxu0
        %4861 = vmatprep.mubr.f32.mxu0 0.0
        %4862 = vmatmul.mubr.f32.gmra.mrb[0].mxu0 %v4744
        %v4863 = vpop.f32.mrb[0].mxu0
        %v4864 = vadd.f32 0.0, %v4863
        %v4865 = vpop.f32.mrb[0].mxu0
        %4866 = vdwg.mxu0
        %v4867 = vmul.f32 %v4829, %v3512
        %v4868 = vmul.f32 %v4834, %v3513
        %v4869 = vmul.f32 %v4839, %v3514
        %v4870 = vmul.f32 %v4844, %v3515
        %v4871 = vmul.f32 %v4849, %v3516
        %v4872 = vmul.f32 %v4854, %v3517
        %v4873 = vmul.f32 %v4859, %v3518
        %v4874 = vmul.f32 %v4864, %v3519
        %v4875 = vld [vmem:[%s2407] sm:$0xff]
        %v4876 = vld [vmem:[%s2407 + $0x8] sm:$0xff]
        %v4877 = vld [vmem:[%s2407 + $0x10] sm:$0xff]
        %v4878 = vld [vmem:[%s2407 + $0x18] sm:$0xff]
        %v4879 = vld [vmem:[%s2407 + $0x20] sm:$0xff]
        %v4880 = vld [vmem:[%s2407 + $0x28] sm:$0xff]
        %v4881 = vld [vmem:[%s2407 + $0x30] sm:$0xff]
        %v4882 = vld [vmem:[%s2407 + $0x38] sm:$0xff]
        %v4883 = vadd.f32 %v4867, %v4875
        %v4884 = vadd.f32 %v4868, %v4876
        %v4885 = vadd.f32 %v4869, %v4877
        %v4886 = vadd.f32 %v4870, %v4878
        %v4887 = vadd.f32 %v4871, %v4879
        %v4888 = vadd.f32 %v4872, %v4880
        %v4889 = vadd.f32 %v4873, %v4881
        %v4890 = vadd.f32 %v4874, %v4882
        %v4891 = vadd.f32 %v4883, %v3521
        %v4892 = vadd.f32 %v4884, %v3522
        %v4893 = vadd.f32 %v4885, %v3523
        %v4894 = vadd.f32 %v4886, %v3524
        %v4895 = vadd.f32 %v4887, %v3525
        %v4896 = vadd.f32 %v4888, %v3526
        %v4897 = vadd.f32 %v4889, %v3527
        %v4898 = vadd.f32 %v4890, %v3528
        %v4899 = vsel %vm1244, %v4891, -inf
        %4900 = vmax.xlane.f32.xlu0 %v4899
        %v4901 = vpop.xlane.xlu0 %4900
        %v4902 = vsel %vm1244, %v4892, -inf
        %4903 = vmax.xlane.f32.xlu0 %v4902
        %v4904 = vpop.xlane.xlu0 %4903
        %v4905 = vsel %vm1244, %v4893, -inf
        %4906 = vmax.xlane.f32.xlu0 %v4905
        %v4907 = vpop.xlane.xlu0 %4906
        %v4908 = vsel %vm1244, %v4894, -inf
        %4909 = vmax.xlane.f32.xlu0 %v4908
        %v4910 = vpop.xlane.xlu0 %4909
        %v4911 = vsel %vm1244, %v4895, -inf
        %4912 = vmax.xlane.f32.xlu0 %v4911
        %v4913 = vpop.xlane.xlu0 %4912
        %v4914 = vsel %vm1244, %v4896, -inf
        %4915 = vmax.xlane.f32.xlu0 %v4914
        %v4916 = vpop.xlane.xlu0 %4915
        %v4917 = vsel %vm1244, %v4897, -inf
        %4918 = vmax.xlane.f32.xlu0 %v4917
        %v4919 = vpop.xlane.xlu0 %4918
        %v4920 = vsel %vm1244, %v4898, -inf
        %4921 = vmax.xlane.f32.xlu0 %v4920
        %v4922 = vpop.xlane.xlu0 %4921
        %v4923 = vsub.f32 %v4891, %v4901
        %v4924 = vsub.f32 %v4892, %v4904
        %v4925 = vsub.f32 %v4893, %v4907
        %v4926 = vsub.f32 %v4894, %v4910
        %v4927 = vsub.f32 %v4895, %v4913
        %v4928 = vsub.f32 %v4896, %v4916
        %v4929 = vsub.f32 %v4897, %v4919
        %v4930 = vsub.f32 %v4898, %v4922
        %v4931 = vmul.f32 %v4923, 1.442695
        %v4932 = vpow.pop %v4931
        %v4933 = vmul.f32 %v4924, 1.442695
        %v4934 = vpow.pop %v4933
        %v4935 = vmul.f32 %v4925, 1.442695
        %v4936 = vpow.pop %v4935
        %v4937 = vmul.f32 %v4926, 1.442695
        %v4938 = vpow.pop %v4937
        %v4939 = vmul.f32 %v4927, 1.442695
        %v4940 = vpow.pop %v4939
        %v4941 = vmul.f32 %v4928, 1.442695
        %v4942 = vpow.pop %v4941
        %v4943 = vmul.f32 %v4929, 1.442695
        %v4944 = vpow.pop %v4943
        %v4945 = vmul.f32 %v4930, 1.442695
        %v4946 = vpow.pop %v4945
        %v4947 = vsel %vm1244, %v4932, 0.0
        %4948 = vadd.xlane.f32.xlu0 %v4947
        %v4949 = vpop.xlane.xlu0 %4948
        %v4950 = vsel %vm1244, %v4934, 0.0
        %4951 = vadd.xlane.f32.xlu0 %v4950
        %v4952 = vpop.xlane.xlu0 %4951
        %v4953 = vsel %vm1244, %v4936, 0.0
        %4954 = vadd.xlane.f32.xlu0 %v4953
        %v4955 = vpop.xlane.xlu0 %4954
        %v4956 = vsel %vm1244, %v4938, 0.0
        %4957 = vadd.xlane.f32.xlu0 %v4956
        %v4958 = vpop.xlane.xlu0 %4957
        %v4959 = vsel %vm1244, %v4940, 0.0
        %4960 = vadd.xlane.f32.xlu0 %v4959
        %v4961 = vpop.xlane.xlu0 %4960
        %v4962 = vsel %vm1244, %v4942, 0.0
        %4963 = vadd.xlane.f32.xlu0 %v4962
        %v4964 = vpop.xlane.xlu0 %4963
        %v4965 = vsel %vm1244, %v4944, 0.0
        %4966 = vadd.xlane.f32.xlu0 %v4965
        %v4967 = vpop.xlane.xlu0 %4966
        %v4968 = vsel %vm1244, %v4946, 0.0
        %4969 = vadd.xlane.f32.xlu0 %v4968
        %v4970 = vpop.xlane.xlu0 %4969
        %v4971 = vrcp.pop %v4949
        %v4972 = vrcp.pop %v4952
        %v4973 = vrcp.pop %v4955
        %v4974 = vrcp.pop %v4958
        %v4975 = vrcp.pop %v4961
        %v4976 = vrcp.pop %v4964
        %v4977 = vrcp.pop %v4967
        %v4978 = vrcp.pop %v4970
        %v4979 = vmul.f32 %v4932, %v4971
        %v4980 = vmul.f32 %v4934, %v4972
        %v4981 = vmul.f32 %v4936, %v4973
        %v4982 = vmul.f32 %v4938, %v4974
        %v4983 = vmul.f32 %v4940, %v4975
        %v4984 = vmul.f32 %v4942, %v4976
        %v4985 = vmul.f32 %v4944, %v4977
        %v4986 = vmul.f32 %v4946, %v4978
        %4987 = vst.msk [vmem:[%s3802 + $0x8] sm:$0xff] %vm1244, %v4979
        %4988 = vst.msk [vmem:[%s3802 + $0x18] sm:$0xff] %vm1244, %v4980
        %4989 = vst.msk [vmem:[%s3802 + $0x28] sm:$0xff] %vm1244, %v4981
        %4990 = vst.msk [vmem:[%s3802 + $0x38] sm:$0xff] %vm1244, %v4982
        %4991 = vst.msk [vmem:[%s3802 + $0x48] sm:$0xff] %vm1244, %v4983
        %4992 = vst.msk [vmem:[%s3802 + $0x58] sm:$0xff] %vm1244, %v4984
        %4993 = vst.msk [vmem:[%s3802 + $0x68] sm:$0xff] %vm1244, %v4985
        %4994 = vst.msk [vmem:[%s3802 + $0x78] sm:$0xff] %vm1244, %v4986
        %4995 = vrot.lane.b32.xlu0 %v949, 80
        %v4996 = vpop.permute.xlu0 %4995
        %4997 = vrot.lane.b32.xlu0 %v954, 80
        %v4998 = vpop.permute.xlu0 %4997
        %4999 = vrot.lane.b32.xlu0 %v959, 80
        %v5000 = vpop.permute.xlu0 %4999
        %5001 = vrot.lane.b32.xlu0 %v964, 80
        %v5002 = vpop.permute.xlu0 %5001
        %5003 = vrot.lane.b32.xlu0 %v969, 80
        %v5004 = vpop.permute.xlu0 %5003
        %5005 = vrot.lane.b32.xlu0 %v974, 80
        %v5006 = vpop.permute.xlu0 %5005
        %5007 = vrot.lane.b32.xlu0 %v979, 80
        %v5008 = vpop.permute.xlu0 %5007
        %5009 = vrot.lane.b32.xlu0 %v984, 80
        %v5010 = vpop.permute.xlu0 %5009
        %v5020 = vsel %vm1244, %v4979, 0
        %v5023 = vsel %vm1244, %v4980, 0
        %v5026 = vsel %vm1244, %v4981, 0
        %v5029 = vsel %vm1244, %v4982, 0
        %v5032 = vsel %vm1244, %v4983, 0
        %v5035 = vsel %vm1244, %v4984, 0
        %v5038 = vsel %vm1244, %v4985, 0
        %v5041 = vsel %vm1244, %v4986, 0
        %5043 = vmatprep.subr.mxu0 0.0
        %5044 = vmatpush1.msra.mxu0 %v4996
        %5045 = vmatprep.subr.mxu0 0.0
        %5046 = vmatpush1.msra.mxu0 %v4998
        %5047 = vmatprep.subr.mxu0 0.0
        %5048 = vmatpush1.msra.mxu0 %v5000
        %5049 = vmatprep.subr.mxu0 0.0
        %5050 = vmatpush1.msra.mxu0 %v5002
        %5051 = vmatprep.subr.mxu0 0.0
        %5052 = vmatpush1.msra.mxu0 %v5004
        %5053 = vmatprep.subr.mxu0 0.0
        %5054 = vmatpush1.msra.mxu0 %v5006
        %5055 = vmatprep.subr.mxu0 0.0
        %5056 = vmatpush1.msra.mxu0 %v5008
        %5057 = vmatprep.subr.mxu0 0.0
        %5058 = vmatpush1.msra.mxu0 %v5010
        %5059 = vmatprep.subr.mxu0 0.0
        %5060 = vmatpush1.msra.mxu0 0.0
        %5061 = vmatprep.subr.mxu0 0.0
        %5062 = vmatpush1.msra.mxu0 0.0
        %5063 = vmatprep.subr.mxu0 0.0
        %5064 = vmatpush1.msra.mxu0 0.0
        %5065 = vmatprep.subr.mxu0 0.0
        %5066 = vmatpush1.msra.mxu0 0.0
        %5067 = vmatprep.subr.mxu0 0.0
        %5068 = vmatpush1.msra.mxu0 0.0
        %5069 = vmatprep.subr.mxu0 0.0
        %5070 = vmatpush1.msra.mxu0 0.0
        %5071 = vmatprep.subr.mxu0 0.0
        %5072 = vmatpush1.msra.mxu0 0.0
        %5073 = vmatprep.subr.mxu0 0.0
        %5074 = vmatpush1.msra.mxu0 0.0
        %5075 = vmatprep.subr.mxu0 0.0
        %5076 = vmatpush1.msra.mxu0 0.0
        %5077 = vmatprep.subr.mxu0 0.0
        %5078 = vmatpush1.msra.mxu0 0.0
        %5079 = vmatprep.subr.mxu0 0.0
        %5080 = vmatpush1.msra.mxu0 0.0
        %5081 = vmatprep.subr.mxu0 0.0
        %5082 = vmatpush1.msra.mxu0 0.0
        %5083 = vmatprep.subr.mxu0 0.0
        %5084 = vmatpush1.msra.mxu0 0.0
        %5085 = vmatprep.subr.mxu0 0.0
        %5086 = vmatpush1.msra.mxu0 0.0
        %5087 = vmatprep.subr.mxu0 0.0
        %5088 = vmatpush1.msra.mxu0 0.0
        %5089 = vmatprep.subr.mxu0 0.0
        %5090 = vmatpush1.msra.mxu0 0.0
        %5091 = vmatprep.subr.mxu0 0.0
        %5092 = vmatpush1.msra.mxu0 0.0
        %5093 = vmatprep.subr.mxu0 0.0
        %5094 = vmatpush1.msra.mxu0 0.0
        %5095 = vmatprep.subr.mxu0 0.0
        %5096 = vmatpush1.msra.mxu0 0.0
        %5097 = vmatprep.subr.mxu0 0.0
        %5098 = vmatpush1.msra.mxu0 0.0
        %5099 = vmatprep.subr.mxu0 0.0
        %5100 = vmatpush1.msra.mxu0 0.0
        %5101 = vmatprep.subr.mxu0 0.0
        %5102 = vmatpush1.msra.mxu0 0.0
        %5103 = vmatprep.subr.mxu0 0.0
        %5104 = vmatpush1.msra.mxu0 0.0
        %5105 = vmatprep.subr.mxu0 0.0
        %5106 = vmatpush1.msra.mxu0 0.0
        %5107 = vmatprep.mubr.f32.mxu0 0.0
        %5108 = vmatmul.mubr.f32.gmra.mrb[0].mxu0 %v5020
        %v5109 = vpop.f32.mrb[0].mxu0
        %v5110 = vadd.f32 0.0, %v5109
        %v5111 = vpop.f32.mrb[0].mxu0
        %5112 = vmatprep.mubr.f32.mxu0 0.0
        %5113 = vmatmul.mubr.f32.gmra.mrb[0].mxu0 %v5023
        %v5114 = vpop.f32.mrb[0].mxu0
        %v5115 = vadd.f32 0.0, %v5114
        %v5116 = vpop.f32.mrb[0].mxu0
        %5117 = vmatprep.mubr.f32.mxu0 0.0
        %5118 = vmatmul.mubr.f32.gmra.mrb[0].mxu0 %v5026
        %v5119 = vpop.f32.mrb[0].mxu0
        %v5120 = vadd.f32 0.0, %v5119
        %v5121 = vpop.f32.mrb[0].mxu0
        %5122 = vmatprep.mubr.f32.mxu0 0.0
        %5123 = vmatmul.mubr.f32.gmra.mrb[0].mxu0 %v5029
        %v5124 = vpop.f32.mrb[0].mxu0
        %v5125 = vadd.f32 0.0, %v5124
        %v5126 = vpop.f32.mrb[0].mxu0
        %5127 = vmatprep.mubr.f32.mxu0 0.0
        %5128 = vmatmul.mubr.f32.gmra.mrb[0].mxu0 %v5032
        %v5129 = vpop.f32.mrb[0].mxu0
        %v5130 = vadd.f32 0.0, %v5129
        %v5131 = vpop.f32.mrb[0].mxu0
        %5132 = vmatprep.mubr.f32.mxu0 0.0
        %5133 = vmatmul.mubr.f32.gmra.mrb[0].mxu0 %v5035
        %v5134 = vpop.f32.mrb[0].mxu0
        %v5135 = vadd.f32 0.0, %v5134
        %v5136 = vpop.f32.mrb[0].mxu0
        %5137 = vmatprep.mubr.f32.mxu0 0.0
        %5138 = vmatmul.mubr.f32.gmra.mrb[0].mxu0 %v5038
        %v5139 = vpop.f32.mrb[0].mxu0
        %v5140 = vadd.f32 0.0, %v5139
        %v5141 = vpop.f32.mrb[0].mxu0
        %5142 = vmatprep.mubr.f32.mxu0 0.0
        %5143 = vmatmul.mubr.f32.gmra.mrb[0].mxu0 %v5041
        %v5144 = vpop.f32.mrb[0].mxu0
        %v5145 = vadd.f32 0.0, %v5144
        %v5146 = vpop.f32.mrb[0].mxu0
        %5147 = vdwg.mxu0
        %v5148 = vld [vmem:[%s10 + $0x10] sm:$0xff]
        %v5150 = vsel %vm1058, %v5110, 0
        %v5153 = vsel %vm1058, %v5115, 0
        %v5156 = vsel %vm1058, %v5120, 0
        %v5159 = vsel %vm1058, %v5125, 0
        %v5162 = vsel %vm1058, %v5130, 0
        %v5165 = vsel %vm1058, %v5135, 0
        %v5168 = vsel %vm1058, %v5140, 0
        %v5171 = vsel %vm1058, %v5145, 0
        %5173 = vmatprep.subr.mxu0 0.0
        %5174 = vmatpush1.msra.mxu0 %v5148
        %5175 = vmatprep.subr.mxu0 0.0
        %5176 = vmatpush1.msra.mxu0 0.0
        %5177 = vmatprep.subr.mxu0 0.0
        %5178 = vmatpush1.msra.mxu0 0.0
        %5179 = vmatprep.subr.mxu0 0.0
        %5180 = vmatpush1.msra.mxu0 0.0
        %5181 = vmatprep.subr.mxu0 0.0
        %5182 = vmatpush1.msra.mxu0 0.0
        %5183 = vmatprep.subr.mxu0 0.0
        %5184 = vmatpush1.msra.mxu0 0.0
        %5185 = vmatprep.subr.mxu0 0.0
        %5186 = vmatpush1.msra.mxu0 0.0
        %5187 = vmatprep.subr.mxu0 0.0
        %5188 = vmatpush1.msra.mxu0 0.0
        %5189 = vmatprep.subr.mxu0 0.0
        %5190 = vmatpush1.msra.mxu0 0.0
        %5191 = vmatprep.subr.mxu0 0.0
        %5192 = vmatpush1.msra.mxu0 0.0
        %5193 = vmatprep.subr.mxu0 0.0
        %5194 = vmatpush1.msra.mxu0 0.0
        %5195 = vmatprep.subr.mxu0 0.0
        %5196 = vmatpush1.msra.mxu0 0.0
        %5197 = vmatprep.subr.mxu0 0.0
        %5198 = vmatpush1.msra.mxu0 0.0
        %5199 = vmatprep.subr.mxu0 0.0
        %5200 = vmatpush1.msra.mxu0 0.0
        %5201 = vmatprep.subr.mxu0 0.0
        %5202 = vmatpush1.msra.mxu0 0.0
        %5203 = vmatprep.subr.mxu0 0.0
        %5204 = vmatpush1.msra.mxu0 0.0
        %5205 = vmatprep.subr.mxu0 0.0
        %5206 = vmatpush1.msra.mxu0 0.0
        %5207 = vmatprep.subr.mxu0 0.0
        %5208 = vmatpush1.msra.mxu0 0.0
        %5209 = vmatprep.subr.mxu0 0.0
        %5210 = vmatpush1.msra.mxu0 0.0
        %5211 = vmatprep.subr.mxu0 0.0
        %5212 = vmatpush1.msra.mxu0 0.0
        %5213 = vmatprep.subr.mxu0 0.0
        %5214 = vmatpush1.msra.mxu0 0.0
        %5215 = vmatprep.subr.mxu0 0.0
        %5216 = vmatpush1.msra.mxu0 0.0
        %5217 = vmatprep.subr.mxu0 0.0
        %5218 = vmatpush1.msra.mxu0 0.0
        %5219 = vmatprep.subr.mxu0 0.0
        %5220 = vmatpush1.msra.mxu0 0.0
        %5221 = vmatprep.subr.mxu0 0.0
        %5222 = vmatpush1.msra.mxu0 0.0
        %5223 = vmatprep.subr.mxu0 0.0
        %5224 = vmatpush1.msra.mxu0 0.0
        %5225 = vmatprep.subr.mxu0 0.0
        %5226 = vmatpush1.msra.mxu0 0.0
        %5227 = vmatprep.subr.mxu0 0.0
        %5228 = vmatpush1.msra.mxu0 0.0
        %5229 = vmatprep.subr.mxu0 0.0
        %5230 = vmatpush1.msra.mxu0 0.0
        %5231 = vmatprep.subr.mxu0 0.0
        %5232 = vmatpush1.msra.mxu0 0.0
        %5233 = vmatprep.subr.mxu0 0.0
        %5234 = vmatpush1.msra.mxu0 0.0
        %5235 = vmatprep.subr.mxu0 0.0
        %5236 = vmatpush1.msra.mxu0 0.0
        %5237 = vmatprep.mubr.f32.mxu0 0.0
        %5238 = vmatmul.mubr.f32.gmra.mrb[0].mxu0 %v5150
        %v5239 = vpop.f32.mrb[0].mxu0
        %v5240 = vadd.f32 0.0, %v5239
        %v5241 = vpop.f32.mrb[0].mxu0
        %5242 = vmatprep.mubr.f32.mxu0 0.0
        %5243 = vmatmul.mubr.f32.gmra.mrb[0].mxu0 %v5153
        %v5244 = vpop.f32.mrb[0].mxu0
        %v5245 = vadd.f32 0.0, %v5244
        %v5246 = vpop.f32.mrb[0].mxu0
        %5247 = vmatprep.mubr.f32.mxu0 0.0
        %5248 = vmatmul.mubr.f32.gmra.mrb[0].mxu0 %v5156
        %v5249 = vpop.f32.mrb[0].mxu0
        %v5250 = vadd.f32 0.0, %v5249
        %v5251 = vpop.f32.mrb[0].mxu0
        %5252 = vmatprep.mubr.f32.mxu0 0.0
        %5253 = vmatmul.mubr.f32.gmra.mrb[0].mxu0 %v5159
        %v5254 = vpop.f32.mrb[0].mxu0
        %v5255 = vadd.f32 0.0, %v5254
        %v5256 = vpop.f32.mrb[0].mxu0
        %5257 = vmatprep.mubr.f32.mxu0 0.0
        %5258 = vmatmul.mubr.f32.gmra.mrb[0].mxu0 %v5162
        %v5259 = vpop.f32.mrb[0].mxu0
        %v5260 = vadd.f32 0.0, %v5259
        %v5261 = vpop.f32.mrb[0].mxu0
        %5262 = vmatprep.mubr.f32.mxu0 0.0
        %5263 = vmatmul.mubr.f32.gmra.mrb[0].mxu0 %v5165
        %v5264 = vpop.f32.mrb[0].mxu0
        %v5265 = vadd.f32 0.0, %v5264
        %v5266 = vpop.f32.mrb[0].mxu0
        %5267 = vmatprep.mubr.f32.mxu0 0.0
        %5268 = vmatmul.mubr.f32.gmra.mrb[0].mxu0 %v5168
        %v5269 = vpop.f32.mrb[0].mxu0
        %v5270 = vadd.f32 0.0, %v5269
        %v5271 = vpop.f32.mrb[0].mxu0
        %5272 = vmatprep.mubr.f32.mxu0 0.0
        %5273 = vmatmul.mubr.f32.gmra.mrb[0].mxu0 %v5171
        %v5274 = vpop.f32.mrb[0].mxu0
        %v5275 = vadd.f32 0.0, %v5274
        %v5276 = vpop.f32.mrb[0].mxu0
        %5277 = vdwg.mxu0
        %v5278 = vadd.f32 %v4660, %v5240
        %v5279 = vadd.f32 %v4665, %v5245
        %v5280 = vadd.f32 %v4670, %v5250
        %v5281 = vadd.f32 %v4675, %v5255
        %v5282 = vadd.f32 %v4680, %v5260
        %v5283 = vadd.f32 %v4685, %v5265
        %v5284 = vadd.f32 %v4690, %v5270
        %v5285 = vadd.f32 %v4695, %v5275
        %5286 = vrot.lane.b32.xlu0 %v775, 104
        %v5287 = vpop.permute.xlu0 %5286
        %5288 = vrot.lane.b32.xlu0 %v776, 104
        %v5289 = vpop.permute.xlu0 %5288
        %5290 = vrot.lane.b32.xlu0 %v777, 104
        %v5291 = vpop.permute.xlu0 %5290
        %5292 = vrot.lane.b32.xlu0 %v778, 104
        %v5293 = vpop.permute.xlu0 %5292
        %5294 = vrot.lane.b32.xlu0 %v779, 104
        %v5295 = vpop.permute.xlu0 %5294
        %5296 = vrot.lane.b32.xlu0 %v780, 104
        %v5297 = vpop.permute.xlu0 %5296
        %5298 = vrot.lane.b32.xlu0 %v781, 104
        %v5299 = vpop.permute.xlu0 %5298
        %5300 = vrot.lane.b32.xlu0 %v782, 104
        %v5301 = vpop.permute.xlu0 %5300
        %5302 = vrot.lane.b32.xlu0 %v949, 104
        %v5303 = vpop.permute.xlu0 %5302
        %5304 = vrot.lane.b32.xlu0 %v954, 104
        %v5305 = vpop.permute.xlu0 %5304
        %5306 = vrot.lane.b32.xlu0 %v959, 104
        %v5307 = vpop.permute.xlu0 %5306
        %5308 = vrot.lane.b32.xlu0 %v964, 104
        %v5309 = vpop.permute.xlu0 %5308
        %5310 = vrot.lane.b32.xlu0 %v969, 104
        %v5311 = vpop.permute.xlu0 %5310
        %5312 = vrot.lane.b32.xlu0 %v974, 104
        %v5313 = vpop.permute.xlu0 %5312
        %5314 = vrot.lane.b32.xlu0 %v979, 104
        %v5315 = vpop.permute.xlu0 %5314
        %5316 = vrot.lane.b32.xlu0 %v984, 104
        %v5317 = vpop.permute.xlu0 %5316
        %v5318 = vsel %vm1058, %v5287, 0
        %v5320 = vsel %vm1058, %v5289, 0
        %v5322 = vsel %vm1058, %v5291, 0
        %v5324 = vsel %vm1058, %v5293, 0
        %v5326 = vsel %vm1058, %v5295, 0
        %v5328 = vsel %vm1058, %v5297, 0
        %v5330 = vsel %vm1058, %v5299, 0
        %v5332 = vsel %vm1058, %v5301, 0
        %v5334 = vsel %vm1058, %v5303, 0
        %v5336 = vsel %vm1058, %v5305, 0
        %v5338 = vsel %vm1058, %v5307, 0
        %v5340 = vsel %vm1058, %v5309, 0
        %v5342 = vsel %vm1058, %v5311, 0
        %v5344 = vsel %vm1058, %v5313, 0
        %v5346 = vsel %vm1058, %v5315, 0
        %v5348 = vsel %vm1058, %v5317, 0
        %5350 = vmatprep.subr.mxu0 0.0
        %5351 = vmatpush1.xpose.msra.mxu0 %v5334
        %5352 = vmatprep.subr.mxu0 0.0
        %5353 = vmatpush1.xpose.msra.mxu0 %v5336
        %5354 = vmatprep.subr.mxu0 0.0
        %5355 = vmatpush1.xpose.msra.mxu0 %v5338
        %5356 = vmatprep.subr.mxu0 0.0
        %5357 = vmatpush1.xpose.msra.mxu0 %v5340
        %5358 = vmatprep.subr.mxu0 0.0
        %5359 = vmatpush1.xpose.msra.mxu0 %v5342
        %5360 = vmatprep.subr.mxu0 0.0
        %5361 = vmatpush1.xpose.msra.mxu0 %v5344
        %5362 = vmatprep.subr.mxu0 0.0
        %5363 = vmatpush1.xpose.msra.mxu0 %v5346
        %5364 = vmatprep.subr.mxu0 0.0
        %5365 = vmatpush1.xpose.msra.mxu0 %v5348
        %5366 = vmatprep.subr.mxu0 0.0
        %5367 = vmatpush1.xpose.msra.mxu0 0.0
        %5368 = vmatprep.subr.mxu0 0.0
        %5369 = vmatpush1.xpose.msra.mxu0 0.0
        %5370 = vmatprep.subr.mxu0 0.0
        %5371 = vmatpush1.xpose.msra.mxu0 0.0
        %5372 = vmatprep.subr.mxu0 0.0
        %5373 = vmatpush1.xpose.msra.mxu0 0.0
        %5374 = vmatprep.subr.mxu0 0.0
        %5375 = vmatpush1.xpose.msra.mxu0 0.0
        %5376 = vmatprep.subr.mxu0 0.0
        %5377 = vmatpush1.xpose.msra.mxu0 0.0
        %5378 = vmatprep.subr.mxu0 0.0
        %5379 = vmatpush1.xpose.msra.mxu0 0.0
        %5380 = vmatprep.subr.mxu0 0.0
        %5381 = vmatpush1.xpose.msra.mxu0 0.0
        %5382 = vmatprep.subr.mxu0 0.0
        %5383 = vmatpush1.xpose.msra.mxu0 0.0
        %5384 = vmatprep.subr.mxu0 0.0
        %5385 = vmatpush1.xpose.msra.mxu0 0.0
        %5386 = vmatprep.subr.mxu0 0.0
        %5387 = vmatpush1.xpose.msra.mxu0 0.0
        %5388 = vmatprep.subr.mxu0 0.0
        %5389 = vmatpush1.xpose.msra.mxu0 0.0
        %5390 = vmatprep.subr.mxu0 0.0
        %5391 = vmatpush1.xpose.msra.mxu0 0.0
        %5392 = vmatprep.subr.mxu0 0.0
        %5393 = vmatpush1.xpose.msra.mxu0 0.0
        %5394 = vmatprep.subr.mxu0 0.0
        %5395 = vmatpush1.xpose.msra.mxu0 0.0
        %5396 = vmatprep.subr.mxu0 0.0
        %5397 = vmatpush1.xpose.msra.mxu0 0.0
        %5398 = vmatprep.subr.mxu0 0.0
        %5399 = vmatpush1.xpose.msra.mxu0 0.0
        %5400 = vmatprep.subr.mxu0 0.0
        %5401 = vmatpush1.xpose.msra.mxu0 0.0
        %5402 = vmatprep.subr.mxu0 0.0
        %5403 = vmatpush1.xpose.msra.mxu0 0.0
        %5404 = vmatprep.subr.mxu0 0.0
        %5405 = vmatpush1.xpose.msra.mxu0 0.0
        %5406 = vmatprep.subr.mxu0 0.0
        %5407 = vmatpush1.xpose.msra.mxu0 0.0
        %5408 = vmatprep.subr.mxu0 0.0
        %5409 = vmatpush1.xpose.msra.mxu0 0.0
        %5410 = vmatprep.subr.mxu0 0.0
        %5411 = vmatpush1.xpose.msra.mxu0 0.0
        %5412 = vmatprep.subr.mxu0 0.0
        %5413 = vmatpush1.xpose.msra.mxu0 0.0
        %5414 = vmatprep.mubr.f32.mxu0 0.0
        %5415 = vmatmul.mubr.f32.gmra.mrb[0].mxu0 %v5318
        %v5416 = vpop.f32.mrb[0].mxu0
        %v5417 = vadd.f32 0.0, %v5416
        %v5418 = vpop.f32.mrb[0].mxu0
        %5419 = vmatprep.mubr.f32.mxu0 0.0
        %5420 = vmatmul.mubr.f32.gmra.mrb[0].mxu0 %v5320
        %v5421 = vpop.f32.mrb[0].mxu0
        %v5422 = vadd.f32 0.0, %v5421
        %v5423 = vpop.f32.mrb[0].mxu0
        %5424 = vmatprep.mubr.f32.mxu0 0.0
        %5425 = vmatmul.mubr.f32.gmra.mrb[0].mxu0 %v5322
        %v5426 = vpop.f32.mrb[0].mxu0
        %v5427 = vadd.f32 0.0, %v5426
        %v5428 = vpop.f32.mrb[0].mxu0
        %5429 = vmatprep.mubr.f32.mxu0 0.0
        %5430 = vmatmul.mubr.f32.gmra.mrb[0].mxu0 %v5324
        %v5431 = vpop.f32.mrb[0].mxu0
        %v5432 = vadd.f32 0.0, %v5431
        %v5433 = vpop.f32.mrb[0].mxu0
        %5434 = vmatprep.mubr.f32.mxu0 0.0
        %5435 = vmatmul.mubr.f32.gmra.mrb[0].mxu0 %v5326
        %v5436 = vpop.f32.mrb[0].mxu0
        %v5437 = vadd.f32 0.0, %v5436
        %v5438 = vpop.f32.mrb[0].mxu0
        %5439 = vmatprep.mubr.f32.mxu0 0.0
        %5440 = vmatmul.mubr.f32.gmra.mrb[0].mxu0 %v5328
        %v5441 = vpop.f32.mrb[0].mxu0
        %v5442 = vadd.f32 0.0, %v5441
        %v5443 = vpop.f32.mrb[0].mxu0
        %5444 = vmatprep.mubr.f32.mxu0 0.0
        %5445 = vmatmul.mubr.f32.gmra.mrb[0].mxu0 %v5330
        %v5446 = vpop.f32.mrb[0].mxu0
        %v5447 = vadd.f32 0.0, %v5446
        %v5448 = vpop.f32.mrb[0].mxu0
        %5449 = vmatprep.mubr.f32.mxu0 0.0
        %5450 = vmatmul.mubr.f32.gmra.mrb[0].mxu0 %v5332
        %v5451 = vpop.f32.mrb[0].mxu0
        %v5452 = vadd.f32 0.0, %v5451
        %v5453 = vpop.f32.mrb[0].mxu0
        %5454 = vdwg.mxu0
        %v5455 = vmul.f32 %v5417, %v3512
        %v5456 = vmul.f32 %v5422, %v3513
        %v5457 = vmul.f32 %v5427, %v3514
        %v5458 = vmul.f32 %v5432, %v3515
        %v5459 = vmul.f32 %v5437, %v3516
        %v5460 = vmul.f32 %v5442, %v3517
        %v5461 = vmul.f32 %v5447, %v3518
        %v5462 = vmul.f32 %v5452, %v3519
        %v5463 = vld [vmem:[%s2996] sm:$0xff]
        %v5464 = vld [vmem:[%s2996 + $0x8] sm:$0xff]
        %v5465 = vld [vmem:[%s2996 + $0x10] sm:$0xff]
        %v5466 = vld [vmem:[%s2996 + $0x18] sm:$0xff]
        %v5467 = vld [vmem:[%s2996 + $0x20] sm:$0xff]
        %v5468 = vld [vmem:[%s2996 + $0x28] sm:$0xff]
        %v5469 = vld [vmem:[%s2996 + $0x30] sm:$0xff]
        %v5470 = vld [vmem:[%s2996 + $0x38] sm:$0xff]
        %v5471 = vadd.f32 %v5455, %v5463
        %v5472 = vadd.f32 %v5456, %v5464
        %v5473 = vadd.f32 %v5457, %v5465
        %v5474 = vadd.f32 %v5458, %v5466
        %v5475 = vadd.f32 %v5459, %v5467
        %v5476 = vadd.f32 %v5460, %v5468
        %v5477 = vadd.f32 %v5461, %v5469
        %v5478 = vadd.f32 %v5462, %v5470
        %v5479 = vadd.f32 %v5471, %v3521
        %v5480 = vadd.f32 %v5472, %v3522
        %v5481 = vadd.f32 %v5473, %v3523
        %v5482 = vadd.f32 %v5474, %v3524
        %v5483 = vadd.f32 %v5475, %v3525
        %v5484 = vadd.f32 %v5476, %v3526
        %v5485 = vadd.f32 %v5477, %v3527
        %v5486 = vadd.f32 %v5478, %v3528
        %v5487 = vsel %vm1244, %v5479, -inf
        %5488 = vmax.xlane.f32.xlu0 %v5487
        %v5489 = vpop.xlane.xlu0 %5488
        %v5490 = vsel %vm1244, %v5480, -inf
        %5491 = vmax.xlane.f32.xlu0 %v5490
        %v5492 = vpop.xlane.xlu0 %5491
        %v5493 = vsel %vm1244, %v5481, -inf
        %5494 = vmax.xlane.f32.xlu0 %v5493
        %v5495 = vpop.xlane.xlu0 %5494
        %v5496 = vsel %vm1244, %v5482, -inf
        %5497 = vmax.xlane.f32.xlu0 %v5496
        %v5498 = vpop.xlane.xlu0 %5497
        %v5499 = vsel %vm1244, %v5483, -inf
        %5500 = vmax.xlane.f32.xlu0 %v5499
        %v5501 = vpop.xlane.xlu0 %5500
        %v5502 = vsel %vm1244, %v5484, -inf
        %5503 = vmax.xlane.f32.xlu0 %v5502
        %v5504 = vpop.xlane.xlu0 %5503
        %v5505 = vsel %vm1244, %v5485, -inf
        %5506 = vmax.xlane.f32.xlu0 %v5505
        %v5507 = vpop.xlane.xlu0 %5506
        %v5508 = vsel %vm1244, %v5486, -inf
        %5509 = vmax.xlane.f32.xlu0 %v5508
        %v5510 = vpop.xlane.xlu0 %5509
        %v5511 = vsub.f32 %v5479, %v5489
        %v5512 = vsub.f32 %v5480, %v5492
        %v5513 = vsub.f32 %v5481, %v5495
        %v5514 = vsub.f32 %v5482, %v5498
        %v5515 = vsub.f32 %v5483, %v5501
        %v5516 = vsub.f32 %v5484, %v5504
        %v5517 = vsub.f32 %v5485, %v5507
        %v5518 = vsub.f32 %v5486, %v5510
        %v5519 = vmul.f32 %v5511, 1.442695
        %v5520 = vpow.pop %v5519
        %v5521 = vmul.f32 %v5512, 1.442695
        %v5522 = vpow.pop %v5521
        %v5523 = vmul.f32 %v5513, 1.442695
        %v5524 = vpow.pop %v5523
        %v5525 = vmul.f32 %v5514, 1.442695
        %v5526 = vpow.pop %v5525
        %v5527 = vmul.f32 %v5515, 1.442695
        %v5528 = vpow.pop %v5527
        %v5529 = vmul.f32 %v5516, 1.442695
        %v5530 = vpow.pop %v5529
        %v5531 = vmul.f32 %v5517, 1.442695
        %v5532 = vpow.pop %v5531
        %v5533 = vmul.f32 %v5518, 1.442695
        %v5534 = vpow.pop %v5533
        %v5535 = vsel %vm1244, %v5520, 0.0
        %5536 = vadd.xlane.f32.xlu0 %v5535
        %v5537 = vpop.xlane.xlu0 %5536
        %v5538 = vsel %vm1244, %v5522, 0.0
        %5539 = vadd.xlane.f32.xlu0 %v5538
        %v5540 = vpop.xlane.xlu0 %5539
        %v5541 = vsel %vm1244, %v5524, 0.0
        %5542 = vadd.xlane.f32.xlu0 %v5541
        %v5543 = vpop.xlane.xlu0 %5542
        %v5544 = vsel %vm1244, %v5526, 0.0
        %5545 = vadd.xlane.f32.xlu0 %v5544
        %v5546 = vpop.xlane.xlu0 %5545
        %v5547 = vsel %vm1244, %v5528, 0.0
        %5548 = vadd.xlane.f32.xlu0 %v5547
        %v5549 = vpop.xlane.xlu0 %5548
        %v5550 = vsel %vm1244, %v5530, 0.0
        %5551 = vadd.xlane.f32.xlu0 %v5550
        %v5552 = vpop.xlane.xlu0 %5551
        %v5553 = vsel %vm1244, %v5532, 0.0
        %5554 = vadd.xlane.f32.xlu0 %v5553
        %v5555 = vpop.xlane.xlu0 %5554
        %v5556 = vsel %vm1244, %v5534, 0.0
        %5557 = vadd.xlane.f32.xlu0 %v5556
        %v5558 = vpop.xlane.xlu0 %5557
        %v5559 = vrcp.pop %v5537
        %v5560 = vrcp.pop %v5540
        %v5561 = vrcp.pop %v5543
        %v5562 = vrcp.pop %v5546
        %v5563 = vrcp.pop %v5549
        %v5564 = vrcp.pop %v5552
        %v5565 = vrcp.pop %v5555
        %v5566 = vrcp.pop %v5558
        %v5567 = vmul.f32 %v5520, %v5559
        %v5568 = vmul.f32 %v5522, %v5560
        %v5569 = vmul.f32 %v5524, %v5561
        %v5570 = vmul.f32 %v5526, %v5562
        %v5571 = vmul.f32 %v5528, %v5563
        %v5572 = vmul.f32 %v5530, %v5564
        %v5573 = vmul.f32 %v5532, %v5565
        %v5574 = vmul.f32 %v5534, %v5566
        %5583 = vrot.lane.b32.xlu0 %v5567, 64
        %v5584 = vpop.permute.xlu0 %5583
        %5585 = vrot.lane.b32.xlu0 %v5568, 64
        %v5586 = vpop.permute.xlu0 %5585
        %5587 = vrot.lane.b32.xlu0 %v5569, 64
        %v5588 = vpop.permute.xlu0 %5587
        %5589 = vrot.lane.b32.xlu0 %v5570, 64
        %v5590 = vpop.permute.xlu0 %5589
        %5591 = vrot.lane.b32.xlu0 %v5571, 64
        %v5592 = vpop.permute.xlu0 %5591
        %5593 = vrot.lane.b32.xlu0 %v5572, 64
        %v5594 = vpop.permute.xlu0 %5593
        %5595 = vrot.lane.b32.xlu0 %v5573, 64
        %v5596 = vpop.permute.xlu0 %5595
        %5597 = vrot.lane.b32.xlu0 %v5574, 64
        %v5598 = vpop.permute.xlu0 %5597
        %5607 = vst.msk [vmem:[%s3802 + $0x8] sm:$0xff] %vm1817, %v5584
        %5608 = vst.msk [vmem:[%s3802 + $0x18] sm:$0xff] %vm1817, %v5586
        %5609 = vst.msk [vmem:[%s3802 + $0x28] sm:$0xff] %vm1817, %v5588
        %5610 = vst.msk [vmem:[%s3802 + $0x38] sm:$0xff] %vm1817, %v5590
        %5611 = vst.msk [vmem:[%s3802 + $0x48] sm:$0xff] %vm1817, %v5592
        %5612 = vst.msk [vmem:[%s3802 + $0x58] sm:$0xff] %vm1817, %v5594
        %5613 = vst.msk [vmem:[%s3802 + $0x68] sm:$0xff] %vm1817, %v5596
        %5614 = vst.msk [vmem:[%s3802 + $0x78] sm:$0xff] %vm1817, %v5598
        %5615 = vrot.lane.b32.xlu0 %v949, 72
        %v5616 = vpop.permute.xlu0 %5615
        %5617 = vrot.lane.b32.xlu0 %v954, 72
        %v5618 = vpop.permute.xlu0 %5617
        %5619 = vrot.lane.b32.xlu0 %v959, 72
        %v5620 = vpop.permute.xlu0 %5619
        %5621 = vrot.lane.b32.xlu0 %v964, 72
        %v5622 = vpop.permute.xlu0 %5621
        %5623 = vrot.lane.b32.xlu0 %v969, 72
        %v5624 = vpop.permute.xlu0 %5623
        %5625 = vrot.lane.b32.xlu0 %v974, 72
        %v5626 = vpop.permute.xlu0 %5625
        %5627 = vrot.lane.b32.xlu0 %v979, 72
        %v5628 = vpop.permute.xlu0 %5627
        %5629 = vrot.lane.b32.xlu0 %v984, 72
        %v5630 = vpop.permute.xlu0 %5629
        %v5639 = vsel %vm1244, %v5567, 0
        %v5641 = vsel %vm1244, %v5568, 0
        %v5643 = vsel %vm1244, %v5569, 0
        %v5645 = vsel %vm1244, %v5570, 0
        %v5647 = vsel %vm1244, %v5571, 0
        %v5649 = vsel %vm1244, %v5572, 0
        %v5651 = vsel %vm1244, %v5573, 0
        %v5653 = vsel %vm1244, %v5574, 0
        %5655 = vmatprep.subr.mxu0 0.0
        %5656 = vmatpush1.msra.mxu0 %v5616
        %5657 = vmatprep.subr.mxu0 0.0
        %5658 = vmatpush1.msra.mxu0 %v5618
        %5659 = vmatprep.subr.mxu0 0.0
        %5660 = vmatpush1.msra.mxu0 %v5620
        %5661 = vmatprep.subr.mxu0 0.0
        %5662 = vmatpush1.msra.mxu0 %v5622
        %5663 = vmatprep.subr.mxu0 0.0
        %5664 = vmatpush1.msra.mxu0 %v5624
        %5665 = vmatprep.subr.mxu0 0.0
        %5666 = vmatpush1.msra.mxu0 %v5626
        %5667 = vmatprep.subr.mxu0 0.0
        %5668 = vmatpush1.msra.mxu0 %v5628
        %5669 = vmatprep.subr.mxu0 0.0
        %5670 = vmatpush1.msra.mxu0 %v5630
        %5671 = vmatprep.subr.mxu0 0.0
        %5672 = vmatpush1.msra.mxu0 0.0
        %5673 = vmatprep.subr.mxu0 0.0
        %5674 = vmatpush1.msra.mxu0 0.0
        %5675 = vmatprep.subr.mxu0 0.0
        %5676 = vmatpush1.msra.mxu0 0.0
        %5677 = vmatprep.subr.mxu0 0.0
        %5678 = vmatpush1.msra.mxu0 0.0
        %5679 = vmatprep.subr.mxu0 0.0
        %5680 = vmatpush1.msra.mxu0 0.0
        %5681 = vmatprep.subr.mxu0 0.0
        %5682 = vmatpush1.msra.mxu0 0.0
        %5683 = vmatprep.subr.mxu0 0.0
        %5684 = vmatpush1.msra.mxu0 0.0
        %5685 = vmatprep.subr.mxu0 0.0
        %5686 = vmatpush1.msra.mxu0 0.0
        %5687 = vmatprep.subr.mxu0 0.0
        %5688 = vmatpush1.msra.mxu0 0.0
        %5689 = vmatprep.subr.mxu0 0.0
        %5690 = vmatpush1.msra.mxu0 0.0
        %5691 = vmatprep.subr.mxu0 0.0
        %5692 = vmatpush1.msra.mxu0 0.0
        %5693 = vmatprep.subr.mxu0 0.0
        %5694 = vmatpush1.msra.mxu0 0.0
        %5695 = vmatprep.subr.mxu0 0.0
        %5696 = vmatpush1.msra.mxu0 0.0
        %5697 = vmatprep.subr.mxu0 0.0
        %5698 = vmatpush1.msra.mxu0 0.0
        %5699 = vmatprep.subr.mxu0 0.0
        %5700 = vmatpush1.msra.mxu0 0.0
        %5701 = vmatprep.subr.mxu0 0.0
        %5702 = vmatpush1.msra.mxu0 0.0
        %5703 = vmatprep.subr.mxu0 0.0
        %5704 = vmatpush1.msra.mxu0 0.0
        %5705 = vmatprep.subr.mxu0 0.0
        %5706 = vmatpush1.msra.mxu0 0.0
        %5707 = vmatprep.subr.mxu0 0.0
        %5708 = vmatpush1.msra.mxu0 0.0
        %5709 = vmatprep.subr.mxu0 0.0
        %5710 = vmatpush1.msra.mxu0 0.0
        %5711 = vmatprep.subr.mxu0 0.0
        %5712 = vmatpush1.msra.mxu0 0.0
        %5713 = vmatprep.subr.mxu0 0.0
        %5714 = vmatpush1.msra.mxu0 0.0
        %5715 = vmatprep.subr.mxu0 0.0
        %5716 = vmatpush1.msra.mxu0 0.0
        %5717 = vmatprep.subr.mxu0 0.0
        %5718 = vmatpush1.msra.mxu0 0.0
        %5719 = vmatprep.mubr.f32.mxu0 0.0
        %5720 = vmatmul.mubr.f32.gmra.mrb[0].mxu0 %v5639
        %v5721 = vpop.f32.mrb[0].mxu0
        %v5722 = vadd.f32 0.0, %v5721
        %v5723 = vpop.f32.mrb[0].mxu0
        %5724 = vmatprep.mubr.f32.mxu0 0.0
        %5725 = vmatmul.mubr.f32.gmra.mrb[0].mxu0 %v5641
        %v5726 = vpop.f32.mrb[0].mxu0
        %v5727 = vadd.f32 0.0, %v5726
        %v5728 = vpop.f32.mrb[0].mxu0
        %5729 = vmatprep.mubr.f32.mxu0 0.0
        %5730 = vmatmul.mubr.f32.gmra.mrb[0].mxu0 %v5643
        %v5731 = vpop.f32.mrb[0].mxu0
        %v5732 = vadd.f32 0.0, %v5731
        %v5733 = vpop.f32.mrb[0].mxu0
        %5734 = vmatprep.mubr.f32.mxu0 0.0
        %5735 = vmatmul.mubr.f32.gmra.mrb[0].mxu0 %v5645
        %v5736 = vpop.f32.mrb[0].mxu0
        %v5737 = vadd.f32 0.0, %v5736
        %v5738 = vpop.f32.mrb[0].mxu0
        %5739 = vmatprep.mubr.f32.mxu0 0.0
        %5740 = vmatmul.mubr.f32.gmra.mrb[0].mxu0 %v5647
        %v5741 = vpop.f32.mrb[0].mxu0
        %v5742 = vadd.f32 0.0, %v5741
        %v5743 = vpop.f32.mrb[0].mxu0
        %5744 = vmatprep.mubr.f32.mxu0 0.0
        %5745 = vmatmul.mubr.f32.gmra.mrb[0].mxu0 %v5649
        %v5746 = vpop.f32.mrb[0].mxu0
        %v5747 = vadd.f32 0.0, %v5746
        %v5748 = vpop.f32.mrb[0].mxu0
        %5749 = vmatprep.mubr.f32.mxu0 0.0
        %5750 = vmatmul.mubr.f32.gmra.mrb[0].mxu0 %v5651
        %v5751 = vpop.f32.mrb[0].mxu0
        %v5752 = vadd.f32 0.0, %v5751
        %v5753 = vpop.f32.mrb[0].mxu0
        %5754 = vmatprep.mubr.f32.mxu0 0.0
        %5755 = vmatmul.mubr.f32.gmra.mrb[0].mxu0 %v5653
        %v5756 = vpop.f32.mrb[0].mxu0
        %v5757 = vadd.f32 0.0, %v5756
        %v5758 = vpop.f32.mrb[0].mxu0
        %5759 = vdwg.mxu0
        %v5760 = vld [vmem:[%s10 + $0x18] sm:$0xff]
        %v5762 = vsel %vm1058, %v5722, 0
        %v5765 = vsel %vm1058, %v5727, 0
        %v5768 = vsel %vm1058, %v5732, 0
        %v5771 = vsel %vm1058, %v5737, 0
        %v5774 = vsel %vm1058, %v5742, 0
        %v5777 = vsel %vm1058, %v5747, 0
        %v5780 = vsel %vm1058, %v5752, 0
        %v5783 = vsel %vm1058, %v5757, 0
        %5785 = vmatprep.subr.mxu0 0.0
        %5786 = vmatpush1.msra.mxu0 %v5760
        %5787 = vmatprep.subr.mxu0 0.0
        %5788 = vmatpush1.msra.mxu0 0.0
        %5789 = vmatprep.subr.mxu0 0.0
        %5790 = vmatpush1.msra.mxu0 0.0
        %5791 = vmatprep.subr.mxu0 0.0
        %5792 = vmatpush1.msra.mxu0 0.0
        %5793 = vmatprep.subr.mxu0 0.0
        %5794 = vmatpush1.msra.mxu0 0.0
        %5795 = vmatprep.subr.mxu0 0.0
        %5796 = vmatpush1.msra.mxu0 0.0
        %5797 = vmatprep.subr.mxu0 0.0
        %5798 = vmatpush1.msra.mxu0 0.0
        %5799 = vmatprep.subr.mxu0 0.0
        %5800 = vmatpush1.msra.mxu0 0.0
        %5801 = vmatprep.subr.mxu0 0.0
        %5802 = vmatpush1.msra.mxu0 0.0
        %5803 = vmatprep.subr.mxu0 0.0
        %5804 = vmatpush1.msra.mxu0 0.0
        %5805 = vmatprep.subr.mxu0 0.0
        %5806 = vmatpush1.msra.mxu0 0.0
        %5807 = vmatprep.subr.mxu0 0.0
        %5808 = vmatpush1.msra.mxu0 0.0
        %5809 = vmatprep.subr.mxu0 0.0
        %5810 = vmatpush1.msra.mxu0 0.0
        %5811 = vmatprep.subr.mxu0 0.0
        %5812 = vmatpush1.msra.mxu0 0.0
        %5813 = vmatprep.subr.mxu0 0.0
        %5814 = vmatpush1.msra.mxu0 0.0
        %5815 = vmatprep.subr.mxu0 0.0
        %5816 = vmatpush1.msra.mxu0 0.0
        %5817 = vmatprep.subr.mxu0 0.0
        %5818 = vmatpush1.msra.mxu0 0.0
        %5819 = vmatprep.subr.mxu0 0.0
        %5820 = vmatpush1.msra.mxu0 0.0
        %5821 = vmatprep.subr.mxu0 0.0
        %5822 = vmatpush1.msra.mxu0 0.0
        %5823 = vmatprep.subr.mxu0 0.0
        %5824 = vmatpush1.msra.mxu0 0.0
        %5825 = vmatprep.subr.mxu0 0.0
        %5826 = vmatpush1.msra.mxu0 0.0
        %5827 = vmatprep.subr.mxu0 0.0
        %5828 = vmatpush1.msra.mxu0 0.0
        %5829 = vmatprep.subr.mxu0 0.0
        %5830 = vmatpush1.msra.mxu0 0.0
        %5831 = vmatprep.subr.mxu0 0.0
        %5832 = vmatpush1.msra.mxu0 0.0
        %5833 = vmatprep.subr.mxu0 0.0
        %5834 = vmatpush1.msra.mxu0 0.0
        %5835 = vmatprep.subr.mxu0 0.0
        %5836 = vmatpush1.msra.mxu0 0.0
        %5837 = vmatprep.subr.mxu0 0.0
        %5838 = vmatpush1.msra.mxu0 0.0
        %5839 = vmatprep.subr.mxu0 0.0
        %5840 = vmatpush1.msra.mxu0 0.0
        %5841 = vmatprep.subr.mxu0 0.0
        %5842 = vmatpush1.msra.mxu0 0.0
        %5843 = vmatprep.subr.mxu0 0.0
        %5844 = vmatpush1.msra.mxu0 0.0
        %5845 = vmatprep.subr.mxu0 0.0
        %5846 = vmatpush1.msra.mxu0 0.0
        %5847 = vmatprep.subr.mxu0 0.0
        %5848 = vmatpush1.msra.mxu0 0.0
        %5849 = vmatprep.mubr.f32.mxu0 0.0
        %5850 = vmatmul.mubr.f32.gmra.mrb[0].mxu0 %v5762
        %v5851 = vpop.f32.mrb[0].mxu0
        %v5852 = vadd.f32 0.0, %v5851
        %v5853 = vpop.f32.mrb[0].mxu0
        %5854 = vmatprep.mubr.f32.mxu0 0.0
        %5855 = vmatmul.mubr.f32.gmra.mrb[0].mxu0 %v5765
        %v5856 = vpop.f32.mrb[0].mxu0
        %v5857 = vadd.f32 0.0, %v5856
        %v5858 = vpop.f32.mrb[0].mxu0
        %5859 = vmatprep.mubr.f32.mxu0 0.0
        %5860 = vmatmul.mubr.f32.gmra.mrb[0].mxu0 %v5768
        %v5861 = vpop.f32.mrb[0].mxu0
        %v5862 = vadd.f32 0.0, %v5861
        %v5863 = vpop.f32.mrb[0].mxu0
        %5864 = vmatprep.mubr.f32.mxu0 0.0
        %5865 = vmatmul.mubr.f32.gmra.mrb[0].mxu0 %v5771
        %v5866 = vpop.f32.mrb[0].mxu0
        %v5867 = vadd.f32 0.0, %v5866
        %v5868 = vpop.f32.mrb[0].mxu0
        %5869 = vmatprep.mubr.f32.mxu0 0.0
        %5870 = vmatmul.mubr.f32.gmra.mrb[0].mxu0 %v5774
        %v5871 = vpop.f32.mrb[0].mxu0
        %v5872 = vadd.f32 0.0, %v5871
        %v5873 = vpop.f32.mrb[0].mxu0
        %5874 = vmatprep.mubr.f32.mxu0 0.0
        %5875 = vmatmul.mubr.f32.gmra.mrb[0].mxu0 %v5777
        %v5876 = vpop.f32.mrb[0].mxu0
        %v5877 = vadd.f32 0.0, %v5876
        %v5878 = vpop.f32.mrb[0].mxu0
        %5879 = vmatprep.mubr.f32.mxu0 0.0
        %5880 = vmatmul.mubr.f32.gmra.mrb[0].mxu0 %v5780
        %v5881 = vpop.f32.mrb[0].mxu0
        %v5882 = vadd.f32 0.0, %v5881
        %v5883 = vpop.f32.mrb[0].mxu0
        %5884 = vmatprep.mubr.f32.mxu0 0.0
        %5885 = vmatmul.mubr.f32.gmra.mrb[0].mxu0 %v5783
        %v5886 = vpop.f32.mrb[0].mxu0
        %v5887 = vadd.f32 0.0, %v5886
        %v5888 = vpop.f32.mrb[0].mxu0
        %5889 = vdwg.mxu0
        %v5890 = vadd.f32 %v5278, %v5852
        %v5891 = vadd.f32 %v5279, %v5857
        %v5892 = vadd.f32 %v5280, %v5862
        %v5893 = vadd.f32 %v5281, %v5867
        %v5894 = vadd.f32 %v5282, %v5872
        %v5895 = vadd.f32 %v5283, %v5877
        %v5896 = vadd.f32 %v5284, %v5882
        %v5897 = vadd.f32 %v5285, %v5887
        %v5898 = vld [vmem:[%s11] sm:$0x1]
        %v5900 = vlaneseq
        %v5901 = vshrl.u32 %v5900, 7
        %v5902 = vsub.s32 0, %v5901
        %v5903 = vrot.slane %v5898, %v5902
        %v5905 = vadd.f32 %v5890, %v5903
        %v5906 = vadd.f32 %v5891, %v5903
        %v5907 = vadd.f32 %v5892, %v5903
        %v5908 = vadd.f32 %v5893, %v5903
        %v5909 = vadd.f32 %v5894, %v5903
        %v5910 = vadd.f32 %v5895, %v5903
        %v5911 = vadd.f32 %v5896, %v5903
        %v5912 = vadd.f32 %v5897, %v5903
        %s5913 = scalar_lea.vmem %s527, 64
        %5914 = vst.msk [vmem:[%s5913] sm:$0xff] %vm573, %v5905
        %5915 = vst.msk [vmem:[%s5913 + $0x8] sm:$0xff] %vm573, %v5906
        %5916 = vst.msk [vmem:[%s5913 + $0x10] sm:$0xff] %vm573, %v5907
        %5917 = vst.msk [vmem:[%s5913 + $0x18] sm:$0xff] %vm573, %v5908
        %5918 = vst.msk [vmem:[%s5913 + $0x20] sm:$0xff] %vm573, %v5909
        %5919 = vst.msk [vmem:[%s5913 + $0x28] sm:$0xff] %vm573, %v5910
        %5920 = vst.msk [vmem:[%s5913 + $0x30] sm:$0xff] %vm573, %v5911
        %5921 = vst.msk [vmem:[%s5913 + $0x38] sm:$0xff] %vm573, %v5912
        %s5922 = smul.u32 2, %s28
        %p5923 = scmp.lt.s32.totalorder %s5922, 3
        %s5924 = scalar_select %p5923, %s5922, 3
        %s5925 = smul.addr %s5924, 8
        %s5926 = smul.addr %s5925, 8
        %s5927 = scalar_lea.vmem %s12, %s5926
        %s5928 = sand.u32 %s334, 1
        %s5929 = scalar_lea.sflag [#allocation3], %s5928
        %s5930 = sand.u32 %s334, 1
        %s5931 = smul.addr %s5930, 256
        %s5932 = scalar_lea.vmem [#allocation2], %s5931
        // Predicated region
        $region69: #{tpu_custom_call.1} parent=67 // pred_check
          %p5933 = pneg %p318
        $region70: #{tpu_custom_call.1} parent=67 // pred_check_branch
          %5935 = sbr.rel (%p5933) target = $region72
        $region71: #{tpu_custom_call.1} parent=67 // pred_region
          %s5936 = smul.u32 2, %s28
        $region72: #{tpu_custom_call.1} parent=67 // pred_fallthru
          _
        // Predicated region
        $region73: #{tpu_custom_call.1} parent=67 // pred_check
          %p5937 = pneg %p344
        $region74: #{tpu_custom_call.1} parent=67 // pred_check_branch
          %5939 = sbr.rel (%p5937) target = $region76
        $region75: #{tpu_custom_call.1} parent=67 // pred_region
          %s5940 = smul.u32 2, %s28
          %s5942 = ssub.s32 4096, 4096
          %5943 = vsyncadd %s5929, %s5942
          %s5944 = smul.addr %s5940, 16
          %s5945 = smul.addr %s5944, 128
          %s5946 = scalar_lea.hbm %s13, %s5945
          %s5947 = sshll.u32 %s5932, 4
          %s5948 = int_to_ptr.vmem [resolvable:$true] %s5947
          %5953 = dma.vmem_to_hbm [thread:$0]  %s5948, 4096, %s5946, %s5929, 256, 256, 16
        $region76: #{tpu_custom_call.1} parent=67 // pred_fallthru
          _
      $region68: #{tpu_custom_call.1} parent=5 // pred_fallthru
        _
      %p5954 = scmp.le.s32.totalorder 2, %s23
      // Predicated region
      $region77: #{tpu_custom_call.1} parent=5 // pred_check
        %p5955 = pneg %p5954
      $region78: #{tpu_custom_call.1} parent=5 // pred_check_branch
        %5957 = sbr.rel (%p5955) target = $region80
      $region79: #{tpu_custom_call.1} parent=5 // pred_region
        %s5958 = ssub.s32 %s23, 2
        // Predicated region
        $region81: #{tpu_custom_call.1} parent=79 // pred_check
          %p5959 = pneg %p324
        $region82: #{tpu_custom_call.1} parent=79 // pred_check_branch
          %5961 = sbr.rel (%p5959) target = $region84
        $region83: #{tpu_custom_call.1} parent=79 // pred_region
          %s5962 = smul.u32 2, %s29
          %p5963 = scmp.lt.s32.totalorder %s5962, 3
          %s5964 = scalar_select %p5963, %s5962, 3
          %s5965 = smul.addr %s5964, 8
          %s5966 = smul.addr %s5965, 8
          %s5967 = scalar_lea.vmem %s12, %s5966
        $region84: #{tpu_custom_call.1} parent=79 // pred_fallthru
          _
        // Predicated region
        $region85: #{tpu_custom_call.1} parent=79 // pred_check
          %p5968 = pneg %p350
        $region86: #{tpu_custom_call.1} parent=79 // pred_check_branch
          %5970 = sbr.rel (%p5968) target = $region88
        $region87: #{tpu_custom_call.1} parent=79 // pred_region
          %s5971 = sand.u32 %s335, 1
          %s5972 = scalar_lea.sflag [#allocation3], %s5971
          %s5973 = sand.u32 %s335, 1
          %s5974 = smul.addr %s5973, 256
          %s5975 = scalar_lea.vmem [#allocation2], %s5974
          %5976 = dma.done %s5972, 4096
        $region88: #{tpu_custom_call.1} parent=79 // pred_fallthru
          _
      $region80: #{tpu_custom_call.1} parent=5 // pred_fallthru
        _
    $region6: #{tpu_custom_call.1} parent=1 // loop_footer
      %s27 = sadd.s32 1, %s23
    $region7: #{tpu_custom_call.1} parent=1 // loop_footer_branch
      %22 = sbr.rel target = $region3
    $region8: #{tpu_custom_call.1} parent=1 // loop_exit
      _
    %5977 = vsyncpa [#allocation3], 1
    %s5978 = scalar_lea.sflag [#allocation3], 1
    %5979 = vsyncpa %s5978, 1

</llo_original>
